<compile_context>
chip_gen: v6e
topology: v6e:2x2x1
jax: 0.10.0
libtpu: 0.0.40
codegen_flags: <defaults>
</compile_context>

<pallas_src>
import jax
import jax.numpy as jnp
from jax.experimental import pallas as pl
from jax.experimental.pallas import tpu as pltpu

LIN_IN = 200           # Linear input features
H0 = W0 = 20           # after Linear: 400 = 20*20
H1 = W1 = 22           # after ConvTranspose2d(1,1,3)
H2 = W2 = 24           # after ConvTranspose2d(1,1,3)
H3 = W3 = 28           # after ConvTranspose2d(1,1,5)


def _round_up(n, m):
    return ((n + m - 1) // m) * m


def _elu(x):
    # ELU(alpha=1); overflow-safe negative branch.
    return jnp.where(x > 0, x, jnp.exp(jnp.minimum(x, 0.0)) - 1.0)


def _decoder_kernel(x_ref, w1_ref, b1_ref,
                    m2_ref, b2_ref, m3_ref, b3_ref, m4_ref, b4_ref,
                    o_ref):
    # x_ref : (TB, 200)            w1_ref: (200, 400)   b1_ref: (1, 400)
    # m2_ref: (400, 484)           b2_ref: (1, 484)
    # m3_ref: (484, 576)           b3_ref: (1, 576)
    # m4_ref: (576, 784)           b4_ref: (1, 784)
    # o_ref : (TB, 784)            (784 = 28*28, row-major flattened NCHW image)

    # Linear(200 -> 400).  The .view(B,1,20,20) in PyTorch is a pure relayout;
    # the row-major flattened lane layout already matches, so no data movement.
    h = jnp.dot(x_ref[...], w1_ref[...],
                preferred_element_type=jnp.float32) + b1_ref[...]

    # ConvTranspose2d(1,1,3) as matmul against precomputed scatter matrix + ELU
    d = jnp.dot(h, m2_ref[...], preferred_element_type=jnp.float32) + b2_ref[...]
    d = _elu(d)

    # ConvTranspose2d(1,1,3) + ELU
    d = jnp.dot(d, m3_ref[...], preferred_element_type=jnp.float32) + b3_ref[...]
    d = _elu(d)

    # ConvTranspose2d(1,1,5) + Sigmoid
    d = jnp.dot(d, m4_ref[...], preferred_element_type=jnp.float32) + b4_ref[...]
    o_ref[...] = (1.0 / (1.0 + jnp.exp(-d))).astype(o_ref.dtype)


def _deconv_as_matrix(w, h_in, w_in):
    """Build the (h_in*w_in, h_out*w_out) matrix M such that, for a row-major
    flattened image x, x @ M == ConvTranspose2d(stride=1, padding=0) with
    kernel w (bias excluded).  Weight-only, batch-independent preprocessing."""
    k = w.shape[-1]
    h_out, w_out = h_in + k - 1, w_in + k - 1
    m = jnp.zeros((h_in * w_in, h_out * w_out), dtype=jnp.float32)
    ii = jnp.arange(h_in)[:, None]
    jj = jnp.arange(w_in)[None, :]
    rows = (ii * w_in + jj).reshape(-1)
    for ki in range(k):
        for kj in range(k):
            cols = ((ii + ki) * w_out + (jj + kj)).reshape(-1)
            m = m.at[rows, cols].set(w[ki, kj])
    return m


def decoder_forward(x, w1, b1, w2, b2, w3, b3, w4, b4, *, tile_b=256):
    """x: (B, 200).  w1: (200, 400) (note: (in, out); PyTorch stores (out, in)).
    b1: (400,).  w2, w3: (3, 3); w4: (5, 5) (PyTorch stores (1,1,k,k)).
    b2, b3, b4: scalars.  Returns (B, 1, 28, 28) float32."""
    B = x.shape[0]
    x = x.astype(jnp.float32)

    # Batch-independent weight preprocessing (cheap; const-folded under jit).
    m2 = _deconv_as_matrix(w2.astype(jnp.float32), H0, W0)   # (400, 484)
    m3 = _deconv_as_matrix(w3.astype(jnp.float32), H1, W1)   # (484, 576)
    m4 = _deconv_as_matrix(w4.astype(jnp.float32), H2, W2)   # (576, 784)
    b1v = b1.reshape(1, H0 * W0).astype(jnp.float32)
    b2v = jnp.full((1, H1 * W1), b2, dtype=jnp.float32)
    b3v = jnp.full((1, H2 * W2), b3, dtype=jnp.float32)
    b4v = jnp.full((1, H3 * W3), b4, dtype=jnp.float32)

    # Batch tiling: multiple-of-8 tile, explicit zero-padding for the remainder
    # (padded rows are computed and then sliced away).
    tb = _round_up(min(tile_b, _round_up(B, 8)), 8)
    b_pad = _round_up(B, tb)
    if b_pad != B:
        x = jnp.pad(x, ((0, b_pad - B), (0, 0)))
    grid = (b_pad // tb,)

    flops_per_row = 2 * (LIN_IN * H0 * W0 + H0 * W0 * H1 * W1
                         + H1 * W1 * H2 * W2 + H2 * W2 * H3 * W3)
    weight_bytes = 4 * (LIN_IN * H0 * W0 + H0 * W0 * H1 * W1
                        + H1 * W1 * H2 * W2 + H2 * W2 * H3 * W3)
    cost = pl.CostEstimate(
        flops=b_pad * flops_per_row,
        transcendentals=b_pad * (H1 * W1 + H2 * W2 + H3 * W3),
        bytes_accessed=b_pad * (LIN_IN + H3 * W3) * 4 + weight_bytes,
    )

    out = pl.pallas_call(
        _decoder_kernel,
        out_shape=jax.ShapeDtypeStruct((b_pad, H3 * W3), jnp.float32),
        grid=grid,
        in_specs=[
            pl.BlockSpec((tb, LIN_IN), lambda i: (i, 0)),          # x (streamed)
            pl.BlockSpec((LIN_IN, H0 * W0), lambda i: (0, 0)),     # w1 (resident)
            pl.BlockSpec((1, H0 * W0), lambda i: (0, 0)),          # b1
            pl.BlockSpec((H0 * W0, H1 * W1), lambda i: (0, 0)),    # m2
            pl.BlockSpec((1, H1 * W1), lambda i: (0, 0)),          # b2
            pl.BlockSpec((H1 * W1, H2 * W2), lambda i: (0, 0)),    # m3
            pl.BlockSpec((1, H2 * W2), lambda i: (0, 0)),          # b3
            pl.BlockSpec((H2 * W2, H3 * W3), lambda i: (0, 0)),    # m4
            pl.BlockSpec((1, H3 * W3), lambda i: (0, 0)),          # b4
        ],
        out_specs=pl.BlockSpec((tb, H3 * W3), lambda i: (i, 0)),
        compiler_params=pltpu.CompilerParams(
            dimension_semantics=("parallel",),   # shard batch tiles across TCs (v7x)
            vmem_limit_bytes=32 << 20,
        ),
        cost_estimate=cost,
    )(x, w1.astype(jnp.float32), b1v, m2, b2v, m3, b3v, m4, b4v)

    return out[:B].reshape(B, 1, H3, W3)


def _reference_forward(x, w1, b1, w2, b2, w3, b3, w4, b4):
    """Pure-JAX reference matching the PyTorch Decoder forward."""
    B = x.shape[0]
    h = jnp.dot(x, w1, precision=jax.lax.Precision.HIGHEST) + b1
    img = h.reshape(B, 1, H0, W0)

    def deconv(y, w, b):
        k = w.shape[-1]
        out = jax.lax.conv_general_dilated(
            y, w[::-1, ::-1][None, None],
            window_strides=(1, 1),
            padding=[(k - 1, k - 1), (k - 1, k - 1)],
            dimension_numbers=("NCHW", "OIHW", "NCHW"),
            precision=jax.lax.Precision.HIGHEST)
        return out + b

    img = jax.nn.elu(deconv(img, w2, b2))
    img = jax.nn.elu(deconv(img, w3, b3))
    img = jax.nn.sigmoid(deconv(img, w4, b4))
    return img


if __name__ == "__main__":
    key = jax.random.PRNGKey(0)
    keys = jax.random.split(key, 9)

    B = 16
    x = jax.random.normal(keys[0], (B, LIN_IN), dtype=jnp.float32)

    # Linear(200, 400) params: stored as (in, out) so the kernel does x @ w.
    bnd1 = 1.0 / (LIN_IN ** 0.5)
    w1 = jax.random.uniform(keys[1], (LIN_IN, H0 * W0),
                            minval=-bnd1, maxval=bnd1, dtype=jnp.float32)
    b1 = jax.random.uniform(keys[2], (H0 * W0,),
                            minval=-bnd1, maxval=bnd1, dtype=jnp.float32)

    # ConvTranspose2d(1,1,k) params: stored as (k, k) + scalar bias
    # (PyTorch stores weight as (in_ch=1, out_ch=1, k, k)).
    def conv_init(kw, kb, k):
        bnd = 1.0 / ((k * k) ** 0.5)
        w = jax.random.uniform(kw, (k, k), minval=-bnd, maxval=bnd,
                               dtype=jnp.float32)
        b = jax.random.uniform(kb, (), minval=-bnd, maxval=bnd,
                               dtype=jnp.float32)
        return w, b

    w2, b2 = conv_init(keys[3], keys[4], 3)
    w3, b3 = conv_init(keys[5], keys[6], 3)
    w4, b4 = conv_init(keys[7], keys[8], 5)

    # tile_b=8 -> grid=(2,): exercises batch tiling + parallel semantics.
    out = decoder_forward(x, w1, b1, w2, b2, w3, b3, w4, b4, tile_b=8)
    out = jax.block_until_ready(out)

    ref = _reference_forward(x, w1, b1, w2, b2, w3, b3, w4, b4)
    assert out.shape == (B, 1, H3, W3)
    err = float(jnp.max(jnp.abs(out - ref)))
    assert jnp.allclose(out, ref, atol=1e-5, rtol=1e-5), f"mismatch: max abs err {err}"

    print("KERNEL_OK")
</pallas_src>

<mosaic_0001>
module attributes {stable_mosaic.version = 11 : i64} {
  func.func @_decoder_kernel(%arg0: i32, %arg1: memref<8x200xf32, #tpu.memory_space<vmem>>, %arg2: memref<200x400xf32, #tpu.memory_space<vmem>>, %arg3: memref<1x400xf32, #tpu.memory_space<vmem>>, %arg4: memref<400x484xf32, #tpu.memory_space<vmem>>, %arg5: memref<1x484xf32, #tpu.memory_space<vmem>>, %arg6: memref<484x576xf32, #tpu.memory_space<vmem>>, %arg7: memref<1x576xf32, #tpu.memory_space<vmem>>, %arg8: memref<576x784xf32, #tpu.memory_space<vmem>>, %arg9: memref<1x784xf32, #tpu.memory_space<vmem>>, %arg10: memref<8x784xf32, #tpu.memory_space<vmem>>) attributes {dimension_semantics = [#tpu.dimension_semantics<parallel>], iteration_bounds = array<i64: 2>, scalar_prefetch = 0 : i64, scratch_operands = 0 : i64, tpu.core_type = #tpu.core_type<tc>, window_params = [{transform_indices = @transform_0, window_bounds = array<i64: 8, 200>}, {pipeline_mode = #tpu.pipeline_mode<synchronous>, transform_indices = @transform_1, window_bounds = array<i64: 200, 400>}, {pipeline_mode = #tpu.pipeline_mode<synchronous>, transform_indices = @transform_2, window_bounds = array<i64: 1, 400>}, {pipeline_mode = #tpu.pipeline_mode<synchronous>, transform_indices = @transform_3, window_bounds = array<i64: 400, 484>}, {pipeline_mode = #tpu.pipeline_mode<synchronous>, transform_indices = @transform_4, window_bounds = array<i64: 1, 484>}, {pipeline_mode = #tpu.pipeline_mode<synchronous>, transform_indices = @transform_5, window_bounds = array<i64: 484, 576>}, {pipeline_mode = #tpu.pipeline_mode<synchronous>, transform_indices = @transform_6, window_bounds = array<i64: 1, 576>}, {pipeline_mode = #tpu.pipeline_mode<synchronous>, transform_indices = @transform_7, window_bounds = array<i64: 576, 784>}, {pipeline_mode = #tpu.pipeline_mode<synchronous>, transform_indices = @transform_8, window_bounds = array<i64: 1, 784>}, {transform_indices = @transform_9, window_bounds = array<i64: 8, 784>}]} {
    %c0 = arith.constant 0 : index
    %c0_0 = arith.constant 0 : index
    %0 = vector.load %arg1[%c0, %c0_0] : memref<8x200xf32, #tpu.memory_space<vmem>>, vector<8x200xf32>
    %c0_1 = arith.constant 0 : index
    %c0_2 = arith.constant 0 : index
    %1 = vector.load %arg2[%c0_1, %c0_2] : memref<200x400xf32, #tpu.memory_space<vmem>>, vector<200x400xf32>
    %cst = arith.constant dense<0.000000e+00> : vector<8x400xf32>
    %2 = tpu.matmul %0, %1, %cst {dimension_numbers = #tpu.dot_dimension_numbers<[1], [0], [0], [1], [0, 0, 1, 1], [], []>} : vector<8x200xf32>, vector<200x400xf32>, vector<8x400xf32> -> vector<8x400xf32>
    %c0_3 = arith.constant 0 : index
    %c0_4 = arith.constant 0 : index
    %3 = vector.load %arg3[%c0_3, %c0_4] : memref<1x400xf32, #tpu.memory_space<vmem>>, vector<1x400xf32>
    %4 = vector.broadcast %3 : vector<1x400xf32> to vector<8x400xf32>
    %5 = arith.addf %2, %4 : vector<8x400xf32>
    %c0_5 = arith.constant 0 : index
    %c0_6 = arith.constant 0 : index
    %6 = vector.load %arg4[%c0_5, %c0_6] : memref<400x484xf32, #tpu.memory_space<vmem>>, vector<400x484xf32>
    %cst_7 = arith.constant dense<0.000000e+00> : vector<8x484xf32>
    %7 = tpu.matmul %5, %6, %cst_7 {dimension_numbers = #tpu.dot_dimension_numbers<[1], [0], [0], [1], [0, 0, 1, 1], [], []>} : vector<8x400xf32>, vector<400x484xf32>, vector<8x484xf32> -> vector<8x484xf32>
    %c0_8 = arith.constant 0 : index
    %c0_9 = arith.constant 0 : index
    %8 = vector.load %arg5[%c0_8, %c0_9] : memref<1x484xf32, #tpu.memory_space<vmem>>, vector<1x484xf32>
    %9 = vector.broadcast %8 : vector<1x484xf32> to vector<8x484xf32>
    %10 = arith.addf %7, %9 : vector<8x484xf32>
    %cst_10 = arith.constant 0.000000e+00 : f32
    %11 = vector.broadcast %cst_10 : f32 to vector<8x484xf32>
    %12 = arith.cmpf ogt, %10, %11 : vector<8x484xf32>
    %cst_11 = arith.constant 0.000000e+00 : f32
    %13 = vector.broadcast %cst_11 : f32 to vector<8x484xf32>
    %14 = arith.minimumf %10, %13 : vector<8x484xf32>
    %15 = math.exp %14 : vector<8x484xf32>
    %cst_12 = arith.constant 1.000000e+00 : f32
    %16 = vector.broadcast %cst_12 : f32 to vector<8x484xf32>
    %17 = arith.subf %15, %16 : vector<8x484xf32>
    %18 = arith.select %12, %10, %17 : vector<8x484xi1>, vector<8x484xf32>
    %c0_13 = arith.constant 0 : index
    %c0_14 = arith.constant 0 : index
    %19 = vector.load %arg6[%c0_13, %c0_14] : memref<484x576xf32, #tpu.memory_space<vmem>>, vector<484x576xf32>
    %cst_15 = arith.constant dense<0.000000e+00> : vector<8x576xf32>
    %20 = tpu.matmul %18, %19, %cst_15 {dimension_numbers = #tpu.dot_dimension_numbers<[1], [0], [0], [1], [0, 0, 1, 1], [], []>} : vector<8x484xf32>, vector<484x576xf32>, vector<8x576xf32> -> vector<8x576xf32>
    %c0_16 = arith.constant 0 : index
    %c0_17 = arith.constant 0 : index
    %21 = vector.load %arg7[%c0_16, %c0_17] : memref<1x576xf32, #tpu.memory_space<vmem>>, vector<1x576xf32>
    %22 = vector.broadcast %21 : vector<1x576xf32> to vector<8x576xf32>
    %23 = arith.addf %20, %22 : vector<8x576xf32>
    %cst_18 = arith.constant 0.000000e+00 : f32
    %24 = vector.broadcast %cst_18 : f32 to vector<8x576xf32>
    %25 = arith.cmpf ogt, %23, %24 : vector<8x576xf32>
    %cst_19 = arith.constant 0.000000e+00 : f32
    %26 = vector.broadcast %cst_19 : f32 to vector<8x576xf32>
    %27 = arith.minimumf %23, %26 : vector<8x576xf32>
    %28 = math.exp %27 : vector<8x576xf32>
    %cst_20 = arith.constant 1.000000e+00 : f32
    %29 = vector.broadcast %cst_20 : f32 to vector<8x576xf32>
    %30 = arith.subf %28, %29 : vector<8x576xf32>
    %31 = arith.select %25, %23, %30 : vector<8x576xi1>, vector<8x576xf32>
    %c0_21 = arith.constant 0 : index
    %c0_22 = arith.constant 0 : index
    %32 = vector.load %arg8[%c0_21, %c0_22] : memref<576x784xf32, #tpu.memory_space<vmem>>, vector<576x784xf32>
    %cst_23 = arith.constant dense<0.000000e+00> : vector<8x784xf32>
    %33 = tpu.matmul %31, %32, %cst_23 {dimension_numbers = #tpu.dot_dimension_numbers<[1], [0], [0], [1], [0, 0, 1, 1], [], []>} : vector<8x576xf32>, vector<576x784xf32>, vector<8x784xf32> -> vector<8x784xf32>
    %c0_24 = arith.constant 0 : index
    %c0_25 = arith.constant 0 : index
    %34 = vector.load %arg9[%c0_24, %c0_25] : memref<1x784xf32, #tpu.memory_space<vmem>>, vector<1x784xf32>
    %35 = vector.broadcast %34 : vector<1x784xf32> to vector<8x784xf32>
    %36 = arith.addf %33, %35 : vector<8x784xf32>
    %cst_26 = arith.constant 0.000000e+00 : f32
    %37 = vector.broadcast %cst_26 : f32 to vector<8x784xf32>
    %38 = arith.subf %37, %36 : vector<8x784xf32>
    %39 = math.exp %38 : vector<8x784xf32>
    %cst_27 = arith.constant 1.000000e+00 : f32
    %40 = vector.broadcast %cst_27 : f32 to vector<8x784xf32>
    %41 = arith.addf %40, %39 : vector<8x784xf32>
    %cst_28 = arith.constant 1.000000e+00 : f32
    %42 = vector.broadcast %cst_28 : f32 to vector<8x784xf32>
    %43 = arith.divf %42, %41 : vector<8x784xf32>
    %c0_29 = arith.constant 0 : index
    %c0_30 = arith.constant 0 : index
    %44 = vector.load %arg10[%c0_29, %c0_30] : memref<8x784xf32, #tpu.memory_space<vmem>>, vector<8x784xf32>
    tpu.vector_store %arg10[%c0_29, %c0_30], %43 {strides = array<i32>} : memref<8x784xf32, #tpu.memory_space<vmem>>, vector<8x784xf32>,
    return
  }
  func.func @transform_0(%arg0: i32) -> (i32, i32) {
    %c0_i32 = arith.constant 0 : i32
    %c0_i32_0 = arith.constant 0 : i32
    return %arg0, %c0_i32 : i32, i32
  }
  func.func @transform_1(%arg0: i32) -> (i32, i32) {
    %c0_i32 = arith.constant 0 : i32
    %c0_i32_0 = arith.constant 0 : i32
    %c0_i32_1 = arith.constant 0 : i32
    return %c0_i32, %c0_i32_0 : i32, i32
  }
  func.func @transform_2(%arg0: i32) -> (i32, i32) {
    %c0_i32 = arith.constant 0 : i32
    %c0_i32_0 = arith.constant 0 : i32
    %c0_i32_1 = arith.constant 0 : i32
    return %c0_i32, %c0_i32_0 : i32, i32
  }
  func.func @transform_3(%arg0: i32) -> (i32, i32) {
    %c0_i32 = arith.constant 0 : i32
    %c0_i32_0 = arith.constant 0 : i32
    %c0_i32_1 = arith.constant 0 : i32
    return %c0_i32, %c0_i32_0 : i32, i32
  }
  func.func @transform_4(%arg0: i32) -> (i32, i32) {
    %c0_i32 = arith.constant 0 : i32
    %c0_i32_0 = arith.constant 0 : i32
    %c0_i32_1 = arith.constant 0 : i32
    return %c0_i32, %c0_i32_0 : i32, i32
  }
  func.func @transform_5(%arg0: i32) -> (i32, i32) {
    %c0_i32 = arith.constant 0 : i32
    %c0_i32_0 = arith.constant 0 : i32
    %c0_i32_1 = arith.constant 0 : i32
    return %c0_i32, %c0_i32_0 : i32, i32
  }
  func.func @transform_6(%arg0: i32) -> (i32, i32) {
    %c0_i32 = arith.constant 0 : i32
    %c0_i32_0 = arith.constant 0 : i32
    %c0_i32_1 = arith.constant 0 : i32
    return %c0_i32, %c0_i32_0 : i32, i32
  }
  func.func @transform_7(%arg0: i32) -> (i32, i32) {
    %c0_i32 = arith.constant 0 : i32
    %c0_i32_0 = arith.constant 0 : i32
    %c0_i32_1 = arith.constant 0 : i32
    return %c0_i32, %c0_i32_0 : i32, i32
  }
  func.func @transform_8(%arg0: i32) -> (i32, i32) {
    %c0_i32 = arith.constant 0 : i32
    %c0_i32_0 = arith.constant 0 : i32
    %c0_i32_1 = arith.constant 0 : i32
    return %c0_i32, %c0_i32_0 : i32, i32
  }
  func.func @transform_9(%arg0: i32) -> (i32, i32) {
    %c0_i32 = arith.constant 0 : i32
    %c0_i32_0 = arith.constant 0 : i32
    return %arg0, %c0_i32 : i32, i32
  }
}

</mosaic_0001>

<llo_original>
// kernel: tpu_custom_call.1
$region0: #{tpu_custom_call.1}
  #allocation0 [shape = 'u32[]', space=smem, size = 0x4, offset = 0x4, fixed_abs, tag = 'smem constant byte address 0x4 - core index']
  #allocation1 [shape = 'u32[144,128]{1,0:T(1,128)}', space=vmem, size = 0x12000, scoped, tag = 'internal scratch']
  %s0 = inlined_call_operand.vmem [shape: f32[16,200], index: 0, kind: input, shape index: {}]
  %s1 = inlined_call_operand.vmem [shape: f32[200,400], index: 1, kind: input, shape index: {}]
  %s2 = inlined_call_operand.vmem [shape: f32[1,400], index: 2, kind: input, shape index: {}]
  %s3 = inlined_call_operand.vmem [shape: f32[400,484], index: 3, kind: input, shape index: {}]
  %s4 = inlined_call_operand.vmem [shape: f32[1,484], index: 4, kind: input, shape index: {}]
  %s5 = inlined_call_operand.vmem [shape: f32[484,576], index: 5, kind: input, shape index: {}]
  %s6 = inlined_call_operand.vmem [shape: f32[1,576], index: 6, kind: input, shape index: {}]
  %s7 = inlined_call_operand.vmem [shape: f32[576,784], index: 7, kind: input, shape index: {}]
  %s8 = inlined_call_operand.vmem [shape: f32[1,784], index: 8, kind: input, shape index: {}]
  %s9 = inlined_call_operand.hbm [shape: f32[16,784], index: 9, kind: output, shape index: {}]
  %s10 = sld [smem:[#allocation0]]
  $region69: #{tpu_custom_call.1} parent=0
    _
  %s12 = ssub.s32 1, %s10
  %s13 = scalar_select 0, %s12, %s10
  $region1: #{tpu_custom_call.1} parent=0
    #allocation2 [shape = 'u8[57344]{0}', space=vmem, size = 0xe000, scoped, tag = 'output window, operand 0']
    #allocation3 [shape = 's32[2]{0}', space=sflag, size = 0x8, scoped, tag = 'scoped memory for tpu_custom_call.1']
    %14 = vsyncpa [#allocation3], 0
    %s15 = scalar_lea.sflag [#allocation3], 1
    %16 = vsyncpa %s15, 0
    loop: start=0, step=1, limit=4
    $region2: #{tpu_custom_call.1} parent=1 // loop_pre_header
      _
    $region3: #{tpu_custom_call.1} parent=1 // loop_header
      %s18 = sphi 0, %s22
      %p19 = scmp.ge.s32.totalorder %s18, 4
      %s28 = sphi 0, %s30
      %s31 = sphi 0, %s28
      %s32 = sphi 0, %s31
      %s48 = sphi 0, %s32
      %s52 = sphi 0, %s52
      %s54 = sphi 0, %s52
      %s55 = sphi 0, %s54
      %s69 = sphi 0, %s55
      %s73 = sphi 0, %s73
      %s75 = sphi 0, %s73
      %s76 = sphi 0, %s75
      %s90 = sphi 0, %s76
      %s94 = sphi 0, %s94
      %s96 = sphi 0, %s94
      %s97 = sphi 0, %s96
      %s111 = sphi 0, %s97
      %s115 = sphi 0, %s115
      %s117 = sphi 0, %s115
      %s118 = sphi 0, %s117
      %s132 = sphi 0, %s118
      %s136 = sphi 0, %s136
      %s138 = sphi 0, %s136
      %s139 = sphi 0, %s138
      %s153 = sphi 0, %s139
      %s157 = sphi 0, %s157
      %s159 = sphi 0, %s157
      %s160 = sphi 0, %s159
      %s174 = sphi 0, %s160
      %s178 = sphi 0, %s178
      %s180 = sphi 0, %s178
      %s181 = sphi 0, %s180
      %s195 = sphi 0, %s181
      %s199 = sphi 0, %s199
      %s201 = sphi 0, %s199
      %s202 = sphi 0, %s201
      %s216 = sphi 0, %s202
      %s222 = sphi 0, %s224
      %s225 = sphi 0, %s222
      %s226 = sphi 0, %s225
      %s242 = sphi 0, %s226
    $region4: #{tpu_custom_call.1} parent=1 // loop_header_branch
      %21 = sbr.rel (%p19) target = $region8
    $region5: #{tpu_custom_call.1} parent=1 // loop_body
      %s23 = ssub.s32 %s18, 1
      %s24 = ssub.s32 %s18, 2
      %s25 = sadd.s32 %s18, 1
      %s26 = ssub.s32 %s18, %s25
      %p27 = scmp.eq.s32.totalorder %s26, 0
      %s29 = sadd.s32 %s28, 1
      %s30 = scalar_select %p27, %s28, %s29
      %p33 = pneg %p27
      %p34 = scmp.eq.s32.totalorder %s18, 1
      %p35 = por %p33, %p34
      %p36 = scmp.ne.s32.totalorder %s28, %s31
      %p37 = scmp.eq.s32.totalorder %s18, 0
      %p38 = por %p36, %p37
      %p39 = scmp.ne.s32.totalorder %s28, %s31
      %p40 = scmp.eq.s32.totalorder %s23, 1
      %p41 = por %p39, %p40
      %p42 = scmp.ne.s32.totalorder %s31, %s32
      %p43 = scmp.eq.s32.totalorder %s23, 0
      %p44 = por %p42, %p43
      %p45 = scmp.ne.s32.totalorder %s31, %s32
      %p46 = scmp.eq.s32.totalorder %s24, 1
      %p47 = por %p45, %p46
      %p49 = scmp.ne.s32.totalorder %s32, %s48
      %p50 = scmp.eq.s32.totalorder %s24, 0
      %p51 = por %p49, %p50
      %s53 = sadd.s32 %s52, 1
      %p56 = scmp.eq.s32.totalorder %s18, 1
      %p57 = scmp.ne.s32.totalorder %s52, %s54
      %p58 = scmp.eq.s32.totalorder %s18, 0
      %p59 = por %p57, %p58
      %p60 = scmp.ne.s32.totalorder %s52, %s54
      %p61 = scmp.eq.s32.totalorder %s23, 1
      %p62 = por %p60, %p61
      %p63 = scmp.ne.s32.totalorder %s54, %s55
      %p64 = scmp.eq.s32.totalorder %s23, 0
      %p65 = por %p63, %p64
      %p66 = scmp.ne.s32.totalorder %s54, %s55
      %p67 = scmp.eq.s32.totalorder %s24, 1
      %p68 = por %p66, %p67
      %p70 = scmp.ne.s32.totalorder %s55, %s69
      %p71 = scmp.eq.s32.totalorder %s24, 0
      %p72 = por %p70, %p71
      %s74 = sadd.s32 %s73, 1
      %p77 = scmp.eq.s32.totalorder %s18, 1
      %p78 = scmp.ne.s32.totalorder %s73, %s75
      %p79 = scmp.eq.s32.totalorder %s18, 0
      %p80 = por %p78, %p79
      %p81 = scmp.ne.s32.totalorder %s73, %s75
      %p82 = scmp.eq.s32.totalorder %s23, 1
      %p83 = por %p81, %p82
      %p84 = scmp.ne.s32.totalorder %s75, %s76
      %p85 = scmp.eq.s32.totalorder %s23, 0
      %p86 = por %p84, %p85
      %p87 = scmp.ne.s32.totalorder %s75, %s76
      %p88 = scmp.eq.s32.totalorder %s24, 1
      %p89 = por %p87, %p88
      %p91 = scmp.ne.s32.totalorder %s76, %s90
      %p92 = scmp.eq.s32.totalorder %s24, 0
      %p93 = por %p91, %p92
      %s95 = sadd.s32 %s94, 1
      %p98 = scmp.eq.s32.totalorder %s18, 1
      %p99 = scmp.ne.s32.totalorder %s94, %s96
      %p100 = scmp.eq.s32.totalorder %s18, 0
      %p101 = por %p99, %p100
      %p102 = scmp.ne.s32.totalorder %s94, %s96
      %p103 = scmp.eq.s32.totalorder %s23, 1
      %p104 = por %p102, %p103
      %p105 = scmp.ne.s32.totalorder %s96, %s97
      %p106 = scmp.eq.s32.totalorder %s23, 0
      %p107 = por %p105, %p106
      %p108 = scmp.ne.s32.totalorder %s96, %s97
      %p109 = scmp.eq.s32.totalorder %s24, 1
      %p110 = por %p108, %p109
      %p112 = scmp.ne.s32.totalorder %s97, %s111
      %p113 = scmp.eq.s32.totalorder %s24, 0
      %p114 = por %p112, %p113
      %s116 = sadd.s32 %s115, 1
      %p119 = scmp.eq.s32.totalorder %s18, 1
      %p120 = scmp.ne.s32.totalorder %s115, %s117
      %p121 = scmp.eq.s32.totalorder %s18, 0
      %p122 = por %p120, %p121
      %p123 = scmp.ne.s32.totalorder %s115, %s117
      %p124 = scmp.eq.s32.totalorder %s23, 1
      %p125 = por %p123, %p124
      %p126 = scmp.ne.s32.totalorder %s117, %s118
      %p127 = scmp.eq.s32.totalorder %s23, 0
      %p128 = por %p126, %p127
      %p129 = scmp.ne.s32.totalorder %s117, %s118
      %p130 = scmp.eq.s32.totalorder %s24, 1
      %p131 = por %p129, %p130
      %p133 = scmp.ne.s32.totalorder %s118, %s132
      %p134 = scmp.eq.s32.totalorder %s24, 0
      %p135 = por %p133, %p134
      %s137 = sadd.s32 %s136, 1
      %p140 = scmp.eq.s32.totalorder %s18, 1
      %p141 = scmp.ne.s32.totalorder %s136, %s138
      %p142 = scmp.eq.s32.totalorder %s18, 0
      %p143 = por %p141, %p142
      %p144 = scmp.ne.s32.totalorder %s136, %s138
      %p145 = scmp.eq.s32.totalorder %s23, 1
      %p146 = por %p144, %p145
      %p147 = scmp.ne.s32.totalorder %s138, %s139
      %p148 = scmp.eq.s32.totalorder %s23, 0
      %p149 = por %p147, %p148
      %p150 = scmp.ne.s32.totalorder %s138, %s139
      %p151 = scmp.eq.s32.totalorder %s24, 1
      %p152 = por %p150, %p151
      %p154 = scmp.ne.s32.totalorder %s139, %s153
      %p155 = scmp.eq.s32.totalorder %s24, 0
      %p156 = por %p154, %p155
      %s158 = sadd.s32 %s157, 1
      %p161 = scmp.eq.s32.totalorder %s18, 1
      %p162 = scmp.ne.s32.totalorder %s157, %s159
      %p163 = scmp.eq.s32.totalorder %s18, 0
      %p164 = por %p162, %p163
      %p165 = scmp.ne.s32.totalorder %s157, %s159
      %p166 = scmp.eq.s32.totalorder %s23, 1
      %p167 = por %p165, %p166
      %p168 = scmp.ne.s32.totalorder %s159, %s160
      %p169 = scmp.eq.s32.totalorder %s23, 0
      %p170 = por %p168, %p169
      %p171 = scmp.ne.s32.totalorder %s159, %s160
      %p172 = scmp.eq.s32.totalorder %s24, 1
      %p173 = por %p171, %p172
      %p175 = scmp.ne.s32.totalorder %s160, %s174
      %p176 = scmp.eq.s32.totalorder %s24, 0
      %p177 = por %p175, %p176
      %s179 = sadd.s32 %s178, 1
      %p182 = scmp.eq.s32.totalorder %s18, 1
      %p183 = scmp.ne.s32.totalorder %s178, %s180
      %p184 = scmp.eq.s32.totalorder %s18, 0
      %p185 = por %p183, %p184
      %p186 = scmp.ne.s32.totalorder %s178, %s180
      %p187 = scmp.eq.s32.totalorder %s23, 1
      %p188 = por %p186, %p187
      %p189 = scmp.ne.s32.totalorder %s180, %s181
      %p190 = scmp.eq.s32.totalorder %s23, 0
      %p191 = por %p189, %p190
      %p192 = scmp.ne.s32.totalorder %s180, %s181
      %p193 = scmp.eq.s32.totalorder %s24, 1
      %p194 = por %p192, %p193
      %p196 = scmp.ne.s32.totalorder %s181, %s195
      %p197 = scmp.eq.s32.totalorder %s24, 0
      %p198 = por %p196, %p197
      %s200 = sadd.s32 %s199, 1
      %p203 = scmp.eq.s32.totalorder %s18, 1
      %p204 = scmp.ne.s32.totalorder %s199, %s201
      %p205 = scmp.eq.s32.totalorder %s18, 0
      %p206 = por %p204, %p205
      %p207 = scmp.ne.s32.totalorder %s199, %s201
      %p208 = scmp.eq.s32.totalorder %s23, 1
      %p209 = por %p207, %p208
      %p210 = scmp.ne.s32.totalorder %s201, %s202
      %p211 = scmp.eq.s32.totalorder %s23, 0
      %p212 = por %p210, %p211
      %p213 = scmp.ne.s32.totalorder %s201, %s202
      %p214 = scmp.eq.s32.totalorder %s24, 1
      %p215 = por %p213, %p214
      %p217 = scmp.ne.s32.totalorder %s202, %s216
      %p218 = scmp.eq.s32.totalorder %s24, 0
      %p219 = por %p217, %p218
      %s220 = ssub.s32 %s18, %s25
      %p221 = scmp.eq.s32.totalorder %s220, 0
      %s223 = sadd.s32 %s222, 1
      %s224 = scalar_select %p221, %s222, %s223
      %p227 = pneg %p221
      %p228 = scmp.eq.s32.totalorder %s18, 1
      %p229 = por %p227, %p228
      %p230 = scmp.ne.s32.totalorder %s222, %s225
      %p231 = scmp.eq.s32.totalorder %s18, 0
      %p232 = por %p230, %p231
      %p233 = scmp.ne.s32.totalorder %s222, %s225
      %p234 = scmp.eq.s32.totalorder %s23, 1
      %p235 = por %p233, %p234
      %p236 = scmp.ne.s32.totalorder %s225, %s226
      %p237 = scmp.eq.s32.totalorder %s23, 0
      %p238 = por %p236, %p237
      %p239 = scmp.ne.s32.totalorder %s225, %s226
      %p240 = scmp.eq.s32.totalorder %s24, 1
      %p241 = por %p239, %p240
      %p243 = scmp.ne.s32.totalorder %s226, %s242
      %p244 = scmp.eq.s32.totalorder %s24, 0
      %p245 = por %p243, %p244
      %p246 = scmp.le.s32.totalorder 1, %s18
      %p247 = scmp.lt.s32.totalorder %s18, 3
      %p248 = pnand %p246, %p247
      %p249 = pneg %p248
      // Predicated region
      $region9: #{tpu_custom_call.1} parent=5 // pred_check
        _
      $region10: #{tpu_custom_call.1} parent=5 // pred_check_branch
        %251 = sbr.rel (%p248) target = $region12
      $region11: #{tpu_custom_call.1} parent=5 // pred_region
        %s252 = ssub.s32 %s18, 1
        // Predicated region
        $region13: #{tpu_custom_call.1} parent=11 // pred_check
          %p253 = pneg %p65
        $region14: #{tpu_custom_call.1} parent=11 // pred_check_branch
          %255 = sbr.rel (%p253) target = $region16
        $region15: #{tpu_custom_call.1} parent=11 // pred_region
          _
        $region16: #{tpu_custom_call.1} parent=11 // pred_fallthru
          _
        // Predicated region
        $region17: #{tpu_custom_call.1} parent=11 // pred_check
          %p256 = pneg %p86
        $region18: #{tpu_custom_call.1} parent=11 // pred_check_branch
          %258 = sbr.rel (%p256) target = $region20
        $region19: #{tpu_custom_call.1} parent=11 // pred_region
          _
        $region20: #{tpu_custom_call.1} parent=11 // pred_fallthru
          _
        // Predicated region
        $region21: #{tpu_custom_call.1} parent=11 // pred_check
          %p259 = pneg %p107
        $region22: #{tpu_custom_call.1} parent=11 // pred_check_branch
          %261 = sbr.rel (%p259) target = $region24
        $region23: #{tpu_custom_call.1} parent=11 // pred_region
          _
        $region24: #{tpu_custom_call.1} parent=11 // pred_fallthru
          _
        // Predicated region
        $region25: #{tpu_custom_call.1} parent=11 // pred_check
          %p262 = pneg %p128
        $region26: #{tpu_custom_call.1} parent=11 // pred_check_branch
          %264 = sbr.rel (%p262) target = $region28
        $region27: #{tpu_custom_call.1} parent=11 // pred_region
          _
        $region28: #{tpu_custom_call.1} parent=11 // pred_fallthru
          _
        // Predicated region
        $region29: #{tpu_custom_call.1} parent=11 // pred_check
          %p265 = pneg %p149
        $region30: #{tpu_custom_call.1} parent=11 // pred_check_branch
          %267 = sbr.rel (%p265) target = $region32
        $region31: #{tpu_custom_call.1} parent=11 // pred_region
          _
        $region32: #{tpu_custom_call.1} parent=11 // pred_fallthru
          _
        // Predicated region
        $region33: #{tpu_custom_call.1} parent=11 // pred_check
          %p268 = pneg %p170
        $region34: #{tpu_custom_call.1} parent=11 // pred_check_branch
          %270 = sbr.rel (%p268) target = $region36
        $region35: #{tpu_custom_call.1} parent=11 // pred_region
          _
        $region36: #{tpu_custom_call.1} parent=11 // pred_fallthru
          _
        // Predicated region
        $region37: #{tpu_custom_call.1} parent=11 // pred_check
          %p271 = pneg %p191
        $region38: #{tpu_custom_call.1} parent=11 // pred_check_branch
          %273 = sbr.rel (%p271) target = $region40
        $region39: #{tpu_custom_call.1} parent=11 // pred_region
          _
        $region40: #{tpu_custom_call.1} parent=11 // pred_fallthru
          _
        // Predicated region
        $region41: #{tpu_custom_call.1} parent=11 // pred_check
          %p274 = pneg %p212
        $region42: #{tpu_custom_call.1} parent=11 // pred_check_branch
          %276 = sbr.rel (%p274) target = $region44
        $region43: #{tpu_custom_call.1} parent=11 // pred_region
          _
        $region44: #{tpu_custom_call.1} parent=11 // pred_fallthru
          _
      $region12: #{tpu_custom_call.1} parent=5 // pred_fallthru
        _
      %p277 = scmp.lt.s32.totalorder %s18, 2
      // Predicated region
      $region45: #{tpu_custom_call.1} parent=5 // pred_check
        %p278 = pneg %p277
      $region46: #{tpu_custom_call.1} parent=5 // pred_check_branch
        %280 = sbr.rel (%p278) target = $region48
      $region47: #{tpu_custom_call.1} parent=5 // pred_region
        // Predicated region
        $region49: #{tpu_custom_call.1} parent=47 // pred_check
          %p281 = pneg %p38
        $region50: #{tpu_custom_call.1} parent=47 // pred_check_branch
          %283 = sbr.rel (%p281) target = $region52
        $region51: #{tpu_custom_call.1} parent=47 // pred_region
          %p284 = scmp.lt.s32.totalorder %s18, 1
          %s285 = scalar_select %p284, %s18, 1
          %s286 = smul.addr %s285, 2
          %s287 = smul.addr %s286, 8
          %s288 = scalar_lea.vmem %s0, %s287
        $region52: #{tpu_custom_call.1} parent=47 // pred_fallthru
          _
      $region48: #{tpu_custom_call.1} parent=5 // pred_fallthru
        _
      %p289 = scmp.le.s32.totalorder 1, %s18
      %p290 = scmp.lt.s32.totalorder %s18, 3
      %p291 = pnand %p289, %p290
      %p292 = pneg %p291
      // Predicated region
      $region53: #{tpu_custom_call.1} parent=5 // pred_check
        _
      $region54: #{tpu_custom_call.1} parent=5 // pred_check_branch
        %294 = sbr.rel (%p291) target = $region56
      $region55: #{tpu_custom_call.1} parent=5 // pred_region
        %s295 = ssub.s32 %s18, 1
        %p296 = scmp.lt.s32.totalorder %s23, 1
        %s297 = scalar_select %p296, %s23, 1
        %s298 = smul.addr %s297, 2
        %s299 = smul.addr %s298, 8
        %s300 = scalar_lea.vmem %s0, %s299
        %p301 = pneg %p44
        %p302 = pneg %p41
        %p303 = pneg %p65
        %p304 = pneg %p62
        %p305 = pneg %p86
        %p306 = pneg %p83
        %p307 = pneg %p107
        %p308 = pneg %p104
        %p309 = pneg %p128
        %p310 = pneg %p125
        %p311 = pneg %p149
        %p312 = pneg %p146
        %p313 = pneg %p170
        %p314 = pneg %p167
        %p315 = pneg %p191
        %p316 = pneg %p188
        %p317 = pneg %p212
        %p318 = pneg %p209
        %p319 = pneg %p238
        %p320 = pneg %p235
        %s321 = sand.u32 %s225, 1
        %s322 = scalar_lea.sflag [#allocation3], %s321
        %s323 = sand.u32 %s225, 1
        %s324 = smul.addr %s323, 56
        %s325 = scalar_lea.vmem [#allocation2], %s324
        %p326 = scmp.lt.s32.totalorder %s23, 1
        %s327 = scalar_select %p326, %s23, 1
        %s328 = smul.addr %s327, 2
        %s329 = smul.addr %s328, 8
        %s330 = scalar_lea.vmem %s0, %s329
        %v331 = vld [vmem:[%s330] sm:$0xff]
        %v332 = vld [vmem:[%s330 + $0x8] sm:$0xff]
        %v333 = vld [vmem:[%s1] sm:$0xff]
        %v334 = vld [vmem:[%s1 + $0x8] sm:$0xff]
        %v335 = vld [vmem:[%s1 + $0x10] sm:$0xff]
        %v336 = vld [vmem:[%s1 + $0x18] sm:$0xff]
        %v337 = vld [vmem:[%s1 + $0x20] sm:$0xff]
        %v338 = vld [vmem:[%s1 + $0x28] sm:$0xff]
        %v339 = vld [vmem:[%s1 + $0x30] sm:$0xff]
        %v340 = vld [vmem:[%s1 + $0x38] sm:$0xff]
        %v341 = vld [vmem:[%s1 + $0x40] sm:$0xff]
        %v342 = vld [vmem:[%s1 + $0x48] sm:$0xff]
        %v343 = vld [vmem:[%s1 + $0x50] sm:$0xff]
        %v344 = vld [vmem:[%s1 + $0x58] sm:$0xff]
        %v345 = vld [vmem:[%s1 + $0x60] sm:$0xff]
        %v346 = vld [vmem:[%s1 + $0x68] sm:$0xff]
        %v347 = vld [vmem:[%s1 + $0x70] sm:$0xff]
        %v348 = vld [vmem:[%s1 + $0x78] sm:$0xff]
        %v349 = vld [vmem:[%s1 + $0x80] sm:$0xff]
        %v350 = vld [vmem:[%s1 + $0x88] sm:$0xff]
        %v351 = vld [vmem:[%s1 + $0x90] sm:$0xff]
        %v352 = vld [vmem:[%s1 + $0x98] sm:$0xff]
        %v353 = vld [vmem:[%s1 + $0xa0] sm:$0xff]
        %v354 = vld [vmem:[%s1 + $0xa8] sm:$0xff]
        %v355 = vld [vmem:[%s1 + $0xb0] sm:$0xff]
        %v356 = vld [vmem:[%s1 + $0xb8] sm:$0xff]
        %v357 = vld [vmem:[%s1 + $0xc0] sm:$0xff]
        %v358 = vld [vmem:[%s1 + $0xc8] sm:$0xff]
        %v359 = vld [vmem:[%s1 + $0xd0] sm:$0xff]
        %v360 = vld [vmem:[%s1 + $0xd8] sm:$0xff]
        %v361 = vld [vmem:[%s1 + $0xe0] sm:$0xff]
        %v362 = vld [vmem:[%s1 + $0xe8] sm:$0xff]
        %v363 = vld [vmem:[%s1 + $0xf0] sm:$0xff]
        %v364 = vld [vmem:[%s1 + $0xf8] sm:$0xff]
        %v365 = vld [vmem:[%s1 + $0x100] sm:$0xff]
        %v366 = vld [vmem:[%s1 + $0x108] sm:$0xff]
        %v367 = vld [vmem:[%s1 + $0x110] sm:$0xff]
        %v368 = vld [vmem:[%s1 + $0x118] sm:$0xff]
        %v369 = vld [vmem:[%s1 + $0x120] sm:$0xff]
        %v370 = vld [vmem:[%s1 + $0x128] sm:$0xff]
        %v371 = vld [vmem:[%s1 + $0x130] sm:$0xff]
        %v372 = vld [vmem:[%s1 + $0x138] sm:$0xff]
        %v373 = vld [vmem:[%s1 + $0x140] sm:$0xff]
        %v374 = vld [vmem:[%s1 + $0x148] sm:$0xff]
        %v375 = vld [vmem:[%s1 + $0x150] sm:$0xff]
        %v376 = vld [vmem:[%s1 + $0x158] sm:$0xff]
        %v377 = vld [vmem:[%s1 + $0x160] sm:$0xff]
        %v378 = vld [vmem:[%s1 + $0x168] sm:$0xff]
        %v379 = vld [vmem:[%s1 + $0x170] sm:$0xff]
        %v380 = vld [vmem:[%s1 + $0x178] sm:$0xff]
        %v381 = vld [vmem:[%s1 + $0x180] sm:$0xff]
        %v382 = vld [vmem:[%s1 + $0x188] sm:$0xff]
        %v383 = vld [vmem:[%s1 + $0x190] sm:$0xff]
        %v384 = vld [vmem:[%s1 + $0x198] sm:$0xff]
        %v385 = vld [vmem:[%s1 + $0x1a0] sm:$0xff]
        %v386 = vld [vmem:[%s1 + $0x1a8] sm:$0xff]
        %v387 = vld [vmem:[%s1 + $0x1b0] sm:$0xff]
        %v388 = vld [vmem:[%s1 + $0x1b8] sm:$0xff]
        %v389 = vld [vmem:[%s1 + $0x1c0] sm:$0xff]
        %v390 = vld [vmem:[%s1 + $0x1c8] sm:$0xff]
        %v391 = vld [vmem:[%s1 + $0x1d0] sm:$0xff]
        %v392 = vld [vmem:[%s1 + $0x1d8] sm:$0xff]
        %v393 = vld [vmem:[%s1 + $0x1e0] sm:$0xff]
        %v394 = vld [vmem:[%s1 + $0x1e8] sm:$0xff]
        %v395 = vld [vmem:[%s1 + $0x1f0] sm:$0xff]
        %v396 = vld [vmem:[%s1 + $0x1f8] sm:$0xff]
        %v397 = vld [vmem:[%s1 + $0x200] sm:$0xff]
        %v398 = vld [vmem:[%s1 + $0x208] sm:$0xff]
        %v399 = vld [vmem:[%s1 + $0x210] sm:$0xff]
        %v400 = vld [vmem:[%s1 + $0x218] sm:$0xff]
        %v401 = vld [vmem:[%s1 + $0x220] sm:$0xff]
        %v402 = vld [vmem:[%s1 + $0x228] sm:$0xff]
        %v403 = vld [vmem:[%s1 + $0x230] sm:$0xff]
        %v404 = vld [vmem:[%s1 + $0x238] sm:$0xff]
        %v405 = vld [vmem:[%s1 + $0x240] sm:$0xff]
        %v406 = vld [vmem:[%s1 + $0x248] sm:$0xff]
        %v407 = vld [vmem:[%s1 + $0x250] sm:$0xff]
        %v408 = vld [vmem:[%s1 + $0x258] sm:$0xff]
        %v409 = vld [vmem:[%s1 + $0x260] sm:$0xff]
        %v410 = vld [vmem:[%s1 + $0x268] sm:$0xff]
        %v411 = vld [vmem:[%s1 + $0x270] sm:$0xff]
        %v412 = vld [vmem:[%s1 + $0x278] sm:$0xff]
        %v413 = vld [vmem:[%s1 + $0x280] sm:$0xff]
        %v414 = vld [vmem:[%s1 + $0x288] sm:$0xff]
        %v415 = vld [vmem:[%s1 + $0x290] sm:$0xff]
        %v416 = vld [vmem:[%s1 + $0x298] sm:$0xff]
        %v417 = vld [vmem:[%s1 + $0x2a0] sm:$0xff]
        %v418 = vld [vmem:[%s1 + $0x2a8] sm:$0xff]
        %v419 = vld [vmem:[%s1 + $0x2b0] sm:$0xff]
        %v420 = vld [vmem:[%s1 + $0x2b8] sm:$0xff]
        %v421 = vld [vmem:[%s1 + $0x2c0] sm:$0xff]
        %v422 = vld [vmem:[%s1 + $0x2c8] sm:$0xff]
        %v423 = vld [vmem:[%s1 + $0x2d0] sm:$0xff]
        %v424 = vld [vmem:[%s1 + $0x2d8] sm:$0xff]
        %v425 = vld [vmem:[%s1 + $0x2e0] sm:$0xff]
        %v426 = vld [vmem:[%s1 + $0x2e8] sm:$0xff]
        %v427 = vld [vmem:[%s1 + $0x2f0] sm:$0xff]
        %v428 = vld [vmem:[%s1 + $0x2f8] sm:$0xff]
        %v429 = vld [vmem:[%s1 + $0x300] sm:$0xff]
        %v430 = vld [vmem:[%s1 + $0x308] sm:$0xff]
        %v431 = vld [vmem:[%s1 + $0x310] sm:$0xff]
        %v432 = vld [vmem:[%s1 + $0x318] sm:$0xff]
        %v433 = vld [vmem:[%s2] sm:$0xf]
        %v435 = vlaneseq
        %v436 = vshrl.u32 %v435, 7
        %v437 = vsub.s32 0, %v436
        %v438 = vrot.slane %v433, %v437
        %v439 = vlaneseq
        %v440 = vshrl.u32 %v439, 7
        %v441 = vsub.s32 1, %v440
        %v442 = vrot.slane %v433, %v441
        %v443 = vlaneseq
        %v444 = vshrl.u32 %v443, 7
        %v445 = vsub.s32 2, %v444
        %v446 = vrot.slane %v433, %v445
        %v447 = vlaneseq
        %v448 = vshrl.u32 %v447, 7
        %v449 = vsub.s32 3, %v448
        %v450 = vrot.slane %v433, %v449
        %vm455 = vcmask 588800
        %v457 = vsel %vm455, %v332, 0
        %459 = vmatprep.subr.mxu0 %v394
        %460 = vmatpush1.msra.mxu0 %v393
        %461 = vmatprep.subr.mxu0 %v390
        %462 = vmatpush1.msra.mxu0 %v389
        %463 = vmatprep.subr.mxu0 %v386
        %464 = vmatpush1.msra.mxu0 %v385
        %465 = vmatprep.subr.mxu0 %v382
        %466 = vmatpush1.msra.mxu0 %v381
        %467 = vmatprep.subr.mxu0 %v378
        %468 = vmatpush1.msra.mxu0 %v377
        %469 = vmatprep.subr.mxu0 %v374
        %470 = vmatpush1.msra.mxu0 %v373
        %471 = vmatprep.subr.mxu0 %v370
        %472 = vmatpush1.msra.mxu0 %v369
        %473 = vmatprep.subr.mxu0 %v366
        %474 = vmatpush1.msra.mxu0 %v365
        %475 = vmatprep.subr.mxu0 %v362
        %476 = vmatpush1.msra.mxu0 %v361
        %477 = vmatprep.subr.mxu0 %v358
        %478 = vmatpush1.msra.mxu0 %v357
        %479 = vmatprep.subr.mxu0 %v354
        %480 = vmatpush1.msra.mxu0 %v353
        %481 = vmatprep.subr.mxu0 %v350
        %482 = vmatpush1.msra.mxu0 %v349
        %483 = vmatprep.subr.mxu0 %v346
        %484 = vmatpush1.msra.mxu0 %v345
        %485 = vmatprep.subr.mxu0 %v342
        %486 = vmatpush1.msra.mxu0 %v341
        %487 = vmatprep.subr.mxu0 %v338
        %488 = vmatpush1.msra.mxu0 %v337
        %489 = vmatprep.subr.mxu0 %v334
        %490 = vmatpush1.msra.mxu0 %v333
        %491 = vmatprep.subr.mxu0 0.0
        %492 = vmatpush2.msra.mxu0 0.0
        %493 = vmatprep.subr.mxu0 0.0
        %494 = vmatpush2.msra.mxu0 0.0
        %495 = vmatprep.subr.mxu0 0.0
        %496 = vmatpush2.msra.mxu0 0.0
        %497 = vmatprep.subr.mxu0 0.0
        %498 = vmatpush2.msra.mxu0 0.0
        %499 = vmatprep.subr.mxu0 0.0
        %500 = vmatpush2.msra.mxu0 0.0
        %501 = vmatprep.subr.mxu0 0.0
        %502 = vmatpush2.msra.mxu0 0.0
        %503 = vmatprep.subr.mxu0 0.0
        %504 = vmatpush2.msra.mxu0 0.0
        %505 = vmatprep.subr.mxu0 %v430
        %506 = vmatpush2.msra.mxu0 %v429
        %507 = vmatprep.subr.mxu0 %v426
        %508 = vmatpush2.msra.mxu0 %v425
        %509 = vmatprep.subr.mxu0 %v422
        %510 = vmatpush2.msra.mxu0 %v421
        %511 = vmatprep.subr.mxu0 %v418
        %512 = vmatpush2.msra.mxu0 %v417
        %513 = vmatprep.subr.mxu0 %v414
        %514 = vmatpush2.msra.mxu0 %v413
        %515 = vmatprep.subr.mxu0 %v410
        %516 = vmatpush2.msra.mxu0 %v409
        %517 = vmatprep.subr.mxu0 %v406
        %518 = vmatpush2.msra.mxu0 %v405
        %519 = vmatprep.subr.mxu0 %v402
        %520 = vmatpush2.msra.mxu0 %v401
        %521 = vmatprep.subr.mxu0 %v398
        %522 = vmatpush2.msra.mxu0 %v397
        %523 = vmatprep.mubr.f32.mxu0 %v457
        %524 = vmatmul.mubr.f32.gmra.mxu0 %v331
        %v525 = vpop.f32.mrf.mxu0
        %v526 = vadd.f32 %v438, %v525
        %v527 = vpop.f32.mrf.mxu0
        %v528 = vadd.f32 %v442, %v527
        %529 = vdwg.mxu0
        %530 = vmatprep.subr.mxu0 %v396
        %531 = vmatpush1.msra.mxu0 %v395
        %532 = vmatprep.subr.mxu0 %v392
        %533 = vmatpush1.msra.mxu0 %v391
        %534 = vmatprep.subr.mxu0 %v388
        %535 = vmatpush1.msra.mxu0 %v387
        %536 = vmatprep.subr.mxu0 %v384
        %537 = vmatpush1.msra.mxu0 %v383
        %538 = vmatprep.subr.mxu0 %v380
        %539 = vmatpush1.msra.mxu0 %v379
        %540 = vmatprep.subr.mxu0 %v376
        %541 = vmatpush1.msra.mxu0 %v375
        %542 = vmatprep.subr.mxu0 %v372
        %543 = vmatpush1.msra.mxu0 %v371
        %544 = vmatprep.subr.mxu0 %v368
        %545 = vmatpush1.msra.mxu0 %v367
        %546 = vmatprep.subr.mxu0 %v364
        %547 = vmatpush1.msra.mxu0 %v363
        %548 = vmatprep.subr.mxu0 %v360
        %549 = vmatpush1.msra.mxu0 %v359
        %550 = vmatprep.subr.mxu0 %v356
        %551 = vmatpush1.msra.mxu0 %v355
        %552 = vmatprep.subr.mxu0 %v352
        %553 = vmatpush1.msra.mxu0 %v351
        %554 = vmatprep.subr.mxu0 %v348
        %555 = vmatpush1.msra.mxu0 %v347
        %556 = vmatprep.subr.mxu0 %v344
        %557 = vmatpush1.msra.mxu0 %v343
        %558 = vmatprep.subr.mxu0 %v340
        %559 = vmatpush1.msra.mxu0 %v339
        %560 = vmatprep.subr.mxu0 %v336
        %561 = vmatpush1.msra.mxu0 %v335
        %562 = vmatprep.subr.mxu0 0.0
        %563 = vmatpush2.msra.mxu0 0.0
        %564 = vmatprep.subr.mxu0 0.0
        %565 = vmatpush2.msra.mxu0 0.0
        %566 = vmatprep.subr.mxu0 0.0
        %567 = vmatpush2.msra.mxu0 0.0
        %568 = vmatprep.subr.mxu0 0.0
        %569 = vmatpush2.msra.mxu0 0.0
        %570 = vmatprep.subr.mxu0 0.0
        %571 = vmatpush2.msra.mxu0 0.0
        %572 = vmatprep.subr.mxu0 0.0
        %573 = vmatpush2.msra.mxu0 0.0
        %574 = vmatprep.subr.mxu0 0.0
        %575 = vmatpush2.msra.mxu0 0.0
        %576 = vmatprep.subr.mxu0 %v432
        %577 = vmatpush2.msra.mxu0 %v431
        %578 = vmatprep.subr.mxu0 %v428
        %579 = vmatpush2.msra.mxu0 %v427
        %580 = vmatprep.subr.mxu0 %v424
        %581 = vmatpush2.msra.mxu0 %v423
        %582 = vmatprep.subr.mxu0 %v420
        %583 = vmatpush2.msra.mxu0 %v419
        %584 = vmatprep.subr.mxu0 %v416
        %585 = vmatpush2.msra.mxu0 %v415
        %586 = vmatprep.subr.mxu0 %v412
        %587 = vmatpush2.msra.mxu0 %v411
        %588 = vmatprep.subr.mxu0 %v408
        %589 = vmatpush2.msra.mxu0 %v407
        %590 = vmatprep.subr.mxu0 %v404
        %591 = vmatpush2.msra.mxu0 %v403
        %592 = vmatprep.subr.mxu0 %v400
        %593 = vmatpush2.msra.mxu0 %v399
        %594 = vmatprep.mubr.f32.mxu0 %v457
        %595 = vmatmul.mubr.f32.gmra.mxu0 %v331
        %v596 = vpop.f32.mrf.mxu0
        %v597 = vadd.f32 %v446, %v596
        %v598 = vpop.f32.mrf.mxu0
        %v599 = vadd.f32 %v450, %v598
        %600 = vdwg.mxu0
        %v601 = vld [vmem:[%s3] sm:$0xff]
        %v602 = vld [vmem:[%s3 + $0x8] sm:$0xff]
        %v603 = vld [vmem:[%s3 + $0x10] sm:$0xff]
        %v604 = vld [vmem:[%s3 + $0x18] sm:$0xff]
        %v605 = vld [vmem:[%s3 + $0x20] sm:$0xff]
        %v606 = vld [vmem:[%s3 + $0x28] sm:$0xff]
        %v607 = vld [vmem:[%s3 + $0x30] sm:$0xff]
        %v608 = vld [vmem:[%s3 + $0x38] sm:$0xff]
        %v609 = vld [vmem:[%s3 + $0x40] sm:$0xff]
        %v610 = vld [vmem:[%s3 + $0x48] sm:$0xff]
        %v611 = vld [vmem:[%s3 + $0x50] sm:$0xff]
        %v612 = vld [vmem:[%s3 + $0x58] sm:$0xff]
        %v613 = vld [vmem:[%s3 + $0x60] sm:$0xff]
        %v614 = vld [vmem:[%s3 + $0x68] sm:$0xff]
        %v615 = vld [vmem:[%s3 + $0x70] sm:$0xff]
        %v616 = vld [vmem:[%s3 + $0x78] sm:$0xff]
        %v617 = vld [vmem:[%s3 + $0x80] sm:$0xff]
        %v618 = vld [vmem:[%s3 + $0x88] sm:$0xff]
        %v619 = vld [vmem:[%s3 + $0x90] sm:$0xff]
        %v620 = vld [vmem:[%s3 + $0x98] sm:$0xff]
        %v621 = vld [vmem:[%s3 + $0xa0] sm:$0xff]
        %v622 = vld [vmem:[%s3 + $0xa8] sm:$0xff]
        %v623 = vld [vmem:[%s3 + $0xb0] sm:$0xff]
        %v624 = vld [vmem:[%s3 + $0xb8] sm:$0xff]
        %v625 = vld [vmem:[%s3 + $0xc0] sm:$0xff]
        %v626 = vld [vmem:[%s3 + $0xc8] sm:$0xff]
        %v627 = vld [vmem:[%s3 + $0xd0] sm:$0xff]
        %v628 = vld [vmem:[%s3 + $0xd8] sm:$0xff]
        %v629 = vld [vmem:[%s3 + $0xe0] sm:$0xff]
        %v630 = vld [vmem:[%s3 + $0xe8] sm:$0xff]
        %v631 = vld [vmem:[%s3 + $0xf0] sm:$0xff]
        %v632 = vld [vmem:[%s3 + $0xf8] sm:$0xff]
        %v633 = vld [vmem:[%s3 + $0x100] sm:$0xff]
        %v634 = vld [vmem:[%s3 + $0x108] sm:$0xff]
        %v635 = vld [vmem:[%s3 + $0x110] sm:$0xff]
        %v636 = vld [vmem:[%s3 + $0x118] sm:$0xff]
        %v637 = vld [vmem:[%s3 + $0x120] sm:$0xff]
        %v638 = vld [vmem:[%s3 + $0x128] sm:$0xff]
        %v639 = vld [vmem:[%s3 + $0x130] sm:$0xff]
        %v640 = vld [vmem:[%s3 + $0x138] sm:$0xff]
        %v641 = vld [vmem:[%s3 + $0x140] sm:$0xff]
        %v642 = vld [vmem:[%s3 + $0x148] sm:$0xff]
        %v643 = vld [vmem:[%s3 + $0x150] sm:$0xff]
        %v644 = vld [vmem:[%s3 + $0x158] sm:$0xff]
        %v645 = vld [vmem:[%s3 + $0x160] sm:$0xff]
        %v646 = vld [vmem:[%s3 + $0x168] sm:$0xff]
        %v647 = vld [vmem:[%s3 + $0x170] sm:$0xff]
        %v648 = vld [vmem:[%s3 + $0x178] sm:$0xff]
        %v649 = vld [vmem:[%s3 + $0x180] sm:$0xff]
        %v650 = vld [vmem:[%s3 + $0x188] sm:$0xff]
        %v651 = vld [vmem:[%s3 + $0x190] sm:$0xff]
        %v652 = vld [vmem:[%s3 + $0x198] sm:$0xff]
        %v653 = vld [vmem:[%s3 + $0x1a0] sm:$0xff]
        %v654 = vld [vmem:[%s3 + $0x1a8] sm:$0xff]
        %v655 = vld [vmem:[%s3 + $0x1b0] sm:$0xff]
        %v656 = vld [vmem:[%s3 + $0x1b8] sm:$0xff]
        %v657 = vld [vmem:[%s3 + $0x1c0] sm:$0xff]
        %v658 = vld [vmem:[%s3 + $0x1c8] sm:$0xff]
        %v659 = vld [vmem:[%s3 + $0x1d0] sm:$0xff]
        %v660 = vld [vmem:[%s3 + $0x1d8] sm:$0xff]
        %v661 = vld [vmem:[%s3 + $0x1e0] sm:$0xff]
        %v662 = vld [vmem:[%s3 + $0x1e8] sm:$0xff]
        %v663 = vld [vmem:[%s3 + $0x1f0] sm:$0xff]
        %v664 = vld [vmem:[%s3 + $0x1f8] sm:$0xff]
        %v665 = vld [vmem:[%s3 + $0x200] sm:$0xff]
        %v666 = vld [vmem:[%s3 + $0x208] sm:$0xff]
        %v667 = vld [vmem:[%s3 + $0x210] sm:$0xff]
        %v668 = vld [vmem:[%s3 + $0x218] sm:$0xff]
        %v669 = vld [vmem:[%s3 + $0x220] sm:$0xff]
        %v670 = vld [vmem:[%s3 + $0x228] sm:$0xff]
        %v671 = vld [vmem:[%s3 + $0x230] sm:$0xff]
        %v672 = vld [vmem:[%s3 + $0x238] sm:$0xff]
        %v673 = vld [vmem:[%s3 + $0x240] sm:$0xff]
        %v674 = vld [vmem:[%s3 + $0x248] sm:$0xff]
        %v675 = vld [vmem:[%s3 + $0x250] sm:$0xff]
        %v676 = vld [vmem:[%s3 + $0x258] sm:$0xff]
        %v677 = vld [vmem:[%s3 + $0x260] sm:$0xff]
        %v678 = vld [vmem:[%s3 + $0x268] sm:$0xff]
        %v679 = vld [vmem:[%s3 + $0x270] sm:$0xff]
        %v680 = vld [vmem:[%s3 + $0x278] sm:$0xff]
        %v681 = vld [vmem:[%s3 + $0x280] sm:$0xff]
        %v682 = vld [vmem:[%s3 + $0x288] sm:$0xff]
        %v683 = vld [vmem:[%s3 + $0x290] sm:$0xff]
        %v684 = vld [vmem:[%s3 + $0x298] sm:$0xff]
        %v685 = vld [vmem:[%s3 + $0x2a0] sm:$0xff]
        %v686 = vld [vmem:[%s3 + $0x2a8] sm:$0xff]
        %v687 = vld [vmem:[%s3 + $0x2b0] sm:$0xff]
        %v688 = vld [vmem:[%s3 + $0x2b8] sm:$0xff]
        %v689 = vld [vmem:[%s3 + $0x2c0] sm:$0xff]
        %v690 = vld [vmem:[%s3 + $0x2c8] sm:$0xff]
        %v691 = vld [vmem:[%s3 + $0x2d0] sm:$0xff]
        %v692 = vld [vmem:[%s3 + $0x2d8] sm:$0xff]
        %v693 = vld [vmem:[%s3 + $0x2e0] sm:$0xff]
        %v694 = vld [vmem:[%s3 + $0x2e8] sm:$0xff]
        %v695 = vld [vmem:[%s3 + $0x2f0] sm:$0xff]
        %v696 = vld [vmem:[%s3 + $0x2f8] sm:$0xff]
        %v697 = vld [vmem:[%s3 + $0x300] sm:$0xff]
        %v698 = vld [vmem:[%s3 + $0x308] sm:$0xff]
        %v699 = vld [vmem:[%s3 + $0x310] sm:$0xff]
        %v700 = vld [vmem:[%s3 + $0x318] sm:$0xff]
        %v701 = vld [vmem:[%s3 + $0x320] sm:$0xff]
        %v702 = vld [vmem:[%s3 + $0x328] sm:$0xff]
        %v703 = vld [vmem:[%s3 + $0x330] sm:$0xff]
        %v704 = vld [vmem:[%s3 + $0x338] sm:$0xff]
        %v705 = vld [vmem:[%s3 + $0x340] sm:$0xff]
        %v706 = vld [vmem:[%s3 + $0x348] sm:$0xff]
        %v707 = vld [vmem:[%s3 + $0x350] sm:$0xff]
        %v708 = vld [vmem:[%s3 + $0x358] sm:$0xff]
        %v709 = vld [vmem:[%s3 + $0x360] sm:$0xff]
        %v710 = vld [vmem:[%s3 + $0x368] sm:$0xff]
        %v711 = vld [vmem:[%s3 + $0x370] sm:$0xff]
        %v712 = vld [vmem:[%s3 + $0x378] sm:$0xff]
        %v713 = vld [vmem:[%s3 + $0x380] sm:$0xff]
        %v714 = vld [vmem:[%s3 + $0x388] sm:$0xff]
        %v715 = vld [vmem:[%s3 + $0x390] sm:$0xff]
        %v716 = vld [vmem:[%s3 + $0x398] sm:$0xff]
        %v717 = vld [vmem:[%s3 + $0x3a0] sm:$0xff]
        %v718 = vld [vmem:[%s3 + $0x3a8] sm:$0xff]
        %v719 = vld [vmem:[%s3 + $0x3b0] sm:$0xff]
        %v720 = vld [vmem:[%s3 + $0x3b8] sm:$0xff]
        %v721 = vld [vmem:[%s3 + $0x3c0] sm:$0xff]
        %v722 = vld [vmem:[%s3 + $0x3c8] sm:$0xff]
        %v723 = vld [vmem:[%s3 + $0x3d0] sm:$0xff]
        %v724 = vld [vmem:[%s3 + $0x3d8] sm:$0xff]
        %v725 = vld [vmem:[%s3 + $0x3e0] sm:$0xff]
        %v726 = vld [vmem:[%s3 + $0x3e8] sm:$0xff]
        %v727 = vld [vmem:[%s3 + $0x3f0] sm:$0xff]
        %v728 = vld [vmem:[%s3 + $0x3f8] sm:$0xff]
        %v729 = vld [vmem:[%s3 + $0x400] sm:$0xff]
        %v730 = vld [vmem:[%s3 + $0x408] sm:$0xff]
        %v731 = vld [vmem:[%s3 + $0x410] sm:$0xff]
        %v732 = vld [vmem:[%s3 + $0x418] sm:$0xff]
        %v733 = vld [vmem:[%s3 + $0x420] sm:$0xff]
        %v734 = vld [vmem:[%s3 + $0x428] sm:$0xff]
        %v735 = vld [vmem:[%s3 + $0x430] sm:$0xff]
        %v736 = vld [vmem:[%s3 + $0x438] sm:$0xff]
        %v737 = vld [vmem:[%s3 + $0x440] sm:$0xff]
        %v738 = vld [vmem:[%s3 + $0x448] sm:$0xff]
        %v739 = vld [vmem:[%s3 + $0x450] sm:$0xff]
        %v740 = vld [vmem:[%s3 + $0x458] sm:$0xff]
        %v741 = vld [vmem:[%s3 + $0x460] sm:$0xff]
        %v742 = vld [vmem:[%s3 + $0x468] sm:$0xff]
        %v743 = vld [vmem:[%s3 + $0x470] sm:$0xff]
        %v744 = vld [vmem:[%s3 + $0x478] sm:$0xff]
        %v745 = vld [vmem:[%s3 + $0x480] sm:$0xff]
        %v746 = vld [vmem:[%s3 + $0x488] sm:$0xff]
        %v747 = vld [vmem:[%s3 + $0x490] sm:$0xff]
        %v748 = vld [vmem:[%s3 + $0x498] sm:$0xff]
        %v749 = vld [vmem:[%s3 + $0x4a0] sm:$0xff]
        %v750 = vld [vmem:[%s3 + $0x4a8] sm:$0xff]
        %v751 = vld [vmem:[%s3 + $0x4b0] sm:$0xff]
        %v752 = vld [vmem:[%s3 + $0x4b8] sm:$0xff]
        %v753 = vld [vmem:[%s3 + $0x4c0] sm:$0xff]
        %v754 = vld [vmem:[%s3 + $0x4c8] sm:$0xff]
        %v755 = vld [vmem:[%s3 + $0x4d0] sm:$0xff]
        %v756 = vld [vmem:[%s3 + $0x4d8] sm:$0xff]
        %v757 = vld [vmem:[%s3 + $0x4e0] sm:$0xff]
        %v758 = vld [vmem:[%s3 + $0x4e8] sm:$0xff]
        %v759 = vld [vmem:[%s3 + $0x4f0] sm:$0xff]
        %v760 = vld [vmem:[%s3 + $0x4f8] sm:$0xff]
        %v761 = vld [vmem:[%s3 + $0x500] sm:$0xff]
        %v762 = vld [vmem:[%s3 + $0x508] sm:$0xff]
        %v763 = vld [vmem:[%s3 + $0x510] sm:$0xff]
        %v764 = vld [vmem:[%s3 + $0x518] sm:$0xff]
        %v765 = vld [vmem:[%s3 + $0x520] sm:$0xff]
        %v766 = vld [vmem:[%s3 + $0x528] sm:$0xff]
        %v767 = vld [vmem:[%s3 + $0x530] sm:$0xff]
        %v768 = vld [vmem:[%s3 + $0x538] sm:$0xff]
        %v769 = vld [vmem:[%s3 + $0x540] sm:$0xff]
        %v770 = vld [vmem:[%s3 + $0x548] sm:$0xff]
        %v771 = vld [vmem:[%s3 + $0x550] sm:$0xff]
        %v772 = vld [vmem:[%s3 + $0x558] sm:$0xff]
        %v773 = vld [vmem:[%s3 + $0x560] sm:$0xff]
        %v774 = vld [vmem:[%s3 + $0x568] sm:$0xff]
        %v775 = vld [vmem:[%s3 + $0x570] sm:$0xff]
        %v776 = vld [vmem:[%s3 + $0x578] sm:$0xff]
        %v777 = vld [vmem:[%s3 + $0x580] sm:$0xff]
        %v778 = vld [vmem:[%s3 + $0x588] sm:$0xff]
        %v779 = vld [vmem:[%s3 + $0x590] sm:$0xff]
        %v780 = vld [vmem:[%s3 + $0x598] sm:$0xff]
        %v781 = vld [vmem:[%s3 + $0x5a0] sm:$0xff]
        %v782 = vld [vmem:[%s3 + $0x5a8] sm:$0xff]
        %v783 = vld [vmem:[%s3 + $0x5b0] sm:$0xff]
        %v784 = vld [vmem:[%s3 + $0x5b8] sm:$0xff]
        %v785 = vld [vmem:[%s3 + $0x5c0] sm:$0xff]
        %v786 = vld [vmem:[%s3 + $0x5c8] sm:$0xff]
        %v787 = vld [vmem:[%s3 + $0x5d0] sm:$0xff]
        %v788 = vld [vmem:[%s3 + $0x5d8] sm:$0xff]
        %v789 = vld [vmem:[%s3 + $0x5e0] sm:$0xff]
        %v790 = vld [vmem:[%s3 + $0x5e8] sm:$0xff]
        %v791 = vld [vmem:[%s3 + $0x5f0] sm:$0xff]
        %v792 = vld [vmem:[%s3 + $0x5f8] sm:$0xff]
        %v793 = vld [vmem:[%s3 + $0x600] sm:$0xff]
        %v794 = vld [vmem:[%s3 + $0x608] sm:$0xff]
        %v795 = vld [vmem:[%s3 + $0x610] sm:$0xff]
        %v796 = vld [vmem:[%s3 + $0x618] sm:$0xff]
        %v797 = vld [vmem:[%s3 + $0x620] sm:$0xff]
        %v798 = vld [vmem:[%s3 + $0x628] sm:$0xff]
        %v799 = vld [vmem:[%s3 + $0x630] sm:$0xff]
        %v800 = vld [vmem:[%s3 + $0x638] sm:$0xff]
        %v801 = vld [vmem:[%s4] sm:$0xf]
        %v803 = vlaneseq
        %v804 = vshrl.u32 %v803, 7
        %v805 = vsub.s32 0, %v804
        %v806 = vrot.slane %v801, %v805
        %v807 = vlaneseq
        %v808 = vshrl.u32 %v807, 7
        %v809 = vsub.s32 1, %v808
        %v810 = vrot.slane %v801, %v809
        %v811 = vlaneseq
        %v812 = vshrl.u32 %v811, 7
        %v813 = vsub.s32 2, %v812
        %v814 = vrot.slane %v801, %v813
        %v815 = vlaneseq
        %v816 = vshrl.u32 %v815, 7
        %v817 = vsub.s32 3, %v816
        %v818 = vrot.slane %v801, %v817
        %vm823 = vcmask 130048
        %v825 = vsel %vm823, %v599, 0
        %827 = vmatprep.subr.mxu0 %v662
        %828 = vmatpush1.msra.mxu0 %v661
        %829 = vmatprep.subr.mxu0 %v658
        %830 = vmatpush1.msra.mxu0 %v657
        %831 = vmatprep.subr.mxu0 %v654
        %832 = vmatpush1.msra.mxu0 %v653
        %833 = vmatprep.subr.mxu0 %v650
        %834 = vmatpush1.msra.mxu0 %v649
        %835 = vmatprep.subr.mxu0 %v646
        %836 = vmatpush1.msra.mxu0 %v645
        %837 = vmatprep.subr.mxu0 %v642
        %838 = vmatpush1.msra.mxu0 %v641
        %839 = vmatprep.subr.mxu0 %v638
        %840 = vmatpush1.msra.mxu0 %v637
        %841 = vmatprep.subr.mxu0 %v634
        %842 = vmatpush1.msra.mxu0 %v633
        %843 = vmatprep.subr.mxu0 %v630
        %844 = vmatpush1.msra.mxu0 %v629
        %845 = vmatprep.subr.mxu0 %v626
        %846 = vmatpush1.msra.mxu0 %v625
        %847 = vmatprep.subr.mxu0 %v622
        %848 = vmatpush1.msra.mxu0 %v621
        %849 = vmatprep.subr.mxu0 %v618
        %850 = vmatpush1.msra.mxu0 %v617
        %851 = vmatprep.subr.mxu0 %v614
        %852 = vmatpush1.msra.mxu0 %v613
        %853 = vmatprep.subr.mxu0 %v610
        %854 = vmatpush1.msra.mxu0 %v609
        %855 = vmatprep.subr.mxu0 %v606
        %856 = vmatpush1.msra.mxu0 %v605
        %857 = vmatprep.subr.mxu0 %v602
        %858 = vmatpush1.msra.mxu0 %v601
        %859 = vmatprep.subr.mxu0 %v726
        %860 = vmatpush2.msra.mxu0 %v725
        %861 = vmatprep.subr.mxu0 %v722
        %862 = vmatpush2.msra.mxu0 %v721
        %863 = vmatprep.subr.mxu0 %v718
        %864 = vmatpush2.msra.mxu0 %v717
        %865 = vmatprep.subr.mxu0 %v714
        %866 = vmatpush2.msra.mxu0 %v713
        %867 = vmatprep.subr.mxu0 %v710
        %868 = vmatpush2.msra.mxu0 %v709
        %869 = vmatprep.subr.mxu0 %v706
        %870 = vmatpush2.msra.mxu0 %v705
        %871 = vmatprep.subr.mxu0 %v702
        %872 = vmatpush2.msra.mxu0 %v701
        %873 = vmatprep.subr.mxu0 %v698
        %874 = vmatpush2.msra.mxu0 %v697
        %875 = vmatprep.subr.mxu0 %v694
        %876 = vmatpush2.msra.mxu0 %v693
        %877 = vmatprep.subr.mxu0 %v690
        %878 = vmatpush2.msra.mxu0 %v689
        %879 = vmatprep.subr.mxu0 %v686
        %880 = vmatpush2.msra.mxu0 %v685
        %881 = vmatprep.subr.mxu0 %v682
        %882 = vmatpush2.msra.mxu0 %v681
        %883 = vmatprep.subr.mxu0 %v678
        %884 = vmatpush2.msra.mxu0 %v677
        %885 = vmatprep.subr.mxu0 %v674
        %886 = vmatpush2.msra.mxu0 %v673
        %887 = vmatprep.subr.mxu0 %v670
        %888 = vmatpush2.msra.mxu0 %v669
        %889 = vmatprep.subr.mxu0 %v666
        %890 = vmatpush2.msra.mxu0 %v665
        %891 = vmatprep.mubr.f32.mxu0 %v528
        %892 = vmatmul.mubr.f32.gmra.mxu0 %v526
        %v893 = vpop.f32.mrf.mxu0
        %v894 = vadd.f32 %v806, %v893
        %v895 = vpop.f32.mrf.mxu0
        %v896 = vadd.f32 %v810, %v895
        %897 = vdwg.mxu0
        %898 = vmatprep.subr.mxu0 %v790
        %899 = vmatpush1.msra.mxu0 %v789
        %900 = vmatprep.subr.mxu0 %v786
        %901 = vmatpush1.msra.mxu0 %v785
        %902 = vmatprep.subr.mxu0 %v782
        %903 = vmatpush1.msra.mxu0 %v781
        %904 = vmatprep.subr.mxu0 %v778
        %905 = vmatpush1.msra.mxu0 %v777
        %906 = vmatprep.subr.mxu0 %v774
        %907 = vmatpush1.msra.mxu0 %v773
        %908 = vmatprep.subr.mxu0 %v770
        %909 = vmatpush1.msra.mxu0 %v769
        %910 = vmatprep.subr.mxu0 %v766
        %911 = vmatpush1.msra.mxu0 %v765
        %912 = vmatprep.subr.mxu0 %v762
        %913 = vmatpush1.msra.mxu0 %v761
        %914 = vmatprep.subr.mxu0 %v758
        %915 = vmatpush1.msra.mxu0 %v757
        %916 = vmatprep.subr.mxu0 %v754
        %917 = vmatpush1.msra.mxu0 %v753
        %918 = vmatprep.subr.mxu0 %v750
        %919 = vmatpush1.msra.mxu0 %v749
        %920 = vmatprep.subr.mxu0 %v746
        %921 = vmatpush1.msra.mxu0 %v745
        %922 = vmatprep.subr.mxu0 %v742
        %923 = vmatpush1.msra.mxu0 %v741
        %924 = vmatprep.subr.mxu0 %v738
        %925 = vmatpush1.msra.mxu0 %v737
        %926 = vmatprep.subr.mxu0 %v734
        %927 = vmatpush1.msra.mxu0 %v733
        %928 = vmatprep.subr.mxu0 %v730
        %929 = vmatpush1.msra.mxu0 %v729
        %930 = vmatprep.subr.mxu0 0.0
        %931 = vmatpush2.msra.mxu0 0.0
        %932 = vmatprep.subr.mxu0 0.0
        %933 = vmatpush2.msra.mxu0 0.0
        %934 = vmatprep.subr.mxu0 0.0
        %935 = vmatpush2.msra.mxu0 0.0
        %936 = vmatprep.subr.mxu0 0.0
        %937 = vmatpush2.msra.mxu0 0.0
        %938 = vmatprep.subr.mxu0 0.0
        %939 = vmatpush2.msra.mxu0 0.0
        %940 = vmatprep.subr.mxu0 0.0
        %941 = vmatpush2.msra.mxu0 0.0
        %942 = vmatprep.subr.mxu0 0.0
        %943 = vmatpush2.msra.mxu0 0.0
        %944 = vmatprep.subr.mxu0 0.0
        %945 = vmatpush2.msra.mxu0 0.0
        %946 = vmatprep.subr.mxu0 0.0
        %947 = vmatpush2.msra.mxu0 0.0
        %948 = vmatprep.subr.mxu0 0.0
        %949 = vmatpush2.msra.mxu0 0.0
        %950 = vmatprep.subr.mxu0 0.0
        %951 = vmatpush2.msra.mxu0 0.0
        %952 = vmatprep.subr.mxu0 0.0
        %953 = vmatpush2.msra.mxu0 0.0
        %954 = vmatprep.subr.mxu0 0.0
        %955 = vmatpush2.msra.mxu0 0.0
        %956 = vmatprep.subr.mxu0 0.0
        %957 = vmatpush2.msra.mxu0 0.0
        %958 = vmatprep.subr.mxu0 %v798
        %959 = vmatpush2.msra.mxu0 %v797
        %960 = vmatprep.subr.mxu0 %v794
        %961 = vmatpush2.msra.mxu0 %v793
        %962 = vmatprep.mubr.f32.mxu0 %v825
        %963 = vmatmul.mubr.f32.gmra.mxu0 %v597
        %v964 = vpop.f32.mrf.mxu0
        %v965 = vadd.f32 %v894, %v964
        %v966 = vpop.f32.mrf.mxu0
        %v967 = vadd.f32 %v896, %v966
        %968 = vdwg.mxu0
        %969 = vmatprep.subr.mxu0 %v664
        %970 = vmatpush1.msra.mxu0 %v663
        %971 = vmatprep.subr.mxu0 %v660
        %972 = vmatpush1.msra.mxu0 %v659
        %973 = vmatprep.subr.mxu0 %v656
        %974 = vmatpush1.msra.mxu0 %v655
        %975 = vmatprep.subr.mxu0 %v652
        %976 = vmatpush1.msra.mxu0 %v651
        %977 = vmatprep.subr.mxu0 %v648
        %978 = vmatpush1.msra.mxu0 %v647
        %979 = vmatprep.subr.mxu0 %v644
        %980 = vmatpush1.msra.mxu0 %v643
        %981 = vmatprep.subr.mxu0 %v640
        %982 = vmatpush1.msra.mxu0 %v639
        %983 = vmatprep.subr.mxu0 %v636
        %984 = vmatpush1.msra.mxu0 %v635
        %985 = vmatprep.subr.mxu0 %v632
        %986 = vmatpush1.msra.mxu0 %v631
        %987 = vmatprep.subr.mxu0 %v628
        %988 = vmatpush1.msra.mxu0 %v627
        %989 = vmatprep.subr.mxu0 %v624
        %990 = vmatpush1.msra.mxu0 %v623
        %991 = vmatprep.subr.mxu0 %v620
        %992 = vmatpush1.msra.mxu0 %v619
        %993 = vmatprep.subr.mxu0 %v616
        %994 = vmatpush1.msra.mxu0 %v615
        %995 = vmatprep.subr.mxu0 %v612
        %996 = vmatpush1.msra.mxu0 %v611
        %997 = vmatprep.subr.mxu0 %v608
        %998 = vmatpush1.msra.mxu0 %v607
        %999 = vmatprep.subr.mxu0 %v604
        %1000 = vmatpush1.msra.mxu0 %v603
        %1001 = vmatprep.subr.mxu0 %v728
        %1002 = vmatpush2.msra.mxu0 %v727
        %1003 = vmatprep.subr.mxu0 %v724
        %1004 = vmatpush2.msra.mxu0 %v723
        %1005 = vmatprep.subr.mxu0 %v720
        %1006 = vmatpush2.msra.mxu0 %v719
        %1007 = vmatprep.subr.mxu0 %v716
        %1008 = vmatpush2.msra.mxu0 %v715
        %1009 = vmatprep.subr.mxu0 %v712
        %1010 = vmatpush2.msra.mxu0 %v711
        %1011 = vmatprep.subr.mxu0 %v708
        %1012 = vmatpush2.msra.mxu0 %v707
        %1013 = vmatprep.subr.mxu0 %v704
        %1014 = vmatpush2.msra.mxu0 %v703
        %1015 = vmatprep.subr.mxu0 %v700
        %1016 = vmatpush2.msra.mxu0 %v699
        %1017 = vmatprep.subr.mxu0 %v696
        %1018 = vmatpush2.msra.mxu0 %v695
        %1019 = vmatprep.subr.mxu0 %v692
        %1020 = vmatpush2.msra.mxu0 %v691
        %1021 = vmatprep.subr.mxu0 %v688
        %1022 = vmatpush2.msra.mxu0 %v687
        %1023 = vmatprep.subr.mxu0 %v684
        %1024 = vmatpush2.msra.mxu0 %v683
        %1025 = vmatprep.subr.mxu0 %v680
        %1026 = vmatpush2.msra.mxu0 %v679
        %1027 = vmatprep.subr.mxu0 %v676
        %1028 = vmatpush2.msra.mxu0 %v675
        %1029 = vmatprep.subr.mxu0 %v672
        %1030 = vmatpush2.msra.mxu0 %v671
        %1031 = vmatprep.subr.mxu0 %v668
        %1032 = vmatpush2.msra.mxu0 %v667
        %1033 = vmatprep.mubr.f32.mxu0 %v528
        %1034 = vmatmul.mubr.f32.gmra.mxu0 %v526
        %v1035 = vpop.f32.mrf.mxu0
        %v1036 = vadd.f32 %v814, %v1035
        %v1037 = vpop.f32.mrf.mxu0
        %v1038 = vadd.f32 %v818, %v1037
        %1039 = vdwg.mxu0
        %1040 = vmatprep.subr.mxu0 %v792
        %1041 = vmatpush1.msra.mxu0 %v791
        %1042 = vmatprep.subr.mxu0 %v788
        %1043 = vmatpush1.msra.mxu0 %v787
        %1044 = vmatprep.subr.mxu0 %v784
        %1045 = vmatpush1.msra.mxu0 %v783
        %1046 = vmatprep.subr.mxu0 %v780
        %1047 = vmatpush1.msra.mxu0 %v779
        %1048 = vmatprep.subr.mxu0 %v776
        %1049 = vmatpush1.msra.mxu0 %v775
        %1050 = vmatprep.subr.mxu0 %v772
        %1051 = vmatpush1.msra.mxu0 %v771
        %1052 = vmatprep.subr.mxu0 %v768
        %1053 = vmatpush1.msra.mxu0 %v767
        %1054 = vmatprep.subr.mxu0 %v764
        %1055 = vmatpush1.msra.mxu0 %v763
        %1056 = vmatprep.subr.mxu0 %v760
        %1057 = vmatpush1.msra.mxu0 %v759
        %1058 = vmatprep.subr.mxu0 %v756
        %1059 = vmatpush1.msra.mxu0 %v755
        %1060 = vmatprep.subr.mxu0 %v752
        %1061 = vmatpush1.msra.mxu0 %v751
        %1062 = vmatprep.subr.mxu0 %v748
        %1063 = vmatpush1.msra.mxu0 %v747
        %1064 = vmatprep.subr.mxu0 %v744
        %1065 = vmatpush1.msra.mxu0 %v743
        %1066 = vmatprep.subr.mxu0 %v740
        %1067 = vmatpush1.msra.mxu0 %v739
        %1068 = vmatprep.subr.mxu0 %v736
        %1069 = vmatpush1.msra.mxu0 %v735
        %1070 = vmatprep.subr.mxu0 %v732
        %1071 = vmatpush1.msra.mxu0 %v731
        %1072 = vmatprep.subr.mxu0 0.0
        %1073 = vmatpush2.msra.mxu0 0.0
        %1074 = vmatprep.subr.mxu0 0.0
        %1075 = vmatpush2.msra.mxu0 0.0
        %1076 = vmatprep.subr.mxu0 0.0
        %1077 = vmatpush2.msra.mxu0 0.0
        %1078 = vmatprep.subr.mxu0 0.0
        %1079 = vmatpush2.msra.mxu0 0.0
        %1080 = vmatprep.subr.mxu0 0.0
        %1081 = vmatpush2.msra.mxu0 0.0
        %1082 = vmatprep.subr.mxu0 0.0
        %1083 = vmatpush2.msra.mxu0 0.0
        %1084 = vmatprep.subr.mxu0 0.0
        %1085 = vmatpush2.msra.mxu0 0.0
        %1086 = vmatprep.subr.mxu0 0.0
        %1087 = vmatpush2.msra.mxu0 0.0
        %1088 = vmatprep.subr.mxu0 0.0
        %1089 = vmatpush2.msra.mxu0 0.0
        %1090 = vmatprep.subr.mxu0 0.0
        %1091 = vmatpush2.msra.mxu0 0.0
        %1092 = vmatprep.subr.mxu0 0.0
        %1093 = vmatpush2.msra.mxu0 0.0
        %1094 = vmatprep.subr.mxu0 0.0
        %1095 = vmatpush2.msra.mxu0 0.0
        %1096 = vmatprep.subr.mxu0 0.0
        %1097 = vmatpush2.msra.mxu0 0.0
        %1098 = vmatprep.subr.mxu0 0.0
        %1099 = vmatpush2.msra.mxu0 0.0
        %1100 = vmatprep.subr.mxu0 %v800
        %1101 = vmatpush2.msra.mxu0 %v799
        %1102 = vmatprep.subr.mxu0 %v796
        %1103 = vmatpush2.msra.mxu0 %v795
        %1104 = vmatprep.mubr.f32.mxu0 %v825
        %1105 = vmatmul.mubr.f32.gmra.mxu0 %v597
        %v1106 = vpop.f32.mrf.mxu0
        %v1107 = vadd.f32 %v1036, %v1106
        %v1108 = vpop.f32.mrf.mxu0
        %v1109 = vadd.f32 %v1038, %v1108
        %1110 = vdwg.mxu0
        %vm1111 = vcmp.gt.f32.partialorder %v965, 0.0
        %vm1112 = vcmp.gt.f32.partialorder %v967, 0.0
        %vm1113 = vcmp.gt.f32.partialorder %v1107, 0.0
        %vm1114 = vcmp.gt.f32.partialorder %v1109, 0.0
        %v1115 = vmin.f32 %v965, 0.0
        %v1116 = vmin.f32 %v967, 0.0
        %v1117 = vmin.f32 %v1107, 0.0
        %v1118 = vmin.f32 %v1109, 0.0
        %v1119 = vmul.f32 %v1115, 1.442695
        %v1120 = vpow.pop %v1119
        %v1121 = vmul.f32 %v1116, 1.442695
        %v1122 = vpow.pop %v1121
        %v1123 = vmul.f32 %v1117, 1.442695
        %v1124 = vpow.pop %v1123
        %v1125 = vmul.f32 %v1118, 1.442695
        %v1126 = vpow.pop %v1125
        %v1127 = vsub.f32 %v1120, 1.0
        %v1128 = vsub.f32 %v1122, 1.0
        %v1129 = vsub.f32 %v1124, 1.0
        %v1130 = vsub.f32 %v1126, 1.0
        %v1131 = vsel %vm1111, %v965, %v1127
        %v1132 = vsel %vm1112, %v967, %v1128
        %v1133 = vsel %vm1113, %v1107, %v1129
        %v1134 = vsel %vm1114, %v1109, %v1130
        %v1135 = vld [vmem:[%s5] sm:$0xff]
        %v1136 = vld [vmem:[%s5 + $0x8] sm:$0xff]
        %v1137 = vld [vmem:[%s5 + $0x10] sm:$0xff]
        %v1138 = vld [vmem:[%s5 + $0x18] sm:$0xff]
        %v1139 = vld [vmem:[%s5 + $0x20] sm:$0xff]
        %v1140 = vld [vmem:[%s5 + $0x28] sm:$0xff]
        %v1141 = vld [vmem:[%s5 + $0x30] sm:$0xff]
        %v1142 = vld [vmem:[%s5 + $0x38] sm:$0xff]
        %v1143 = vld [vmem:[%s5 + $0x40] sm:$0xff]
        %v1144 = vld [vmem:[%s5 + $0x48] sm:$0xff]
        %v1145 = vld [vmem:[%s5 + $0x50] sm:$0xff]
        %v1146 = vld [vmem:[%s5 + $0x58] sm:$0xff]
        %v1147 = vld [vmem:[%s5 + $0x60] sm:$0xff]
        %v1148 = vld [vmem:[%s5 + $0x68] sm:$0xff]
        %v1149 = vld [vmem:[%s5 + $0x70] sm:$0xff]
        %v1150 = vld [vmem:[%s5 + $0x78] sm:$0xff]
        %v1151 = vld [vmem:[%s5 + $0x80] sm:$0xff]
        %v1152 = vld [vmem:[%s5 + $0x88] sm:$0xff]
        %v1153 = vld [vmem:[%s5 + $0x90] sm:$0xff]
        %v1154 = vld [vmem:[%s5 + $0x98] sm:$0xff]
        %v1155 = vld [vmem:[%s5 + $0xa0] sm:$0xff]
        %v1156 = vld [vmem:[%s5 + $0xa8] sm:$0xff]
        %v1157 = vld [vmem:[%s5 + $0xb0] sm:$0xff]
        %v1158 = vld [vmem:[%s5 + $0xb8] sm:$0xff]
        %v1159 = vld [vmem:[%s5 + $0xc0] sm:$0xff]
        %v1160 = vld [vmem:[%s5 + $0xc8] sm:$0xff]
        %v1161 = vld [vmem:[%s5 + $0xd0] sm:$0xff]
        %v1162 = vld [vmem:[%s5 + $0xd8] sm:$0xff]
        %v1163 = vld [vmem:[%s5 + $0xe0] sm:$0xff]
        %v1164 = vld [vmem:[%s5 + $0xe8] sm:$0xff]
        %v1165 = vld [vmem:[%s5 + $0xf0] sm:$0xff]
        %v1166 = vld [vmem:[%s5 + $0xf8] sm:$0xff]
        %v1167 = vld [vmem:[%s5 + $0x100] sm:$0xff]
        %v1168 = vld [vmem:[%s5 + $0x108] sm:$0xff]
        %v1169 = vld [vmem:[%s5 + $0x110] sm:$0xff]
        %v1170 = vld [vmem:[%s5 + $0x118] sm:$0xff]
        %v1171 = vld [vmem:[%s5 + $0x120] sm:$0xff]
        %v1172 = vld [vmem:[%s5 + $0x128] sm:$0xff]
        %v1173 = vld [vmem:[%s5 + $0x130] sm:$0xff]
        %v1174 = vld [vmem:[%s5 + $0x138] sm:$0xff]
        %v1175 = vld [vmem:[%s5 + $0x140] sm:$0xff]
        %v1176 = vld [vmem:[%s5 + $0x148] sm:$0xff]
        %v1177 = vld [vmem:[%s5 + $0x150] sm:$0xff]
        %v1178 = vld [vmem:[%s5 + $0x158] sm:$0xff]
        %v1179 = vld [vmem:[%s5 + $0x160] sm:$0xff]
        %v1180 = vld [vmem:[%s5 + $0x168] sm:$0xff]
        %v1181 = vld [vmem:[%s5 + $0x170] sm:$0xff]
        %v1182 = vld [vmem:[%s5 + $0x178] sm:$0xff]
        %v1183 = vld [vmem:[%s5 + $0x180] sm:$0xff]
        %v1184 = vld [vmem:[%s5 + $0x188] sm:$0xff]
        %v1185 = vld [vmem:[%s5 + $0x190] sm:$0xff]
        %v1186 = vld [vmem:[%s5 + $0x198] sm:$0xff]
        %v1187 = vld [vmem:[%s5 + $0x1a0] sm:$0xff]
        %v1188 = vld [vmem:[%s5 + $0x1a8] sm:$0xff]
        %v1189 = vld [vmem:[%s5 + $0x1b0] sm:$0xff]
        %v1190 = vld [vmem:[%s5 + $0x1b8] sm:$0xff]
        %v1191 = vld [vmem:[%s5 + $0x1c0] sm:$0xff]
        %v1192 = vld [vmem:[%s5 + $0x1c8] sm:$0xff]
        %v1193 = vld [vmem:[%s5 + $0x1d0] sm:$0xff]
        %v1194 = vld [vmem:[%s5 + $0x1d8] sm:$0xff]
        %v1195 = vld [vmem:[%s5 + $0x1e0] sm:$0xff]
        %v1196 = vld [vmem:[%s5 + $0x1e8] sm:$0xff]
        %v1197 = vld [vmem:[%s5 + $0x1f0] sm:$0xff]
        %v1198 = vld [vmem:[%s5 + $0x1f8] sm:$0xff]
        %v1199 = vld [vmem:[%s5 + $0x200] sm:$0xff]
        %v1200 = vld [vmem:[%s5 + $0x208] sm:$0xff]
        %v1201 = vld [vmem:[%s5 + $0x210] sm:$0xff]
        %v1202 = vld [vmem:[%s5 + $0x218] sm:$0xff]
        %v1203 = vld [vmem:[%s5 + $0x220] sm:$0xff]
        %v1204 = vld [vmem:[%s5 + $0x228] sm:$0xff]
        %v1205 = vld [vmem:[%s5 + $0x230] sm:$0xff]
        %v1206 = vld [vmem:[%s5 + $0x238] sm:$0xff]
        %v1207 = vld [vmem:[%s5 + $0x240] sm:$0xff]
        %v1208 = vld [vmem:[%s5 + $0x248] sm:$0xff]
        %v1209 = vld [vmem:[%s5 + $0x250] sm:$0xff]
        %v1210 = vld [vmem:[%s5 + $0x258] sm:$0xff]
        %v1211 = vld [vmem:[%s5 + $0x260] sm:$0xff]
        %v1212 = vld [vmem:[%s5 + $0x268] sm:$0xff]
        %v1213 = vld [vmem:[%s5 + $0x270] sm:$0xff]
        %v1214 = vld [vmem:[%s5 + $0x278] sm:$0xff]
        %v1215 = vld [vmem:[%s5 + $0x280] sm:$0xff]
        %v1216 = vld [vmem:[%s5 + $0x288] sm:$0xff]
        %v1217 = vld [vmem:[%s5 + $0x290] sm:$0xff]
        %v1218 = vld [vmem:[%s5 + $0x298] sm:$0xff]
        %v1219 = vld [vmem:[%s5 + $0x2a0] sm:$0xff]
        %v1220 = vld [vmem:[%s5 + $0x2a8] sm:$0xff]
        %v1221 = vld [vmem:[%s5 + $0x2b0] sm:$0xff]
        %v1222 = vld [vmem:[%s5 + $0x2b8] sm:$0xff]
        %v1223 = vld [vmem:[%s5 + $0x2c0] sm:$0xff]
        %v1224 = vld [vmem:[%s5 + $0x2c8] sm:$0xff]
        %v1225 = vld [vmem:[%s5 + $0x2d0] sm:$0xff]
        %v1226 = vld [vmem:[%s5 + $0x2d8] sm:$0xff]
        %v1227 = vld [vmem:[%s5 + $0x2e0] sm:$0xff]
        %v1228 = vld [vmem:[%s5 + $0x2e8] sm:$0xff]
        %v1229 = vld [vmem:[%s5 + $0x2f0] sm:$0xff]
        %v1230 = vld [vmem:[%s5 + $0x2f8] sm:$0xff]
        %v1231 = vld [vmem:[%s5 + $0x300] sm:$0xff]
        %v1232 = vld [vmem:[%s5 + $0x308] sm:$0xff]
        %v1233 = vld [vmem:[%s5 + $0x310] sm:$0xff]
        %v1234 = vld [vmem:[%s5 + $0x318] sm:$0xff]
        %v1235 = vld [vmem:[%s5 + $0x320] sm:$0xff]
        %v1236 = vld [vmem:[%s5 + $0x328] sm:$0xff]
        %v1237 = vld [vmem:[%s5 + $0x330] sm:$0xff]
        %v1238 = vld [vmem:[%s5 + $0x338] sm:$0xff]
        %v1239 = vld [vmem:[%s5 + $0x340] sm:$0xff]
        %v1240 = vld [vmem:[%s5 + $0x348] sm:$0xff]
        %v1241 = vld [vmem:[%s5 + $0x350] sm:$0xff]
        %v1242 = vld [vmem:[%s5 + $0x358] sm:$0xff]
        %v1243 = vld [vmem:[%s5 + $0x360] sm:$0xff]
        %v1244 = vld [vmem:[%s5 + $0x368] sm:$0xff]
        %v1245 = vld [vmem:[%s5 + $0x370] sm:$0xff]
        %v1246 = vld [vmem:[%s5 + $0x378] sm:$0xff]
        %v1247 = vld [vmem:[%s5 + $0x380] sm:$0xff]
        %v1248 = vld [vmem:[%s5 + $0x388] sm:$0xff]
        %v1249 = vld [vmem:[%s5 + $0x390] sm:$0xff]
        %v1250 = vld [vmem:[%s5 + $0x398] sm:$0xff]
        %v1251 = vld [vmem:[%s5 + $0x3a0] sm:$0xff]
        %v1252 = vld [vmem:[%s5 + $0x3a8] sm:$0xff]
        %v1253 = vld [vmem:[%s5 + $0x3b0] sm:$0xff]
        %v1254 = vld [vmem:[%s5 + $0x3b8] sm:$0xff]
        %v1255 = vld [vmem:[%s5 + $0x3c0] sm:$0xff]
        %v1256 = vld [vmem:[%s5 + $0x3c8] sm:$0xff]
        %v1257 = vld [vmem:[%s5 + $0x3d0] sm:$0xff]
        %v1258 = vld [vmem:[%s5 + $0x3d8] sm:$0xff]
        %v1259 = vld [vmem:[%s5 + $0x3e0] sm:$0xff]
        %v1260 = vld [vmem:[%s5 + $0x3e8] sm:$0xff]
        %v1261 = vld [vmem:[%s5 + $0x3f0] sm:$0xff]
        %v1262 = vld [vmem:[%s5 + $0x3f8] sm:$0xff]
        %v1263 = vld [vmem:[%s5 + $0x400] sm:$0xff]
        %v1264 = vld [vmem:[%s5 + $0x408] sm:$0xff]
        %v1265 = vld [vmem:[%s5 + $0x410] sm:$0xff]
        %v1266 = vld [vmem:[%s5 + $0x418] sm:$0xff]
        %v1267 = vld [vmem:[%s5 + $0x420] sm:$0xff]
        %v1268 = vld [vmem:[%s5 + $0x428] sm:$0xff]
        %v1269 = vld [vmem:[%s5 + $0x430] sm:$0xff]
        %v1270 = vld [vmem:[%s5 + $0x438] sm:$0xff]
        %v1271 = vld [vmem:[%s5 + $0x440] sm:$0xff]
        %v1272 = vld [vmem:[%s5 + $0x448] sm:$0xff]
        %v1273 = vld [vmem:[%s5 + $0x450] sm:$0xff]
        %v1274 = vld [vmem:[%s5 + $0x458] sm:$0xff]
        %v1275 = vld [vmem:[%s5 + $0x460] sm:$0xff]
        %v1276 = vld [vmem:[%s5 + $0x468] sm:$0xff]
        %v1277 = vld [vmem:[%s5 + $0x470] sm:$0xff]
        %v1278 = vld [vmem:[%s5 + $0x478] sm:$0xff]
        %v1279 = vld [vmem:[%s5 + $0x480] sm:$0xff]
        %v1280 = vld [vmem:[%s5 + $0x488] sm:$0xff]
        %v1281 = vld [vmem:[%s5 + $0x490] sm:$0xff]
        %v1282 = vld [vmem:[%s5 + $0x498] sm:$0xff]
        %v1283 = vld [vmem:[%s5 + $0x4a0] sm:$0xff]
        %v1284 = vld [vmem:[%s5 + $0x4a8] sm:$0xff]
        %v1285 = vld [vmem:[%s5 + $0x4b0] sm:$0xff]
        %v1286 = vld [vmem:[%s5 + $0x4b8] sm:$0xff]
        %v1287 = vld [vmem:[%s5 + $0x4c0] sm:$0xff]
        %v1288 = vld [vmem:[%s5 + $0x4c8] sm:$0xff]
        %v1289 = vld [vmem:[%s5 + $0x4d0] sm:$0xff]
        %v1290 = vld [vmem:[%s5 + $0x4d8] sm:$0xff]
        %v1291 = vld [vmem:[%s5 + $0x4e0] sm:$0xff]
        %v1292 = vld [vmem:[%s5 + $0x4e8] sm:$0xff]
        %v1293 = vld [vmem:[%s5 + $0x4f0] sm:$0xff]
        %v1294 = vld [vmem:[%s5 + $0x4f8] sm:$0xff]
        %v1295 = vld [vmem:[%s5 + $0x500] sm:$0xff]
        %v1296 = vld [vmem:[%s5 + $0x508] sm:$0xff]
        %v1297 = vld [vmem:[%s5 + $0x510] sm:$0xff]
        %v1298 = vld [vmem:[%s5 + $0x518] sm:$0xff]
        %v1299 = vld [vmem:[%s5 + $0x520] sm:$0xff]
        %v1300 = vld [vmem:[%s5 + $0x528] sm:$0xff]
        %v1301 = vld [vmem:[%s5 + $0x530] sm:$0xff]
        %v1302 = vld [vmem:[%s5 + $0x538] sm:$0xff]
        %v1303 = vld [vmem:[%s5 + $0x540] sm:$0xff]
        %v1304 = vld [vmem:[%s5 + $0x548] sm:$0xff]
        %v1305 = vld [vmem:[%s5 + $0x550] sm:$0xff]
        %v1306 = vld [vmem:[%s5 + $0x558] sm:$0xff]
        %v1307 = vld [vmem:[%s5 + $0x560] sm:$0xff]
        %v1308 = vld [vmem:[%s5 + $0x568] sm:$0xff]
        %v1309 = vld [vmem:[%s5 + $0x570] sm:$0xff]
        %v1310 = vld [vmem:[%s5 + $0x578] sm:$0xff]
        %v1311 = vld [vmem:[%s5 + $0x580] sm:$0xff]
        %v1312 = vld [vmem:[%s5 + $0x588] sm:$0xff]
        %v1313 = vld [vmem:[%s5 + $0x590] sm:$0xff]
        %v1314 = vld [vmem:[%s5 + $0x598] sm:$0xff]
        %v1315 = vld [vmem:[%s5 + $0x5a0] sm:$0xff]
        %v1316 = vld [vmem:[%s5 + $0x5a8] sm:$0xff]
        %v1317 = vld [vmem:[%s5 + $0x5b0] sm:$0xff]
        %v1318 = vld [vmem:[%s5 + $0x5b8] sm:$0xff]
        %v1319 = vld [vmem:[%s5 + $0x5c0] sm:$0xff]
        %v1320 = vld [vmem:[%s5 + $0x5c8] sm:$0xff]
        %v1321 = vld [vmem:[%s5 + $0x5d0] sm:$0xff]
        %v1322 = vld [vmem:[%s5 + $0x5d8] sm:$0xff]
        %v1323 = vld [vmem:[%s5 + $0x5e0] sm:$0xff]
        %v1324 = vld [vmem:[%s5 + $0x5e8] sm:$0xff]
        %v1325 = vld [vmem:[%s5 + $0x5f0] sm:$0xff]
        %v1326 = vld [vmem:[%s5 + $0x5f8] sm:$0xff]
        %v1327 = vld [vmem:[%s5 + $0x600] sm:$0xff]
        %v1328 = vld [vmem:[%s5 + $0x608] sm:$0xff]
        %v1329 = vld [vmem:[%s5 + $0x610] sm:$0xff]
        %v1330 = vld [vmem:[%s5 + $0x618] sm:$0xff]
        %v1331 = vld [vmem:[%s5 + $0x620] sm:$0xff]
        %v1332 = vld [vmem:[%s5 + $0x628] sm:$0xff]
        %v1333 = vld [vmem:[%s5 + $0x630] sm:$0xff]
        %v1334 = vld [vmem:[%s5 + $0x638] sm:$0xff]
        %v1335 = vld [vmem:[%s5 + $0x640] sm:$0xff]
        %v1336 = vld [vmem:[%s5 + $0x648] sm:$0xff]
        %v1337 = vld [vmem:[%s5 + $0x650] sm:$0xff]
        %v1338 = vld [vmem:[%s5 + $0x658] sm:$0xff]
        %v1339 = vld [vmem:[%s5 + $0x660] sm:$0xff]
        %v1340 = vld [vmem:[%s5 + $0x668] sm:$0xff]
        %v1341 = vld [vmem:[%s5 + $0x670] sm:$0xff]
        %v1342 = vld [vmem:[%s5 + $0x678] sm:$0xff]
        %v1343 = vld [vmem:[%s5 + $0x680] sm:$0xff]
        %v1344 = vld [vmem:[%s5 + $0x688] sm:$0xff]
        %v1345 = vld [vmem:[%s5 + $0x690] sm:$0xff]
        %v1346 = vld [vmem:[%s5 + $0x698] sm:$0xff]
        %v1347 = vld [vmem:[%s5 + $0x6a0] sm:$0xff]
        %v1348 = vld [vmem:[%s5 + $0x6a8] sm:$0xff]
        %v1349 = vld [vmem:[%s5 + $0x6b0] sm:$0xff]
        %v1350 = vld [vmem:[%s5 + $0x6b8] sm:$0xff]
        %v1351 = vld [vmem:[%s5 + $0x6c0] sm:$0xff]
        %v1352 = vld [vmem:[%s5 + $0x6c8] sm:$0xff]
        %v1353 = vld [vmem:[%s5 + $0x6d0] sm:$0xff]
        %v1354 = vld [vmem:[%s5 + $0x6d8] sm:$0xff]
        %v1355 = vld [vmem:[%s5 + $0x6e0] sm:$0xff]
        %v1356 = vld [vmem:[%s5 + $0x6e8] sm:$0xff]
        %v1357 = vld [vmem:[%s5 + $0x6f0] sm:$0xff]
        %v1358 = vld [vmem:[%s5 + $0x6f8] sm:$0xff]
        %v1359 = vld [vmem:[%s5 + $0x700] sm:$0xff]
        %v1360 = vld [vmem:[%s5 + $0x708] sm:$0xff]
        %v1361 = vld [vmem:[%s5 + $0x710] sm:$0xff]
        %v1362 = vld [vmem:[%s5 + $0x718] sm:$0xff]
        %v1363 = vld [vmem:[%s5 + $0x720] sm:$0xff]
        %v1364 = vld [vmem:[%s5 + $0x728] sm:$0xff]
        %v1365 = vld [vmem:[%s5 + $0x730] sm:$0xff]
        %v1366 = vld [vmem:[%s5 + $0x738] sm:$0xff]
        %v1367 = vld [vmem:[%s5 + $0x740] sm:$0xff]
        %v1368 = vld [vmem:[%s5 + $0x748] sm:$0xff]
        %v1369 = vld [vmem:[%s5 + $0x750] sm:$0xff]
        %v1370 = vld [vmem:[%s5 + $0x758] sm:$0xff]
        %v1371 = vld [vmem:[%s5 + $0x760] sm:$0xff]
        %v1372 = vld [vmem:[%s5 + $0x768] sm:$0xff]
        %v1373 = vld [vmem:[%s5 + $0x770] sm:$0xff]
        %v1374 = vld [vmem:[%s5 + $0x778] sm:$0xff]
        %v1375 = vld [vmem:[%s5 + $0x780] sm:$0xff]
        %v1376 = vld [vmem:[%s5 + $0x788] sm:$0xff]
        %v1377 = vld [vmem:[%s5 + $0x790] sm:$0xff]
        %v1378 = vld [vmem:[%s5 + $0x798] sm:$0xff]
        %v1379 = vld [vmem:[%s5 + $0x7a0] sm:$0xff]
        %v1380 = vld [vmem:[%s5 + $0x7a8] sm:$0xff]
        %v1381 = vld [vmem:[%s5 + $0x7b0] sm:$0xff]
        %v1382 = vld [vmem:[%s5 + $0x7b8] sm:$0xff]
        %v1383 = vld [vmem:[%s5 + $0x7c0] sm:$0xff]
        %v1384 = vld [vmem:[%s5 + $0x7c8] sm:$0xff]
        %v1385 = vld [vmem:[%s5 + $0x7d0] sm:$0xff]
        %v1386 = vld [vmem:[%s5 + $0x7d8] sm:$0xff]
        %v1387 = vld [vmem:[%s5 + $0x7e0] sm:$0xff]
        %v1388 = vld [vmem:[%s5 + $0x7e8] sm:$0xff]
        %v1389 = vld [vmem:[%s5 + $0x7f0] sm:$0xff]
        %v1390 = vld [vmem:[%s5 + $0x7f8] sm:$0xff]
        %v1391 = vld [vmem:[%s5 + $0x800] sm:$0xff]
        %v1392 = vld [vmem:[%s5 + $0x808] sm:$0xff]
        %v1393 = vld [vmem:[%s5 + $0x810] sm:$0xff]
        %v1394 = vld [vmem:[%s5 + $0x818] sm:$0xff]
        %v1395 = vld [vmem:[%s5 + $0x820] sm:$0xff]
        %v1396 = vld [vmem:[%s5 + $0x828] sm:$0xff]
        %v1397 = vld [vmem:[%s5 + $0x830] sm:$0xff]
        %v1398 = vld [vmem:[%s5 + $0x838] sm:$0xff]
        %v1399 = vld [vmem:[%s5 + $0x840] sm:$0xff]
        %v1400 = vld [vmem:[%s5 + $0x848] sm:$0xff]
        %v1401 = vld [vmem:[%s5 + $0x850] sm:$0xff]
        %v1402 = vld [vmem:[%s5 + $0x858] sm:$0xff]
        %v1403 = vld [vmem:[%s5 + $0x860] sm:$0xff]
        %v1404 = vld [vmem:[%s5 + $0x868] sm:$0xff]
        %v1405 = vld [vmem:[%s5 + $0x870] sm:$0xff]
        %v1406 = vld [vmem:[%s5 + $0x878] sm:$0xff]
        %v1407 = vld [vmem:[%s5 + $0x880] sm:$0xff]
        %v1408 = vld [vmem:[%s5 + $0x888] sm:$0xff]
        %v1409 = vld [vmem:[%s5 + $0x890] sm:$0xff]
        %v1410 = vld [vmem:[%s5 + $0x898] sm:$0xff]
        %v1411 = vld [vmem:[%s5 + $0x8a0] sm:$0xff]
        %v1412 = vld [vmem:[%s5 + $0x8a8] sm:$0xff]
        %v1413 = vld [vmem:[%s5 + $0x8b0] sm:$0xff]
        %v1414 = vld [vmem:[%s5 + $0x8b8] sm:$0xff]
        %v1415 = vld [vmem:[%s5 + $0x8c0] sm:$0xff]
        %v1416 = vld [vmem:[%s5 + $0x8c8] sm:$0xff]
        %v1417 = vld [vmem:[%s5 + $0x8d0] sm:$0xff]
        %v1418 = vld [vmem:[%s5 + $0x8d8] sm:$0xff]
        %v1419 = vld [vmem:[%s5 + $0x8e0] sm:$0xff]
        %v1420 = vld [vmem:[%s5 + $0x8e8] sm:$0xff]
        %v1421 = vld [vmem:[%s5 + $0x8f0] sm:$0xff]
        %v1422 = vld [vmem:[%s5 + $0x8f8] sm:$0xff]
        %v1423 = vld [vmem:[%s5 + $0x900] sm:$0xff]
        %v1424 = vld [vmem:[%s5 + $0x908] sm:$0xff]
        %v1425 = vld [vmem:[%s5 + $0x910] sm:$0xff]
        %v1426 = vld [vmem:[%s5 + $0x918] sm:$0xff]
        %v1427 = vld [vmem:[%s5 + $0x920] sm:$0xff]
        %v1428 = vld [vmem:[%s5 + $0x928] sm:$0xff]
        %v1429 = vld [vmem:[%s5 + $0x930] sm:$0xff]
        %v1430 = vld [vmem:[%s5 + $0x938] sm:$0xff]
        %v1431 = vld [vmem:[%s5 + $0x940] sm:$0xff]
        %v1432 = vld [vmem:[%s5 + $0x948] sm:$0xff]
        %v1433 = vld [vmem:[%s5 + $0x950] sm:$0xff]
        %v1434 = vld [vmem:[%s5 + $0x958] sm:$0xff]
        %v1435 = vld [vmem:[%s5 + $0x960] sm:$0xf]
        %v1436 = vld [vmem:[%s5 + $0x968] sm:$0xf]
        %v1437 = vld [vmem:[%s5 + $0x970] sm:$0xf]
        %v1438 = vld [vmem:[%s5 + $0x978] sm:$0xf]
        %v1439 = vld [vmem:[%s5 + $0x980] sm:$0xf]
        %v1440 = vld [vmem:[%s6] sm:$0x1f]
        %v1442 = vlaneseq
        %v1443 = vshrl.u32 %v1442, 7
        %v1444 = vsub.s32 0, %v1443
        %v1445 = vrot.slane %v1440, %v1444
        %v1446 = vlaneseq
        %v1447 = vshrl.u32 %v1446, 7
        %v1448 = vsub.s32 1, %v1447
        %v1449 = vrot.slane %v1440, %v1448
        %v1450 = vlaneseq
        %v1451 = vshrl.u32 %v1450, 7
        %v1452 = vsub.s32 2, %v1451
        %v1453 = vrot.slane %v1440, %v1452
        %v1454 = vlaneseq
        %v1455 = vshrl.u32 %v1454, 7
        %v1456 = vsub.s32 3, %v1455
        %v1457 = vrot.slane %v1440, %v1456
        %v1458 = vlaneseq
        %v1459 = vshrl.u32 %v1458, 7
        %v1460 = vsub.s32 4, %v1459
        %v1461 = vrot.slane %v1440, %v1460
        %vm1467 = vcmask 818176
        %v1469 = vsel %vm1467, %v1134, 0
        %vm1471 = vcmask 1043456
        %v1473 = vsel %vm1471, %v1435, 0
        %v1476 = vsel %vm1471, %v1436, 0
        %v1479 = vsel %vm1471, %v1437, 0
        %v1482 = vsel %vm1471, %v1438, 0
        %v1485 = vsel %vm1471, %v1439, 0
        %1487 = vmatprep.subr.mxu0 %v1211
        %1488 = vmatpush1.msra.mxu0 %v1210
        %1489 = vmatprep.subr.mxu0 %v1206
        %1490 = vmatpush1.msra.mxu0 %v1205
        %1491 = vmatprep.subr.mxu0 %v1201
        %1492 = vmatpush1.msra.mxu0 %v1200
        %1493 = vmatprep.subr.mxu0 %v1196
        %1494 = vmatpush1.msra.mxu0 %v1195
        %1495 = vmatprep.subr.mxu0 %v1191
        %1496 = vmatpush1.msra.mxu0 %v1190
        %1497 = vmatprep.subr.mxu0 %v1186
        %1498 = vmatpush1.msra.mxu0 %v1185
        %1499 = vmatprep.subr.mxu0 %v1181
        %1500 = vmatpush1.msra.mxu0 %v1180
        %1501 = vmatprep.subr.mxu0 %v1176
        %1502 = vmatpush1.msra.mxu0 %v1175
        %1503 = vmatprep.subr.mxu0 %v1171
        %1504 = vmatpush1.msra.mxu0 %v1170
        %1505 = vmatprep.subr.mxu0 %v1166
        %1506 = vmatpush1.msra.mxu0 %v1165
        %1507 = vmatprep.subr.mxu0 %v1161
        %1508 = vmatpush1.msra.mxu0 %v1160
        %1509 = vmatprep.subr.mxu0 %v1156
        %1510 = vmatpush1.msra.mxu0 %v1155
        %1511 = vmatprep.subr.mxu0 %v1151
        %1512 = vmatpush1.msra.mxu0 %v1150
        %1513 = vmatprep.subr.mxu0 %v1146
        %1514 = vmatpush1.msra.mxu0 %v1145
        %1515 = vmatprep.subr.mxu0 %v1141
        %1516 = vmatpush1.msra.mxu0 %v1140
        %1517 = vmatprep.subr.mxu0 %v1136
        %1518 = vmatpush1.msra.mxu0 %v1135
        %1519 = vmatprep.subr.mxu0 %v1291
        %1520 = vmatpush2.msra.mxu0 %v1290
        %1521 = vmatprep.subr.mxu0 %v1286
        %1522 = vmatpush2.msra.mxu0 %v1285
        %1523 = vmatprep.subr.mxu0 %v1281
        %1524 = vmatpush2.msra.mxu0 %v1280
        %1525 = vmatprep.subr.mxu0 %v1276
        %1526 = vmatpush2.msra.mxu0 %v1275
        %1527 = vmatprep.subr.mxu0 %v1271
        %1528 = vmatpush2.msra.mxu0 %v1270
        %1529 = vmatprep.subr.mxu0 %v1266
        %1530 = vmatpush2.msra.mxu0 %v1265
        %1531 = vmatprep.subr.mxu0 %v1261
        %1532 = vmatpush2.msra.mxu0 %v1260
        %1533 = vmatprep.subr.mxu0 %v1256
        %1534 = vmatpush2.msra.mxu0 %v1255
        %1535 = vmatprep.subr.mxu0 %v1251
        %1536 = vmatpush2.msra.mxu0 %v1250
        %1537 = vmatprep.subr.mxu0 %v1246
        %1538 = vmatpush2.msra.mxu0 %v1245
        %1539 = vmatprep.subr.mxu0 %v1241
        %1540 = vmatpush2.msra.mxu0 %v1240
        %1541 = vmatprep.subr.mxu0 %v1236
        %1542 = vmatpush2.msra.mxu0 %v1235
        %1543 = vmatprep.subr.mxu0 %v1231
        %1544 = vmatpush2.msra.mxu0 %v1230
        %1545 = vmatprep.subr.mxu0 %v1226
        %1546 = vmatpush2.msra.mxu0 %v1225
        %1547 = vmatprep.subr.mxu0 %v1221
        %1548 = vmatpush2.msra.mxu0 %v1220
        %1549 = vmatprep.subr.mxu0 %v1216
        %1550 = vmatpush2.msra.mxu0 %v1215
        %1551 = vmatprep.mubr.f32.mxu0 %v1132
        %1552 = vmatmul.mubr.f32.gmra.mxu0 %v1131
        %v1553 = vpop.f32.mrf.mxu0
        %v1554 = vadd.f32 %v1445, %v1553
        %v1555 = vpop.f32.mrf.mxu0
        %v1556 = vadd.f32 %v1449, %v1555
        %1557 = vdwg.mxu0
        %1558 = vmatprep.subr.mxu0 %v1371
        %1559 = vmatpush1.msra.mxu0 %v1370
        %1560 = vmatprep.subr.mxu0 %v1366
        %1561 = vmatpush1.msra.mxu0 %v1365
        %1562 = vmatprep.subr.mxu0 %v1361
        %1563 = vmatpush1.msra.mxu0 %v1360
        %1564 = vmatprep.subr.mxu0 %v1356
        %1565 = vmatpush1.msra.mxu0 %v1355
        %1566 = vmatprep.subr.mxu0 %v1351
        %1567 = vmatpush1.msra.mxu0 %v1350
        %1568 = vmatprep.subr.mxu0 %v1346
        %1569 = vmatpush1.msra.mxu0 %v1345
        %1570 = vmatprep.subr.mxu0 %v1341
        %1571 = vmatpush1.msra.mxu0 %v1340
        %1572 = vmatprep.subr.mxu0 %v1336
        %1573 = vmatpush1.msra.mxu0 %v1335
        %1574 = vmatprep.subr.mxu0 %v1331
        %1575 = vmatpush1.msra.mxu0 %v1330
        %1576 = vmatprep.subr.mxu0 %v1326
        %1577 = vmatpush1.msra.mxu0 %v1325
        %1578 = vmatprep.subr.mxu0 %v1321
        %1579 = vmatpush1.msra.mxu0 %v1320
        %1580 = vmatprep.subr.mxu0 %v1316
        %1581 = vmatpush1.msra.mxu0 %v1315
        %1582 = vmatprep.subr.mxu0 %v1311
        %1583 = vmatpush1.msra.mxu0 %v1310
        %1584 = vmatprep.subr.mxu0 %v1306
        %1585 = vmatpush1.msra.mxu0 %v1305
        %1586 = vmatprep.subr.mxu0 %v1301
        %1587 = vmatpush1.msra.mxu0 %v1300
        %1588 = vmatprep.subr.mxu0 %v1296
        %1589 = vmatpush1.msra.mxu0 %v1295
        %1590 = vmatprep.subr.mxu0 0.0
        %1591 = vmatpush2.msra.mxu0 0.0
        %1592 = vmatprep.subr.mxu0 0.0
        %1593 = vmatpush2.msra.mxu0 0.0
        %1594 = vmatprep.subr.mxu0 0.0
        %1595 = vmatpush2.msra.mxu0 0.0
        %1596 = vmatprep.subr.mxu0 %v1476
        %1597 = vmatpush2.msra.mxu0 %v1473
        %1598 = vmatprep.subr.mxu0 %v1431
        %1599 = vmatpush2.msra.mxu0 %v1430
        %1600 = vmatprep.subr.mxu0 %v1426
        %1601 = vmatpush2.msra.mxu0 %v1425
        %1602 = vmatprep.subr.mxu0 %v1421
        %1603 = vmatpush2.msra.mxu0 %v1420
        %1604 = vmatprep.subr.mxu0 %v1416
        %1605 = vmatpush2.msra.mxu0 %v1415
        %1606 = vmatprep.subr.mxu0 %v1411
        %1607 = vmatpush2.msra.mxu0 %v1410
        %1608 = vmatprep.subr.mxu0 %v1406
        %1609 = vmatpush2.msra.mxu0 %v1405
        %1610 = vmatprep.subr.mxu0 %v1401
        %1611 = vmatpush2.msra.mxu0 %v1400
        %1612 = vmatprep.subr.mxu0 %v1396
        %1613 = vmatpush2.msra.mxu0 %v1395
        %1614 = vmatprep.subr.mxu0 %v1391
        %1615 = vmatpush2.msra.mxu0 %v1390
        %1616 = vmatprep.subr.mxu0 %v1386
        %1617 = vmatpush2.msra.mxu0 %v1385
        %1618 = vmatprep.subr.mxu0 %v1381
        %1619 = vmatpush2.msra.mxu0 %v1380
        %1620 = vmatprep.subr.mxu0 %v1376
        %1621 = vmatpush2.msra.mxu0 %v1375
        %1622 = vmatprep.mubr.f32.mxu0 %v1469
        %1623 = vmatmul.mubr.f32.gmra.mxu0 %v1133
        %v1624 = vpop.f32.mrf.mxu0
        %v1625 = vadd.f32 %v1554, %v1624
        %v1626 = vpop.f32.mrf.mxu0
        %v1627 = vadd.f32 %v1556, %v1626
        %1628 = vdwg.mxu0
        %1629 = vmatprep.subr.mxu0 %v1213
        %1630 = vmatpush1.msra.mxu0 %v1212
        %1631 = vmatprep.subr.mxu0 %v1208
        %1632 = vmatpush1.msra.mxu0 %v1207
        %1633 = vmatprep.subr.mxu0 %v1203
        %1634 = vmatpush1.msra.mxu0 %v1202
        %1635 = vmatprep.subr.mxu0 %v1198
        %1636 = vmatpush1.msra.mxu0 %v1197
        %1637 = vmatprep.subr.mxu0 %v1193
        %1638 = vmatpush1.msra.mxu0 %v1192
        %1639 = vmatprep.subr.mxu0 %v1188
        %1640 = vmatpush1.msra.mxu0 %v1187
        %1641 = vmatprep.subr.mxu0 %v1183
        %1642 = vmatpush1.msra.mxu0 %v1182
        %1643 = vmatprep.subr.mxu0 %v1178
        %1644 = vmatpush1.msra.mxu0 %v1177
        %1645 = vmatprep.subr.mxu0 %v1173
        %1646 = vmatpush1.msra.mxu0 %v1172
        %1647 = vmatprep.subr.mxu0 %v1168
        %1648 = vmatpush1.msra.mxu0 %v1167
        %1649 = vmatprep.subr.mxu0 %v1163
        %1650 = vmatpush1.msra.mxu0 %v1162
        %1651 = vmatprep.subr.mxu0 %v1158
        %1652 = vmatpush1.msra.mxu0 %v1157
        %1653 = vmatprep.subr.mxu0 %v1153
        %1654 = vmatpush1.msra.mxu0 %v1152
        %1655 = vmatprep.subr.mxu0 %v1148
        %1656 = vmatpush1.msra.mxu0 %v1147
        %1657 = vmatprep.subr.mxu0 %v1143
        %1658 = vmatpush1.msra.mxu0 %v1142
        %1659 = vmatprep.subr.mxu0 %v1138
        %1660 = vmatpush1.msra.mxu0 %v1137
        %1661 = vmatprep.subr.mxu0 %v1293
        %1662 = vmatpush2.msra.mxu0 %v1292
        %1663 = vmatprep.subr.mxu0 %v1288
        %1664 = vmatpush2.msra.mxu0 %v1287
        %1665 = vmatprep.subr.mxu0 %v1283
        %1666 = vmatpush2.msra.mxu0 %v1282
        %1667 = vmatprep.subr.mxu0 %v1278
        %1668 = vmatpush2.msra.mxu0 %v1277
        %1669 = vmatprep.subr.mxu0 %v1273
        %1670 = vmatpush2.msra.mxu0 %v1272
        %1671 = vmatprep.subr.mxu0 %v1268
        %1672 = vmatpush2.msra.mxu0 %v1267
        %1673 = vmatprep.subr.mxu0 %v1263
        %1674 = vmatpush2.msra.mxu0 %v1262
        %1675 = vmatprep.subr.mxu0 %v1258
        %1676 = vmatpush2.msra.mxu0 %v1257
        %1677 = vmatprep.subr.mxu0 %v1253
        %1678 = vmatpush2.msra.mxu0 %v1252
        %1679 = vmatprep.subr.mxu0 %v1248
        %1680 = vmatpush2.msra.mxu0 %v1247
        %1681 = vmatprep.subr.mxu0 %v1243
        %1682 = vmatpush2.msra.mxu0 %v1242
        %1683 = vmatprep.subr.mxu0 %v1238
        %1684 = vmatpush2.msra.mxu0 %v1237
        %1685 = vmatprep.subr.mxu0 %v1233
        %1686 = vmatpush2.msra.mxu0 %v1232
        %1687 = vmatprep.subr.mxu0 %v1228
        %1688 = vmatpush2.msra.mxu0 %v1227
        %1689 = vmatprep.subr.mxu0 %v1223
        %1690 = vmatpush2.msra.mxu0 %v1222
        %1691 = vmatprep.subr.mxu0 %v1218
        %1692 = vmatpush2.msra.mxu0 %v1217
        %1693 = vmatprep.mubr.f32.mxu0 %v1132
        %1694 = vmatmul.mubr.f32.gmra.mxu0 %v1131
        %v1695 = vpop.f32.mrf.mxu0
        %v1696 = vadd.f32 %v1453, %v1695
        %v1697 = vpop.f32.mrf.mxu0
        %v1698 = vadd.f32 %v1457, %v1697
        %1699 = vdwg.mxu0
        %1700 = vmatprep.subr.mxu0 %v1373
        %1701 = vmatpush1.msra.mxu0 %v1372
        %1702 = vmatprep.subr.mxu0 %v1368
        %1703 = vmatpush1.msra.mxu0 %v1367
        %1704 = vmatprep.subr.mxu0 %v1363
        %1705 = vmatpush1.msra.mxu0 %v1362
        %1706 = vmatprep.subr.mxu0 %v1358
        %1707 = vmatpush1.msra.mxu0 %v1357
        %1708 = vmatprep.subr.mxu0 %v1353
        %1709 = vmatpush1.msra.mxu0 %v1352
        %1710 = vmatprep.subr.mxu0 %v1348
        %1711 = vmatpush1.msra.mxu0 %v1347
        %1712 = vmatprep.subr.mxu0 %v1343
        %1713 = vmatpush1.msra.mxu0 %v1342
        %1714 = vmatprep.subr.mxu0 %v1338
        %1715 = vmatpush1.msra.mxu0 %v1337
        %1716 = vmatprep.subr.mxu0 %v1333
        %1717 = vmatpush1.msra.mxu0 %v1332
        %1718 = vmatprep.subr.mxu0 %v1328
        %1719 = vmatpush1.msra.mxu0 %v1327
        %1720 = vmatprep.subr.mxu0 %v1323
        %1721 = vmatpush1.msra.mxu0 %v1322
        %1722 = vmatprep.subr.mxu0 %v1318
        %1723 = vmatpush1.msra.mxu0 %v1317
        %1724 = vmatprep.subr.mxu0 %v1313
        %1725 = vmatpush1.msra.mxu0 %v1312
        %1726 = vmatprep.subr.mxu0 %v1308
        %1727 = vmatpush1.msra.mxu0 %v1307
        %1728 = vmatprep.subr.mxu0 %v1303
        %1729 = vmatpush1.msra.mxu0 %v1302
        %1730 = vmatprep.subr.mxu0 %v1298
        %1731 = vmatpush1.msra.mxu0 %v1297
        %1732 = vmatprep.subr.mxu0 0.0
        %1733 = vmatpush2.msra.mxu0 0.0
        %1734 = vmatprep.subr.mxu0 0.0
        %1735 = vmatpush2.msra.mxu0 0.0
        %1736 = vmatprep.subr.mxu0 0.0
        %1737 = vmatpush2.msra.mxu0 0.0
        %1738 = vmatprep.subr.mxu0 %v1482
        %1739 = vmatpush2.msra.mxu0 %v1479
        %1740 = vmatprep.subr.mxu0 %v1433
        %1741 = vmatpush2.msra.mxu0 %v1432
        %1742 = vmatprep.subr.mxu0 %v1428
        %1743 = vmatpush2.msra.mxu0 %v1427
        %1744 = vmatprep.subr.mxu0 %v1423
        %1745 = vmatpush2.msra.mxu0 %v1422
        %1746 = vmatprep.subr.mxu0 %v1418
        %1747 = vmatpush2.msra.mxu0 %v1417
        %1748 = vmatprep.subr.mxu0 %v1413
        %1749 = vmatpush2.msra.mxu0 %v1412
        %1750 = vmatprep.subr.mxu0 %v1408
        %1751 = vmatpush2.msra.mxu0 %v1407
        %1752 = vmatprep.subr.mxu0 %v1403
        %1753 = vmatpush2.msra.mxu0 %v1402
        %1754 = vmatprep.subr.mxu0 %v1398
        %1755 = vmatpush2.msra.mxu0 %v1397
        %1756 = vmatprep.subr.mxu0 %v1393
        %1757 = vmatpush2.msra.mxu0 %v1392
        %1758 = vmatprep.subr.mxu0 %v1388
        %1759 = vmatpush2.msra.mxu0 %v1387
        %1760 = vmatprep.subr.mxu0 %v1383
        %1761 = vmatpush2.msra.mxu0 %v1382
        %1762 = vmatprep.subr.mxu0 %v1378
        %1763 = vmatpush2.msra.mxu0 %v1377
        %1764 = vmatprep.mubr.f32.mxu0 %v1469
        %1765 = vmatmul.mubr.f32.gmra.mxu0 %v1133
        %v1766 = vpop.f32.mrf.mxu0
        %v1767 = vadd.f32 %v1696, %v1766
        %v1768 = vpop.f32.mrf.mxu0
        %v1769 = vadd.f32 %v1698, %v1768
        %1770 = vdwg.mxu0
        %1771 = vmatprep.subr.mxu0 0.0
        %1772 = vmatpush1.msra.mxu0 %v1214
        %1773 = vmatprep.subr.mxu0 0.0
        %1774 = vmatpush1.msra.mxu0 %v1209
        %1775 = vmatprep.subr.mxu0 0.0
        %1776 = vmatpush1.msra.mxu0 %v1204
        %1777 = vmatprep.subr.mxu0 0.0
        %1778 = vmatpush1.msra.mxu0 %v1199
        %1779 = vmatprep.subr.mxu0 0.0
        %1780 = vmatpush1.msra.mxu0 %v1194
        %1781 = vmatprep.subr.mxu0 0.0
        %1782 = vmatpush1.msra.mxu0 %v1189
        %1783 = vmatprep.subr.mxu0 0.0
        %1784 = vmatpush1.msra.mxu0 %v1184
        %1785 = vmatprep.subr.mxu0 0.0
        %1786 = vmatpush1.msra.mxu0 %v1179
        %1787 = vmatprep.subr.mxu0 0.0
        %1788 = vmatpush1.msra.mxu0 %v1174
        %1789 = vmatprep.subr.mxu0 0.0
        %1790 = vmatpush1.msra.mxu0 %v1169
        %1791 = vmatprep.subr.mxu0 0.0
        %1792 = vmatpush1.msra.mxu0 %v1164
        %1793 = vmatprep.subr.mxu0 0.0
        %1794 = vmatpush1.msra.mxu0 %v1159
        %1795 = vmatprep.subr.mxu0 0.0
        %1796 = vmatpush1.msra.mxu0 %v1154
        %1797 = vmatprep.subr.mxu0 0.0
        %1798 = vmatpush1.msra.mxu0 %v1149
        %1799 = vmatprep.subr.mxu0 0.0
        %1800 = vmatpush1.msra.mxu0 %v1144
        %1801 = vmatprep.subr.mxu0 0.0
        %1802 = vmatpush1.msra.mxu0 %v1139
        %1803 = vmatprep.subr.mxu0 0.0
        %1804 = vmatpush2.msra.mxu0 %v1294
        %1805 = vmatprep.subr.mxu0 0.0
        %1806 = vmatpush2.msra.mxu0 %v1289
        %1807 = vmatprep.subr.mxu0 0.0
        %1808 = vmatpush2.msra.mxu0 %v1284
        %1809 = vmatprep.subr.mxu0 0.0
        %1810 = vmatpush2.msra.mxu0 %v1279
        %1811 = vmatprep.subr.mxu0 0.0
        %1812 = vmatpush2.msra.mxu0 %v1274
        %1813 = vmatprep.subr.mxu0 0.0
        %1814 = vmatpush2.msra.mxu0 %v1269
        %1815 = vmatprep.subr.mxu0 0.0
        %1816 = vmatpush2.msra.mxu0 %v1264
        %1817 = vmatprep.subr.mxu0 0.0
        %1818 = vmatpush2.msra.mxu0 %v1259
        %1819 = vmatprep.subr.mxu0 0.0
        %1820 = vmatpush2.msra.mxu0 %v1254
        %1821 = vmatprep.subr.mxu0 0.0
        %1822 = vmatpush2.msra.mxu0 %v1249
        %1823 = vmatprep.subr.mxu0 0.0
        %1824 = vmatpush2.msra.mxu0 %v1244
        %1825 = vmatprep.subr.mxu0 0.0
        %1826 = vmatpush2.msra.mxu0 %v1239
        %1827 = vmatprep.subr.mxu0 0.0
        %1828 = vmatpush2.msra.mxu0 %v1234
        %1829 = vmatprep.subr.mxu0 0.0
        %1830 = vmatpush2.msra.mxu0 %v1229
        %1831 = vmatprep.subr.mxu0 0.0
        %1832 = vmatpush2.msra.mxu0 %v1224
        %1833 = vmatprep.subr.mxu0 0.0
        %1834 = vmatpush2.msra.mxu0 %v1219
        %1835 = vmatprep.mubr.f32.mxu0 %v1132
        %1836 = vmatmul.mubr.f32.gmra.mxu0 %v1131
        %v1837 = vpop.f32.mrf.mxu0
        %v1838 = vadd.f32 %v1461, %v1837
        %v1839 = vpop.f32.mrf.mxu0
        %1840 = vdwg.mxu0
        %1841 = vmatprep.subr.mxu0 0.0
        %1842 = vmatpush1.msra.mxu0 %v1374
        %1843 = vmatprep.subr.mxu0 0.0
        %1844 = vmatpush1.msra.mxu0 %v1369
        %1845 = vmatprep.subr.mxu0 0.0
        %1846 = vmatpush1.msra.mxu0 %v1364
        %1847 = vmatprep.subr.mxu0 0.0
        %1848 = vmatpush1.msra.mxu0 %v1359
        %1849 = vmatprep.subr.mxu0 0.0
        %1850 = vmatpush1.msra.mxu0 %v1354
        %1851 = vmatprep.subr.mxu0 0.0
        %1852 = vmatpush1.msra.mxu0 %v1349
        %1853 = vmatprep.subr.mxu0 0.0
        %1854 = vmatpush1.msra.mxu0 %v1344
        %1855 = vmatprep.subr.mxu0 0.0
        %1856 = vmatpush1.msra.mxu0 %v1339
        %1857 = vmatprep.subr.mxu0 0.0
        %1858 = vmatpush1.msra.mxu0 %v1334
        %1859 = vmatprep.subr.mxu0 0.0
        %1860 = vmatpush1.msra.mxu0 %v1329
        %1861 = vmatprep.subr.mxu0 0.0
        %1862 = vmatpush1.msra.mxu0 %v1324
        %1863 = vmatprep.subr.mxu0 0.0
        %1864 = vmatpush1.msra.mxu0 %v1319
        %1865 = vmatprep.subr.mxu0 0.0
        %1866 = vmatpush1.msra.mxu0 %v1314
        %1867 = vmatprep.subr.mxu0 0.0
        %1868 = vmatpush1.msra.mxu0 %v1309
        %1869 = vmatprep.subr.mxu0 0.0
        %1870 = vmatpush1.msra.mxu0 %v1304
        %1871 = vmatprep.subr.mxu0 0.0
        %1872 = vmatpush1.msra.mxu0 %v1299
        %1873 = vmatprep.subr.mxu0 0.0
        %1874 = vmatpush2.msra.mxu0 0.0
        %1875 = vmatprep.subr.mxu0 0.0
        %1876 = vmatpush2.msra.mxu0 0.0
        %1877 = vmatprep.subr.mxu0 0.0
        %1878 = vmatpush2.msra.mxu0 0.0
        %1879 = vmatprep.subr.mxu0 0.0
        %1880 = vmatpush2.msra.mxu0 %v1485
        %1881 = vmatprep.subr.mxu0 0.0
        %1882 = vmatpush2.msra.mxu0 %v1434
        %1883 = vmatprep.subr.mxu0 0.0
        %1884 = vmatpush2.msra.mxu0 %v1429
        %1885 = vmatprep.subr.mxu0 0.0
        %1886 = vmatpush2.msra.mxu0 %v1424
        %1887 = vmatprep.subr.mxu0 0.0
        %1888 = vmatpush2.msra.mxu0 %v1419
        %1889 = vmatprep.subr.mxu0 0.0
        %1890 = vmatpush2.msra.mxu0 %v1414
        %1891 = vmatprep.subr.mxu0 0.0
        %1892 = vmatpush2.msra.mxu0 %v1409
        %1893 = vmatprep.subr.mxu0 0.0
        %1894 = vmatpush2.msra.mxu0 %v1404
        %1895 = vmatprep.subr.mxu0 0.0
        %1896 = vmatpush2.msra.mxu0 %v1399
        %1897 = vmatprep.subr.mxu0 0.0
        %1898 = vmatpush2.msra.mxu0 %v1394
        %1899 = vmatprep.subr.mxu0 0.0
        %1900 = vmatpush2.msra.mxu0 %v1389
        %1901 = vmatprep.subr.mxu0 0.0
        %1902 = vmatpush2.msra.mxu0 %v1384
        %1903 = vmatprep.subr.mxu0 0.0
        %1904 = vmatpush2.msra.mxu0 %v1379
        %1905 = vmatprep.mubr.f32.mxu0 %v1469
        %1906 = vmatmul.mubr.f32.gmra.mxu0 %v1133
        %v1907 = vpop.f32.mrf.mxu0
        %v1908 = vadd.f32 %v1838, %v1907
        %v1909 = vpop.f32.mrf.mxu0
        %1910 = vdwg.mxu0
        %vm1911 = vcmp.gt.f32.partialorder %v1625, 0.0
        %vm1912 = vcmp.gt.f32.partialorder %v1627, 0.0
        %vm1913 = vcmp.gt.f32.partialorder %v1767, 0.0
        %vm1914 = vcmp.gt.f32.partialorder %v1769, 0.0
        %vm1915 = vcmp.gt.f32.partialorder %v1908, 0.0
        %v1916 = vmin.f32 %v1625, 0.0
        %v1917 = vmin.f32 %v1627, 0.0
        %v1918 = vmin.f32 %v1767, 0.0
        %v1919 = vmin.f32 %v1769, 0.0
        %v1920 = vmin.f32 %v1908, 0.0
        %v1921 = vmul.f32 %v1916, 1.442695
        %v1922 = vpow.pop %v1921
        %v1923 = vmul.f32 %v1917, 1.442695
        %v1924 = vpow.pop %v1923
        %v1925 = vmul.f32 %v1918, 1.442695
        %v1926 = vpow.pop %v1925
        %v1927 = vmul.f32 %v1919, 1.442695
        %v1928 = vpow.pop %v1927
        %v1929 = vmul.f32 %v1920, 1.442695
        %v1930 = vpow.pop %v1929
        %v1931 = vsub.f32 %v1922, 1.0
        %v1932 = vsub.f32 %v1924, 1.0
        %v1933 = vsub.f32 %v1926, 1.0
        %v1934 = vsub.f32 %v1928, 1.0
        %v1935 = vsub.f32 %v1930, 1.0
        %v1936 = vsel %vm1911, %v1625, %v1931
        %v1937 = vsel %vm1912, %v1627, %v1932
        %v1938 = vsel %vm1913, %v1767, %v1933
        %v1939 = vsel %vm1914, %v1769, %v1934
        %v1940 = vsel %vm1915, %v1908, %v1935
        %v1941 = vld [vmem:[%s7] sm:$0xff]
        %v1942 = vld [vmem:[%s7 + $0x8] sm:$0xff]
        %v1943 = vld [vmem:[%s7 + $0x10] sm:$0xff]
        %v1944 = vld [vmem:[%s7 + $0x18] sm:$0xff]
        %v1945 = vld [vmem:[%s7 + $0x20] sm:$0xff]
        %v1946 = vld [vmem:[%s7 + $0x28] sm:$0xff]
        %v1947 = vld [vmem:[%s7 + $0x30] sm:$0xff]
        %v1948 = vld [vmem:[%s7 + $0x38] sm:$0xff]
        %v1949 = vld [vmem:[%s7 + $0x40] sm:$0xff]
        %v1950 = vld [vmem:[%s7 + $0x48] sm:$0xff]
        %v1951 = vld [vmem:[%s7 + $0x50] sm:$0xff]
        %v1952 = vld [vmem:[%s7 + $0x58] sm:$0xff]
        %v1953 = vld [vmem:[%s7 + $0x60] sm:$0xff]
        %v1954 = vld [vmem:[%s7 + $0x68] sm:$0xff]
        %v1955 = vld [vmem:[%s7 + $0x70] sm:$0xff]
        %v1956 = vld [vmem:[%s7 + $0x78] sm:$0xff]
        %v1957 = vld [vmem:[%s7 + $0x80] sm:$0xff]
        %v1958 = vld [vmem:[%s7 + $0x88] sm:$0xff]
        %v1959 = vld [vmem:[%s7 + $0x90] sm:$0xff]
        %v1960 = vld [vmem:[%s7 + $0x98] sm:$0xff]
        %v1961 = vld [vmem:[%s7 + $0xa0] sm:$0xff]
        %v1962 = vld [vmem:[%s7 + $0xa8] sm:$0xff]
        %v1963 = vld [vmem:[%s7 + $0xb0] sm:$0xff]
        %v1964 = vld [vmem:[%s7 + $0xb8] sm:$0xff]
        %v1965 = vld [vmem:[%s7 + $0xc0] sm:$0xff]
        %v1966 = vld [vmem:[%s7 + $0xc8] sm:$0xff]
        %v1967 = vld [vmem:[%s7 + $0xd0] sm:$0xff]
        %v1968 = vld [vmem:[%s7 + $0xd8] sm:$0xff]
        %v1969 = vld [vmem:[%s7 + $0xe0] sm:$0xff]
        %v1970 = vld [vmem:[%s7 + $0xe8] sm:$0xff]
        %v1971 = vld [vmem:[%s7 + $0xf0] sm:$0xff]
        %v1972 = vld [vmem:[%s7 + $0xf8] sm:$0xff]
        %v1973 = vld [vmem:[%s7 + $0x100] sm:$0xff]
        %v1974 = vld [vmem:[%s7 + $0x108] sm:$0xff]
        %v1975 = vld [vmem:[%s7 + $0x110] sm:$0xff]
        %v1976 = vld [vmem:[%s7 + $0x118] sm:$0xff]
        %v1977 = vld [vmem:[%s7 + $0x120] sm:$0xff]
        %v1978 = vld [vmem:[%s7 + $0x128] sm:$0xff]
        %v1979 = vld [vmem:[%s7 + $0x130] sm:$0xff]
        %v1980 = vld [vmem:[%s7 + $0x138] sm:$0xff]
        %v1981 = vld [vmem:[%s7 + $0x140] sm:$0xff]
        %v1982 = vld [vmem:[%s7 + $0x148] sm:$0xff]
        %v1983 = vld [vmem:[%s7 + $0x150] sm:$0xff]
        %v1984 = vld [vmem:[%s7 + $0x158] sm:$0xff]
        %v1985 = vld [vmem:[%s7 + $0x160] sm:$0xff]
        %v1986 = vld [vmem:[%s7 + $0x168] sm:$0xff]
        %v1987 = vld [vmem:[%s7 + $0x170] sm:$0xff]
        %v1988 = vld [vmem:[%s7 + $0x178] sm:$0xff]
        %v1989 = vld [vmem:[%s7 + $0x180] sm:$0xff]
        %v1990 = vld [vmem:[%s7 + $0x188] sm:$0xff]
        %v1991 = vld [vmem:[%s7 + $0x190] sm:$0xff]
        %v1992 = vld [vmem:[%s7 + $0x198] sm:$0xff]
        %v1993 = vld [vmem:[%s7 + $0x1a0] sm:$0xff]
        %v1994 = vld [vmem:[%s7 + $0x1a8] sm:$0xff]
        %v1995 = vld [vmem:[%s7 + $0x1b0] sm:$0xff]
        %v1996 = vld [vmem:[%s7 + $0x1b8] sm:$0xff]
        %v1997 = vld [vmem:[%s7 + $0x1c0] sm:$0xff]
        %v1998 = vld [vmem:[%s7 + $0x1c8] sm:$0xff]
        %v1999 = vld [vmem:[%s7 + $0x1d0] sm:$0xff]
        %v2000 = vld [vmem:[%s7 + $0x1d8] sm:$0xff]
        %v2001 = vld [vmem:[%s7 + $0x1e0] sm:$0xff]
        %v2002 = vld [vmem:[%s7 + $0x1e8] sm:$0xff]
        %v2003 = vld [vmem:[%s7 + $0x1f0] sm:$0xff]
        %v2004 = vld [vmem:[%s7 + $0x1f8] sm:$0xff]
        %v2005 = vld [vmem:[%s7 + $0x200] sm:$0xff]
        %v2006 = vld [vmem:[%s7 + $0x208] sm:$0xff]
        %v2007 = vld [vmem:[%s7 + $0x210] sm:$0xff]
        %v2008 = vld [vmem:[%s7 + $0x218] sm:$0xff]
        %v2009 = vld [vmem:[%s7 + $0x220] sm:$0xff]
        %v2010 = vld [vmem:[%s7 + $0x228] sm:$0xff]
        %v2011 = vld [vmem:[%s7 + $0x230] sm:$0xff]
        %v2012 = vld [vmem:[%s7 + $0x238] sm:$0xff]
        %v2013 = vld [vmem:[%s7 + $0x240] sm:$0xff]
        %v2014 = vld [vmem:[%s7 + $0x248] sm:$0xff]
        %v2015 = vld [vmem:[%s7 + $0x250] sm:$0xff]
        %v2016 = vld [vmem:[%s7 + $0x258] sm:$0xff]
        %v2017 = vld [vmem:[%s7 + $0x260] sm:$0xff]
        %v2018 = vld [vmem:[%s7 + $0x268] sm:$0xff]
        %v2019 = vld [vmem:[%s7 + $0x270] sm:$0xff]
        %v2020 = vld [vmem:[%s7 + $0x278] sm:$0xff]
        %v2021 = vld [vmem:[%s7 + $0x280] sm:$0xff]
        %v2022 = vld [vmem:[%s7 + $0x288] sm:$0xff]
        %v2023 = vld [vmem:[%s7 + $0x290] sm:$0xff]
        %v2024 = vld [vmem:[%s7 + $0x298] sm:$0xff]
        %v2025 = vld [vmem:[%s7 + $0x2a0] sm:$0xff]
        %v2026 = vld [vmem:[%s7 + $0x2a8] sm:$0xff]
        %v2027 = vld [vmem:[%s7 + $0x2b0] sm:$0xff]
        %v2028 = vld [vmem:[%s7 + $0x2b8] sm:$0xff]
        %v2029 = vld [vmem:[%s7 + $0x2c0] sm:$0xff]
        %v2030 = vld [vmem:[%s7 + $0x2c8] sm:$0xff]
        %v2031 = vld [vmem:[%s7 + $0x2d0] sm:$0xff]
        %v2032 = vld [vmem:[%s7 + $0x2d8] sm:$0xff]
        %v2033 = vld [vmem:[%s7 + $0x2e0] sm:$0xff]
        %v2034 = vld [vmem:[%s7 + $0x2e8] sm:$0xff]
        %v2035 = vld [vmem:[%s7 + $0x2f0] sm:$0xff]
        %v2036 = vld [vmem:[%s7 + $0x2f8] sm:$0xff]
        %v2037 = vld [vmem:[%s7 + $0x300] sm:$0xff]
        %v2038 = vld [vmem:[%s7 + $0x308] sm:$0xff]
        %v2039 = vld [vmem:[%s7 + $0x310] sm:$0xff]
        %v2040 = vld [vmem:[%s7 + $0x318] sm:$0xff]
        %v2041 = vld [vmem:[%s7 + $0x320] sm:$0xff]
        %v2042 = vld [vmem:[%s7 + $0x328] sm:$0xff]
        %v2043 = vld [vmem:[%s7 + $0x330] sm:$0xff]
        %v2044 = vld [vmem:[%s7 + $0x338] sm:$0xff]
        %v2045 = vld [vmem:[%s7 + $0x340] sm:$0xff]
        %v2046 = vld [vmem:[%s7 + $0x348] sm:$0xff]
        %v2047 = vld [vmem:[%s7 + $0x350] sm:$0xff]
        %v2048 = vld [vmem:[%s7 + $0x358] sm:$0xff]
        %v2049 = vld [vmem:[%s7 + $0x360] sm:$0xff]
        %v2050 = vld [vmem:[%s7 + $0x368] sm:$0xff]
        %v2051 = vld [vmem:[%s7 + $0x370] sm:$0xff]
        %v2052 = vld [vmem:[%s7 + $0x378] sm:$0xff]
        %v2053 = vld [vmem:[%s7 + $0x380] sm:$0xff]
        %v2054 = vld [vmem:[%s7 + $0x388] sm:$0xff]
        %v2055 = vld [vmem:[%s7 + $0x390] sm:$0xff]
        %v2056 = vld [vmem:[%s7 + $0x398] sm:$0xff]
        %v2057 = vld [vmem:[%s7 + $0x3a0] sm:$0xff]
        %v2058 = vld [vmem:[%s7 + $0x3a8] sm:$0xff]
        %v2059 = vld [vmem:[%s7 + $0x3b0] sm:$0xff]
        %v2060 = vld [vmem:[%s7 + $0x3b8] sm:$0xff]
        %v2061 = vld [vmem:[%s7 + $0x3c0] sm:$0xff]
        %v2062 = vld [vmem:[%s7 + $0x3c8] sm:$0xff]
        %v2063 = vld [vmem:[%s7 + $0x3d0] sm:$0xff]
        %v2064 = vld [vmem:[%s7 + $0x3d8] sm:$0xff]
        %v2065 = vld [vmem:[%s7 + $0x3e0] sm:$0xff]
        %v2066 = vld [vmem:[%s7 + $0x3e8] sm:$0xff]
        %v2067 = vld [vmem:[%s7 + $0x3f0] sm:$0xff]
        %v2068 = vld [vmem:[%s7 + $0x3f8] sm:$0xff]
        %v2069 = vld [vmem:[%s7 + $0x400] sm:$0xff]
        %v2070 = vld [vmem:[%s7 + $0x408] sm:$0xff]
        %v2071 = vld [vmem:[%s7 + $0x410] sm:$0xff]
        %v2072 = vld [vmem:[%s7 + $0x418] sm:$0xff]
        %v2073 = vld [vmem:[%s7 + $0x420] sm:$0xff]
        %v2074 = vld [vmem:[%s7 + $0x428] sm:$0xff]
        %v2075 = vld [vmem:[%s7 + $0x430] sm:$0xff]
        %v2076 = vld [vmem:[%s7 + $0x438] sm:$0xff]
        %v2077 = vld [vmem:[%s7 + $0x440] sm:$0xff]
        %v2078 = vld [vmem:[%s7 + $0x448] sm:$0xff]
        %v2079 = vld [vmem:[%s7 + $0x450] sm:$0xff]
        %v2080 = vld [vmem:[%s7 + $0x458] sm:$0xff]
        %v2081 = vld [vmem:[%s7 + $0x460] sm:$0xff]
        %v2082 = vld [vmem:[%s7 + $0x468] sm:$0xff]
        %v2083 = vld [vmem:[%s7 + $0x470] sm:$0xff]
        %v2084 = vld [vmem:[%s7 + $0x478] sm:$0xff]
        %v2085 = vld [vmem:[%s7 + $0x480] sm:$0xff]
        %v2086 = vld [vmem:[%s7 + $0x488] sm:$0xff]
        %v2087 = vld [vmem:[%s7 + $0x490] sm:$0xff]
        %v2088 = vld [vmem:[%s7 + $0x498] sm:$0xff]
        %v2089 = vld [vmem:[%s7 + $0x4a0] sm:$0xff]
        %v2090 = vld [vmem:[%s7 + $0x4a8] sm:$0xff]
        %v2091 = vld [vmem:[%s7 + $0x4b0] sm:$0xff]
        %v2092 = vld [vmem:[%s7 + $0x4b8] sm:$0xff]
        %v2093 = vld [vmem:[%s7 + $0x4c0] sm:$0xff]
        %v2094 = vld [vmem:[%s7 + $0x4c8] sm:$0xff]
        %v2095 = vld [vmem:[%s7 + $0x4d0] sm:$0xff]
        %v2096 = vld [vmem:[%s7 + $0x4d8] sm:$0xff]
        %v2097 = vld [vmem:[%s7 + $0x4e0] sm:$0xff]
        %v2098 = vld [vmem:[%s7 + $0x4e8] sm:$0xff]
        %v2099 = vld [vmem:[%s7 + $0x4f0] sm:$0xff]
        %v2100 = vld [vmem:[%s7 + $0x4f8] sm:$0xff]
        %v2101 = vld [vmem:[%s7 + $0x500] sm:$0xff]
        %v2102 = vld [vmem:[%s7 + $0x508] sm:$0xff]
        %v2103 = vld [vmem:[%s7 + $0x510] sm:$0xff]
        %v2104 = vld [vmem:[%s7 + $0x518] sm:$0xff]
        %v2105 = vld [vmem:[%s7 + $0x520] sm:$0xff]
        %v2106 = vld [vmem:[%s7 + $0x528] sm:$0xff]
        %v2107 = vld [vmem:[%s7 + $0x530] sm:$0xff]
        %v2108 = vld [vmem:[%s7 + $0x538] sm:$0xff]
        %v2109 = vld [vmem:[%s7 + $0x540] sm:$0xff]
        %v2110 = vld [vmem:[%s7 + $0x548] sm:$0xff]
        %v2111 = vld [vmem:[%s7 + $0x550] sm:$0xff]
        %v2112 = vld [vmem:[%s7 + $0x558] sm:$0xff]
        %v2113 = vld [vmem:[%s7 + $0x560] sm:$0xff]
        %v2114 = vld [vmem:[%s7 + $0x568] sm:$0xff]
        %v2115 = vld [vmem:[%s7 + $0x570] sm:$0xff]
        %v2116 = vld [vmem:[%s7 + $0x578] sm:$0xff]
        %v2117 = vld [vmem:[%s7 + $0x580] sm:$0xff]
        %v2118 = vld [vmem:[%s7 + $0x588] sm:$0xff]
        %v2119 = vld [vmem:[%s7 + $0x590] sm:$0xff]
        %v2120 = vld [vmem:[%s7 + $0x598] sm:$0xff]
        %v2121 = vld [vmem:[%s7 + $0x5a0] sm:$0xff]
        %v2122 = vld [vmem:[%s7 + $0x5a8] sm:$0xff]
        %v2123 = vld [vmem:[%s7 + $0x5b0] sm:$0xff]
        %v2124 = vld [vmem:[%s7 + $0x5b8] sm:$0xff]
        %v2125 = vld [vmem:[%s7 + $0x5c0] sm:$0xff]
        %v2126 = vld [vmem:[%s7 + $0x5c8] sm:$0xff]
        %v2127 = vld [vmem:[%s7 + $0x5d0] sm:$0xff]
        %v2128 = vld [vmem:[%s7 + $0x5d8] sm:$0xff]
        %v2129 = vld [vmem:[%s7 + $0x5e0] sm:$0xff]
        %v2130 = vld [vmem:[%s7 + $0x5e8] sm:$0xff]
        %v2131 = vld [vmem:[%s7 + $0x5f0] sm:$0xff]
        %v2132 = vld [vmem:[%s7 + $0x5f8] sm:$0xff]
        %v2133 = vld [vmem:[%s7 + $0x600] sm:$0xff]
        %v2134 = vld [vmem:[%s7 + $0x608] sm:$0xff]
        %v2135 = vld [vmem:[%s7 + $0x610] sm:$0xff]
        %v2136 = vld [vmem:[%s7 + $0x618] sm:$0xff]
        %v2137 = vld [vmem:[%s7 + $0x620] sm:$0xff]
        %v2138 = vld [vmem:[%s7 + $0x628] sm:$0xff]
        %v2139 = vld [vmem:[%s7 + $0x630] sm:$0xff]
        %v2140 = vld [vmem:[%s7 + $0x638] sm:$0xff]
        %v2141 = vld [vmem:[%s7 + $0x640] sm:$0xff]
        %v2142 = vld [vmem:[%s7 + $0x648] sm:$0xff]
        %v2143 = vld [vmem:[%s7 + $0x650] sm:$0xff]
        %v2144 = vld [vmem:[%s7 + $0x658] sm:$0xff]
        %v2145 = vld [vmem:[%s7 + $0x660] sm:$0xff]
        %v2146 = vld [vmem:[%s7 + $0x668] sm:$0xff]
        %v2147 = vld [vmem:[%s7 + $0x670] sm:$0xff]
        %v2148 = vld [vmem:[%s7 + $0x678] sm:$0xff]
        %v2149 = vld [vmem:[%s7 + $0x680] sm:$0xff]
        %v2150 = vld [vmem:[%s7 + $0x688] sm:$0xff]
        %v2151 = vld [vmem:[%s7 + $0x690] sm:$0xff]
        %v2152 = vld [vmem:[%s7 + $0x698] sm:$0xff]
        %v2153 = vld [vmem:[%s7 + $0x6a0] sm:$0xff]
        %v2154 = vld [vmem:[%s7 + $0x6a8] sm:$0xff]
        %v2155 = vld [vmem:[%s7 + $0x6b0] sm:$0xff]
        %v2156 = vld [vmem:[%s7 + $0x6b8] sm:$0xff]
        %v2157 = vld [vmem:[%s7 + $0x6c0] sm:$0xff]
        %v2158 = vld [vmem:[%s7 + $0x6c8] sm:$0xff]
        %v2159 = vld [vmem:[%s7 + $0x6d0] sm:$0xff]
        %v2160 = vld [vmem:[%s7 + $0x6d8] sm:$0xff]
        %v2161 = vld [vmem:[%s7 + $0x6e0] sm:$0xff]
        %v2162 = vld [vmem:[%s7 + $0x6e8] sm:$0xff]
        %v2163 = vld [vmem:[%s7 + $0x6f0] sm:$0xff]
        %v2164 = vld [vmem:[%s7 + $0x6f8] sm:$0xff]
        %v2165 = vld [vmem:[%s7 + $0x700] sm:$0xff]
        %v2166 = vld [vmem:[%s7 + $0x708] sm:$0xff]
        %v2167 = vld [vmem:[%s7 + $0x710] sm:$0xff]
        %v2168 = vld [vmem:[%s7 + $0x718] sm:$0xff]
        %v2169 = vld [vmem:[%s7 + $0x720] sm:$0xff]
        %v2170 = vld [vmem:[%s7 + $0x728] sm:$0xff]
        %v2171 = vld [vmem:[%s7 + $0x730] sm:$0xff]
        %v2172 = vld [vmem:[%s7 + $0x738] sm:$0xff]
        %v2173 = vld [vmem:[%s7 + $0x740] sm:$0xff]
        %v2174 = vld [vmem:[%s7 + $0x748] sm:$0xff]
        %v2175 = vld [vmem:[%s7 + $0x750] sm:$0xff]
        %v2176 = vld [vmem:[%s7 + $0x758] sm:$0xff]
        %v2177 = vld [vmem:[%s7 + $0x760] sm:$0xff]
        %v2178 = vld [vmem:[%s7 + $0x768] sm:$0xff]
        %v2179 = vld [vmem:[%s7 + $0x770] sm:$0xff]
        %v2180 = vld [vmem:[%s7 + $0x778] sm:$0xff]
        %v2181 = vld [vmem:[%s7 + $0x780] sm:$0xff]
        %v2182 = vld [vmem:[%s7 + $0x788] sm:$0xff]
        %v2183 = vld [vmem:[%s7 + $0x790] sm:$0xff]
        %v2184 = vld [vmem:[%s7 + $0x798] sm:$0xff]
        %v2185 = vld [vmem:[%s7 + $0x7a0] sm:$0xff]
        %v2186 = vld [vmem:[%s7 + $0x7a8] sm:$0xff]
        %v2187 = vld [vmem:[%s7 + $0x7b0] sm:$0xff]
        %v2188 = vld [vmem:[%s7 + $0x7b8] sm:$0xff]
        %v2189 = vld [vmem:[%s7 + $0x7c0] sm:$0xff]
        %v2190 = vld [vmem:[%s7 + $0x7c8] sm:$0xff]
        %v2191 = vld [vmem:[%s7 + $0x7d0] sm:$0xff]
        %v2192 = vld [vmem:[%s7 + $0x7d8] sm:$0xff]
        %v2193 = vld [vmem:[%s7 + $0x7e0] sm:$0xff]
        %v2194 = vld [vmem:[%s7 + $0x7e8] sm:$0xff]
        %v2195 = vld [vmem:[%s7 + $0x7f0] sm:$0xff]
        %v2196 = vld [vmem:[%s7 + $0x7f8] sm:$0xff]
        %v2197 = vld [vmem:[%s7 + $0x800] sm:$0xff]
        %v2198 = vld [vmem:[%s7 + $0x808] sm:$0xff]
        %v2199 = vld [vmem:[%s7 + $0x810] sm:$0xff]
        %v2200 = vld [vmem:[%s7 + $0x818] sm:$0xff]
        %v2201 = vld [vmem:[%s7 + $0x820] sm:$0xff]
        %v2202 = vld [vmem:[%s7 + $0x828] sm:$0xff]
        %v2203 = vld [vmem:[%s7 + $0x830] sm:$0xff]
        %v2204 = vld [vmem:[%s7 + $0x838] sm:$0xff]
        %v2205 = vld [vmem:[%s7 + $0x840] sm:$0xff]
        %v2206 = vld [vmem:[%s7 + $0x848] sm:$0xff]
        %v2207 = vld [vmem:[%s7 + $0x850] sm:$0xff]
        %v2208 = vld [vmem:[%s7 + $0x858] sm:$0xff]
        %v2209 = vld [vmem:[%s7 + $0x860] sm:$0xff]
        %v2210 = vld [vmem:[%s7 + $0x868] sm:$0xff]
        %v2211 = vld [vmem:[%s7 + $0x870] sm:$0xff]
        %v2212 = vld [vmem:[%s7 + $0x878] sm:$0xff]
        %v2213 = vld [vmem:[%s7 + $0x880] sm:$0xff]
        %v2214 = vld [vmem:[%s7 + $0x888] sm:$0xff]
        %v2215 = vld [vmem:[%s7 + $0x890] sm:$0xff]
        %v2216 = vld [vmem:[%s7 + $0x898] sm:$0xff]
        %v2217 = vld [vmem:[%s7 + $0x8a0] sm:$0xff]
        %v2218 = vld [vmem:[%s7 + $0x8a8] sm:$0xff]
        %v2219 = vld [vmem:[%s7 + $0x8b0] sm:$0xff]
        %v2220 = vld [vmem:[%s7 + $0x8b8] sm:$0xff]
        %v2221 = vld [vmem:[%s7 + $0x8c0] sm:$0xff]
        %v2222 = vld [vmem:[%s7 + $0x8c8] sm:$0xff]
        %v2223 = vld [vmem:[%s7 + $0x8d0] sm:$0xff]
        %v2224 = vld [vmem:[%s7 + $0x8d8] sm:$0xff]
        %v2225 = vld [vmem:[%s7 + $0x8e0] sm:$0xff]
        %v2226 = vld [vmem:[%s7 + $0x8e8] sm:$0xff]
        %v2227 = vld [vmem:[%s7 + $0x8f0] sm:$0xff]
        %v2228 = vld [vmem:[%s7 + $0x8f8] sm:$0xff]
        %v2229 = vld [vmem:[%s7 + $0x900] sm:$0xff]
        %v2230 = vld [vmem:[%s7 + $0x908] sm:$0xff]
        %v2231 = vld [vmem:[%s7 + $0x910] sm:$0xff]
        %v2232 = vld [vmem:[%s7 + $0x918] sm:$0xff]
        %v2233 = vld [vmem:[%s7 + $0x920] sm:$0xff]
        %v2234 = vld [vmem:[%s7 + $0x928] sm:$0xff]
        %v2235 = vld [vmem:[%s7 + $0x930] sm:$0xff]
        %v2236 = vld [vmem:[%s7 + $0x938] sm:$0xff]
        %v2237 = vld [vmem:[%s7 + $0x940] sm:$0xff]
        %v2238 = vld [vmem:[%s7 + $0x948] sm:$0xff]
        %v2239 = vld [vmem:[%s7 + $0x950] sm:$0xff]
        %v2240 = vld [vmem:[%s7 + $0x958] sm:$0xff]
        %v2241 = vld [vmem:[%s7 + $0x960] sm:$0xff]
        %v2242 = vld [vmem:[%s7 + $0x968] sm:$0xff]
        %v2243 = vld [vmem:[%s7 + $0x970] sm:$0xff]
        %v2244 = vld [vmem:[%s7 + $0x978] sm:$0xff]
        %v2245 = vld [vmem:[%s7 + $0x980] sm:$0xff]
        %v2246 = vld [vmem:[%s7 + $0x988] sm:$0xff]
        %v2247 = vld [vmem:[%s7 + $0x990] sm:$0xff]
        %v2248 = vld [vmem:[%s7 + $0x998] sm:$0xff]
        %v2249 = vld [vmem:[%s7 + $0x9a0] sm:$0xff]
        %v2250 = vld [vmem:[%s7 + $0x9a8] sm:$0xff]
        %v2251 = vld [vmem:[%s7 + $0x9b0] sm:$0xff]
        %v2252 = vld [vmem:[%s7 + $0x9b8] sm:$0xff]
        %v2253 = vld [vmem:[%s7 + $0x9c0] sm:$0xff]
        %v2254 = vld [vmem:[%s7 + $0x9c8] sm:$0xff]
        %v2255 = vld [vmem:[%s7 + $0x9d0] sm:$0xff]
        %v2256 = vld [vmem:[%s7 + $0x9d8] sm:$0xff]
        %v2257 = vld [vmem:[%s7 + $0x9e0] sm:$0xff]
        %v2258 = vld [vmem:[%s7 + $0x9e8] sm:$0xff]
        %v2259 = vld [vmem:[%s7 + $0x9f0] sm:$0xff]
        %v2260 = vld [vmem:[%s7 + $0x9f8] sm:$0xff]
        %v2261 = vld [vmem:[%s7 + $0xa00] sm:$0xff]
        %v2262 = vld [vmem:[%s7 + $0xa08] sm:$0xff]
        %v2263 = vld [vmem:[%s7 + $0xa10] sm:$0xff]
        %v2264 = vld [vmem:[%s7 + $0xa18] sm:$0xff]
        %v2265 = vld [vmem:[%s7 + $0xa20] sm:$0xff]
        %v2266 = vld [vmem:[%s7 + $0xa28] sm:$0xff]
        %v2267 = vld [vmem:[%s7 + $0xa30] sm:$0xff]
        %v2268 = vld [vmem:[%s7 + $0xa38] sm:$0xff]
        %v2269 = vld [vmem:[%s7 + $0xa40] sm:$0xff]
        %v2270 = vld [vmem:[%s7 + $0xa48] sm:$0xff]
        %v2271 = vld [vmem:[%s7 + $0xa50] sm:$0xff]
        %v2272 = vld [vmem:[%s7 + $0xa58] sm:$0xff]
        %v2273 = vld [vmem:[%s7 + $0xa60] sm:$0xff]
        %v2274 = vld [vmem:[%s7 + $0xa68] sm:$0xff]
        %v2275 = vld [vmem:[%s7 + $0xa70] sm:$0xff]
        %v2276 = vld [vmem:[%s7 + $0xa78] sm:$0xff]
        %v2277 = vld [vmem:[%s7 + $0xa80] sm:$0xff]
        %v2278 = vld [vmem:[%s7 + $0xa88] sm:$0xff]
        %v2279 = vld [vmem:[%s7 + $0xa90] sm:$0xff]
        %v2280 = vld [vmem:[%s7 + $0xa98] sm:$0xff]
        %v2281 = vld [vmem:[%s7 + $0xaa0] sm:$0xff]
        %v2282 = vld [vmem:[%s7 + $0xaa8] sm:$0xff]
        %v2283 = vld [vmem:[%s7 + $0xab0] sm:$0xff]
        %v2284 = vld [vmem:[%s7 + $0xab8] sm:$0xff]
        %v2285 = vld [vmem:[%s7 + $0xac0] sm:$0xff]
        %v2286 = vld [vmem:[%s7 + $0xac8] sm:$0xff]
        %v2287 = vld [vmem:[%s7 + $0xad0] sm:$0xff]
        %v2288 = vld [vmem:[%s7 + $0xad8] sm:$0xff]
        %v2289 = vld [vmem:[%s7 + $0xae0] sm:$0xff]
        %v2290 = vld [vmem:[%s7 + $0xae8] sm:$0xff]
        %v2291 = vld [vmem:[%s7 + $0xaf0] sm:$0xff]
        %v2292 = vld [vmem:[%s7 + $0xaf8] sm:$0xff]
        %v2293 = vld [vmem:[%s7 + $0xb00] sm:$0xff]
        %v2294 = vld [vmem:[%s7 + $0xb08] sm:$0xff]
        %v2295 = vld [vmem:[%s7 + $0xb10] sm:$0xff]
        %v2296 = vld [vmem:[%s7 + $0xb18] sm:$0xff]
        %v2297 = vld [vmem:[%s7 + $0xb20] sm:$0xff]
        %v2298 = vld [vmem:[%s7 + $0xb28] sm:$0xff]
        %v2299 = vld [vmem:[%s7 + $0xb30] sm:$0xff]
        %v2300 = vld [vmem:[%s7 + $0xb38] sm:$0xff]
        %v2301 = vld [vmem:[%s7 + $0xb40] sm:$0xff]
        %v2302 = vld [vmem:[%s7 + $0xb48] sm:$0xff]
        %v2303 = vld [vmem:[%s7 + $0xb50] sm:$0xff]
        %v2304 = vld [vmem:[%s7 + $0xb58] sm:$0xff]
        %v2305 = vld [vmem:[%s7 + $0xb60] sm:$0xff]
        %v2306 = vld [vmem:[%s7 + $0xb68] sm:$0xff]
        %v2307 = vld [vmem:[%s7 + $0xb70] sm:$0xff]
        %v2308 = vld [vmem:[%s7 + $0xb78] sm:$0xff]
        %v2309 = vld [vmem:[%s7 + $0xb80] sm:$0xff]
        %v2310 = vld [vmem:[%s7 + $0xb88] sm:$0xff]
        %v2311 = vld [vmem:[%s7 + $0xb90] sm:$0xff]
        %v2312 = vld [vmem:[%s7 + $0xb98] sm:$0xff]
        %v2313 = vld [vmem:[%s7 + $0xba0] sm:$0xff]
        %v2314 = vld [vmem:[%s7 + $0xba8] sm:$0xff]
        %v2315 = vld [vmem:[%s7 + $0xbb0] sm:$0xff]
        %v2316 = vld [vmem:[%s7 + $0xbb8] sm:$0xff]
        %v2317 = vld [vmem:[%s7 + $0xbc0] sm:$0xff]
        %v2318 = vld [vmem:[%s7 + $0xbc8] sm:$0xff]
        %v2319 = vld [vmem:[%s7 + $0xbd0] sm:$0xff]
        %v2320 = vld [vmem:[%s7 + $0xbd8] sm:$0xff]
        %v2321 = vld [vmem:[%s7 + $0xbe0] sm:$0xff]
        %v2322 = vld [vmem:[%s7 + $0xbe8] sm:$0xff]
        %v2323 = vld [vmem:[%s7 + $0xbf0] sm:$0xff]
        %v2324 = vld [vmem:[%s7 + $0xbf8] sm:$0xff]
        %v2325 = vld [vmem:[%s7 + $0xc00] sm:$0xff]
        %v2326 = vld [vmem:[%s7 + $0xc08] sm:$0xff]
        %v2327 = vld [vmem:[%s7 + $0xc10] sm:$0xff]
        %v2328 = vld [vmem:[%s7 + $0xc18] sm:$0xff]
        %v2329 = vld [vmem:[%s7 + $0xc20] sm:$0xff]
        %v2330 = vld [vmem:[%s7 + $0xc28] sm:$0xff]
        %v2331 = vld [vmem:[%s7 + $0xc30] sm:$0xff]
        %v2332 = vld [vmem:[%s7 + $0xc38] sm:$0xff]
        %v2333 = vld [vmem:[%s7 + $0xc40] sm:$0xff]
        %v2334 = vld [vmem:[%s7 + $0xc48] sm:$0xff]
        %v2335 = vld [vmem:[%s7 + $0xc50] sm:$0xff]
        %v2336 = vld [vmem:[%s7 + $0xc58] sm:$0xff]
        %v2337 = vld [vmem:[%s7 + $0xc60] sm:$0xff]
        %v2338 = vld [vmem:[%s7 + $0xc68] sm:$0xff]
        %v2339 = vld [vmem:[%s7 + $0xc70] sm:$0xff]
        %v2340 = vld [vmem:[%s7 + $0xc78] sm:$0xff]
        %v2341 = vld [vmem:[%s7 + $0xc80] sm:$0xff]
        %v2342 = vld [vmem:[%s7 + $0xc88] sm:$0xff]
        %v2343 = vld [vmem:[%s7 + $0xc90] sm:$0xff]
        %v2344 = vld [vmem:[%s7 + $0xc98] sm:$0xff]
        %v2345 = vld [vmem:[%s7 + $0xca0] sm:$0xff]
        %v2346 = vld [vmem:[%s7 + $0xca8] sm:$0xff]
        %v2347 = vld [vmem:[%s7 + $0xcb0] sm:$0xff]
        %v2348 = vld [vmem:[%s7 + $0xcb8] sm:$0xff]
        %v2349 = vld [vmem:[%s7 + $0xcc0] sm:$0xff]
        %v2350 = vld [vmem:[%s7 + $0xcc8] sm:$0xff]
        %v2351 = vld [vmem:[%s7 + $0xcd0] sm:$0xff]
        %v2352 = vld [vmem:[%s7 + $0xcd8] sm:$0xff]
        %v2353 = vld [vmem:[%s7 + $0xce0] sm:$0xff]
        %v2354 = vld [vmem:[%s7 + $0xce8] sm:$0xff]
        %v2355 = vld [vmem:[%s7 + $0xcf0] sm:$0xff]
        %v2356 = vld [vmem:[%s7 + $0xcf8] sm:$0xff]
        %v2357 = vld [vmem:[%s7 + $0xd00] sm:$0xff]
        %v2358 = vld [vmem:[%s7 + $0xd08] sm:$0xff]
        %v2359 = vld [vmem:[%s7 + $0xd10] sm:$0xff]
        %v2360 = vld [vmem:[%s7 + $0xd18] sm:$0xff]
        %v2361 = vld [vmem:[%s7 + $0xd20] sm:$0xff]
        %v2362 = vld [vmem:[%s7 + $0xd28] sm:$0xff]
        %v2363 = vld [vmem:[%s7 + $0xd30] sm:$0xff]
        %v2364 = vld [vmem:[%s7 + $0xd38] sm:$0xff]
        %v2365 = vld [vmem:[%s7 + $0xd40] sm:$0xff]
        %v2366 = vld [vmem:[%s7 + $0xd48] sm:$0xff]
        %v2367 = vld [vmem:[%s7 + $0xd50] sm:$0xff]
        %v2368 = vld [vmem:[%s7 + $0xd58] sm:$0xff]
        %v2369 = vld [vmem:[%s7 + $0xd60] sm:$0xff]
        %v2370 = vld [vmem:[%s7 + $0xd68] sm:$0xff]
        %v2371 = vld [vmem:[%s7 + $0xd70] sm:$0xff]
        %v2372 = vld [vmem:[%s7 + $0xd78] sm:$0xff]
        %v2373 = vld [vmem:[%s7 + $0xd80] sm:$0xff]
        %v2374 = vld [vmem:[%s7 + $0xd88] sm:$0xff]
        %v2375 = vld [vmem:[%s7 + $0xd90] sm:$0xff]
        %v2376 = vld [vmem:[%s7 + $0xd98] sm:$0xff]
        %v2377 = vld [vmem:[%s7 + $0xda0] sm:$0xff]
        %v2378 = vld [vmem:[%s7 + $0xda8] sm:$0xff]
        %v2379 = vld [vmem:[%s7 + $0xdb0] sm:$0xff]
        %v2380 = vld [vmem:[%s7 + $0xdb8] sm:$0xff]
        %v2381 = vld [vmem:[%s7 + $0xdc0] sm:$0xff]
        %v2382 = vld [vmem:[%s7 + $0xdc8] sm:$0xff]
        %v2383 = vld [vmem:[%s7 + $0xdd0] sm:$0xff]
        %v2384 = vld [vmem:[%s7 + $0xdd8] sm:$0xff]
        %v2385 = vld [vmem:[%s7 + $0xde0] sm:$0xff]
        %v2386 = vld [vmem:[%s7 + $0xde8] sm:$0xff]
        %v2387 = vld [vmem:[%s7 + $0xdf0] sm:$0xff]
        %v2388 = vld [vmem:[%s7 + $0xdf8] sm:$0xff]
        %v2389 = vld [vmem:[%s7 + $0xe00] sm:$0xff]
        %v2390 = vld [vmem:[%s7 + $0xe08] sm:$0xff]
        %v2391 = vld [vmem:[%s7 + $0xe10] sm:$0xff]
        %v2392 = vld [vmem:[%s7 + $0xe18] sm:$0xff]
        %v2393 = vld [vmem:[%s7 + $0xe20] sm:$0xff]
        %v2394 = vld [vmem:[%s7 + $0xe28] sm:$0xff]
        %v2395 = vld [vmem:[%s7 + $0xe30] sm:$0xff]
        %v2396 = vld [vmem:[%s7 + $0xe38] sm:$0xff]
        %v2397 = vld [vmem:[%s7 + $0xe40] sm:$0xff]
        %v2398 = vld [vmem:[%s7 + $0xe48] sm:$0xff]
        %v2399 = vld [vmem:[%s7 + $0xe50] sm:$0xff]
        %v2400 = vld [vmem:[%s7 + $0xe58] sm:$0xff]
        %v2401 = vld [vmem:[%s7 + $0xe60] sm:$0xff]
        %v2402 = vld [vmem:[%s7 + $0xe68] sm:$0xff]
        %v2403 = vld [vmem:[%s7 + $0xe70] sm:$0xff]
        %v2404 = vld [vmem:[%s7 + $0xe78] sm:$0xff]
        %v2405 = vld [vmem:[%s7 + $0xe80] sm:$0xff]
        %v2406 = vld [vmem:[%s7 + $0xe88] sm:$0xff]
        %v2407 = vld [vmem:[%s7 + $0xe90] sm:$0xff]
        %v2408 = vld [vmem:[%s7 + $0xe98] sm:$0xff]
        %v2409 = vld [vmem:[%s7 + $0xea0] sm:$0xff]
        %v2410 = vld [vmem:[%s7 + $0xea8] sm:$0xff]
        %v2411 = vld [vmem:[%s7 + $0xeb0] sm:$0xff]
        %v2412 = vld [vmem:[%s7 + $0xeb8] sm:$0xff]
        %v2413 = vld [vmem:[%s7 + $0xec0] sm:$0xff]
        %v2414 = vld [vmem:[%s7 + $0xec8] sm:$0xff]
        %v2415 = vld [vmem:[%s7 + $0xed0] sm:$0xff]
        %v2416 = vld [vmem:[%s7 + $0xed8] sm:$0xff]
        %v2417 = vld [vmem:[%s7 + $0xee0] sm:$0xff]
        %v2418 = vld [vmem:[%s7 + $0xee8] sm:$0xff]
        %v2419 = vld [vmem:[%s7 + $0xef0] sm:$0xff]
        %v2420 = vld [vmem:[%s7 + $0xef8] sm:$0xff]
        %v2421 = vld [vmem:[%s7 + $0xf00] sm:$0xff]
        %v2422 = vld [vmem:[%s7 + $0xf08] sm:$0xff]
        %v2423 = vld [vmem:[%s7 + $0xf10] sm:$0xff]
        %v2424 = vld [vmem:[%s7 + $0xf18] sm:$0xff]
        %v2425 = vld [vmem:[%s7 + $0xf20] sm:$0xff]
        %v2426 = vld [vmem:[%s7 + $0xf28] sm:$0xff]
        %v2427 = vld [vmem:[%s7 + $0xf30] sm:$0xff]
        %v2428 = vld [vmem:[%s7 + $0xf38] sm:$0xff]
        %v2429 = vld [vmem:[%s7 + $0xf40] sm:$0xff]
        %v2430 = vld [vmem:[%s7 + $0xf48] sm:$0xff]
        %v2431 = vld [vmem:[%s7 + $0xf50] sm:$0xff]
        %v2432 = vld [vmem:[%s7 + $0xf58] sm:$0xff]
        %v2433 = vld [vmem:[%s7 + $0xf60] sm:$0xff]
        %v2434 = vld [vmem:[%s7 + $0xf68] sm:$0xff]
        %v2435 = vld [vmem:[%s7 + $0xf70] sm:$0xff]
        %v2436 = vld [vmem:[%s7 + $0xf78] sm:$0xff]
        %v2437 = vld [vmem:[%s7 + $0xf80] sm:$0xff]
        %v2438 = vld [vmem:[%s7 + $0xf88] sm:$0xff]
        %v2439 = vld [vmem:[%s7 + $0xf90] sm:$0xff]
        %v2440 = vld [vmem:[%s7 + $0xf98] sm:$0xff]
        %v2441 = vld [vmem:[%s7 + $0xfa0] sm:$0xff]
        %v2442 = vld [vmem:[%s7 + $0xfa8] sm:$0xff]
        %v2443 = vld [vmem:[%s7 + $0xfb0] sm:$0xff]
        %v2444 = vld [vmem:[%s7 + $0xfb8] sm:$0xff]
        %v2445 = vld [vmem:[%s8] sm:$0x7f]
        %v2447 = vlaneseq
        %v2448 = vshrl.u32 %v2447, 7
        %v2449 = vsub.s32 0, %v2448
        %v2450 = vrot.slane %v2445, %v2449
        %v2451 = vlaneseq
        %v2452 = vshrl.u32 %v2451, 7
        %v2453 = vsub.s32 1, %v2452
        %v2454 = vrot.slane %v2445, %v2453
        %v2455 = vlaneseq
        %v2456 = vshrl.u32 %v2455, 7
        %v2457 = vsub.s32 2, %v2456
        %v2458 = vrot.slane %v2445, %v2457
        %v2459 = vlaneseq
        %v2460 = vshrl.u32 %v2459, 7
        %v2461 = vsub.s32 3, %v2460
        %v2462 = vrot.slane %v2445, %v2461
        %v2463 = vlaneseq
        %v2464 = vshrl.u32 %v2463, 7
        %v2465 = vsub.s32 4, %v2464
        %v2466 = vrot.slane %v2445, %v2465
        %v2467 = vlaneseq
        %v2468 = vshrl.u32 %v2467, 7
        %v2469 = vsub.s32 5, %v2468
        %v2470 = vrot.slane %v2445, %v2469
        %v2471 = vlaneseq
        %v2472 = vshrl.u32 %v2471, 7
        %v2473 = vsub.s32 6, %v2472
        %v2474 = vrot.slane %v2445, %v2473
        %vm2482 = vcmask 523264
        %v2484 = vsel %vm2482, %v1940, 0
        %2486 = vmatprep.subr.mxu0 %v2047
        %2487 = vmatpush1.msra.mxu0 %v2046
        %2488 = vmatprep.subr.mxu0 %v2040
        %2489 = vmatpush1.msra.mxu0 %v2039
        %2490 = vmatprep.subr.mxu0 %v2033
        %2491 = vmatpush1.msra.mxu0 %v2032
        %2492 = vmatprep.subr.mxu0 %v2026
        %2493 = vmatpush1.msra.mxu0 %v2025
        %2494 = vmatprep.subr.mxu0 %v2019
        %2495 = vmatpush1.msra.mxu0 %v2018
        %2496 = vmatprep.subr.mxu0 %v2012
        %2497 = vmatpush1.msra.mxu0 %v2011
        %2498 = vmatprep.subr.mxu0 %v2005
        %2499 = vmatpush1.msra.mxu0 %v2004
        %2500 = vmatprep.subr.mxu0 %v1998
        %2501 = vmatpush1.msra.mxu0 %v1997
        %2502 = vmatprep.subr.mxu0 %v1991
        %2503 = vmatpush1.msra.mxu0 %v1990
        %2504 = vmatprep.subr.mxu0 %v1984
        %2505 = vmatpush1.msra.mxu0 %v1983
        %2506 = vmatprep.subr.mxu0 %v1977
        %2507 = vmatpush1.msra.mxu0 %v1976
        %2508 = vmatprep.subr.mxu0 %v1970
        %2509 = vmatpush1.msra.mxu0 %v1969
        %2510 = vmatprep.subr.mxu0 %v1963
        %2511 = vmatpush1.msra.mxu0 %v1962
        %2512 = vmatprep.subr.mxu0 %v1956
        %2513 = vmatpush1.msra.mxu0 %v1955
        %2514 = vmatprep.subr.mxu0 %v1949
        %2515 = vmatpush1.msra.mxu0 %v1948
        %2516 = vmatprep.subr.mxu0 %v1942
        %2517 = vmatpush1.msra.mxu0 %v1941
        %2518 = vmatprep.subr.mxu0 %v2159
        %2519 = vmatpush2.msra.mxu0 %v2158
        %2520 = vmatprep.subr.mxu0 %v2152
        %2521 = vmatpush2.msra.mxu0 %v2151
        %2522 = vmatprep.subr.mxu0 %v2145
        %2523 = vmatpush2.msra.mxu0 %v2144
        %2524 = vmatprep.subr.mxu0 %v2138
        %2525 = vmatpush2.msra.mxu0 %v2137
        %2526 = vmatprep.subr.mxu0 %v2131
        %2527 = vmatpush2.msra.mxu0 %v2130
        %2528 = vmatprep.subr.mxu0 %v2124
        %2529 = vmatpush2.msra.mxu0 %v2123
        %2530 = vmatprep.subr.mxu0 %v2117
        %2531 = vmatpush2.msra.mxu0 %v2116
        %2532 = vmatprep.subr.mxu0 %v2110
        %2533 = vmatpush2.msra.mxu0 %v2109
        %2534 = vmatprep.subr.mxu0 %v2103
        %2535 = vmatpush2.msra.mxu0 %v2102
        %2536 = vmatprep.subr.mxu0 %v2096
        %2537 = vmatpush2.msra.mxu0 %v2095
        %2538 = vmatprep.subr.mxu0 %v2089
        %2539 = vmatpush2.msra.mxu0 %v2088
        %2540 = vmatprep.subr.mxu0 %v2082
        %2541 = vmatpush2.msra.mxu0 %v2081
        %2542 = vmatprep.subr.mxu0 %v2075
        %2543 = vmatpush2.msra.mxu0 %v2074
        %2544 = vmatprep.subr.mxu0 %v2068
        %2545 = vmatpush2.msra.mxu0 %v2067
        %2546 = vmatprep.subr.mxu0 %v2061
        %2547 = vmatpush2.msra.mxu0 %v2060
        %2548 = vmatprep.subr.mxu0 %v2054
        %2549 = vmatpush2.msra.mxu0 %v2053
        %2550 = vmatprep.mubr.f32.mxu0 %v1937
        %2551 = vmatmul.mubr.f32.gmra.mxu0 %v1936
        %v2552 = vpop.f32.mrf.mxu0
        %v2553 = vadd.f32 %v2450, %v2552
        %v2554 = vpop.f32.mrf.mxu0
        %v2555 = vadd.f32 %v2454, %v2554
        %2556 = vdwg.mxu0
        %2557 = vmatprep.subr.mxu0 %v2271
        %2558 = vmatpush1.msra.mxu0 %v2270
        %2559 = vmatprep.subr.mxu0 %v2264
        %2560 = vmatpush1.msra.mxu0 %v2263
        %2561 = vmatprep.subr.mxu0 %v2257
        %2562 = vmatpush1.msra.mxu0 %v2256
        %2563 = vmatprep.subr.mxu0 %v2250
        %2564 = vmatpush1.msra.mxu0 %v2249
        %2565 = vmatprep.subr.mxu0 %v2243
        %2566 = vmatpush1.msra.mxu0 %v2242
        %2567 = vmatprep.subr.mxu0 %v2236
        %2568 = vmatpush1.msra.mxu0 %v2235
        %2569 = vmatprep.subr.mxu0 %v2229
        %2570 = vmatpush1.msra.mxu0 %v2228
        %2571 = vmatprep.subr.mxu0 %v2222
        %2572 = vmatpush1.msra.mxu0 %v2221
        %2573 = vmatprep.subr.mxu0 %v2215
        %2574 = vmatpush1.msra.mxu0 %v2214
        %2575 = vmatprep.subr.mxu0 %v2208
        %2576 = vmatpush1.msra.mxu0 %v2207
        %2577 = vmatprep.subr.mxu0 %v2201
        %2578 = vmatpush1.msra.mxu0 %v2200
        %2579 = vmatprep.subr.mxu0 %v2194
        %2580 = vmatpush1.msra.mxu0 %v2193
        %2581 = vmatprep.subr.mxu0 %v2187
        %2582 = vmatpush1.msra.mxu0 %v2186
        %2583 = vmatprep.subr.mxu0 %v2180
        %2584 = vmatpush1.msra.mxu0 %v2179
        %2585 = vmatprep.subr.mxu0 %v2173
        %2586 = vmatpush1.msra.mxu0 %v2172
        %2587 = vmatprep.subr.mxu0 %v2166
        %2588 = vmatpush1.msra.mxu0 %v2165
        %2589 = vmatprep.subr.mxu0 %v2383
        %2590 = vmatpush2.msra.mxu0 %v2382
        %2591 = vmatprep.subr.mxu0 %v2376
        %2592 = vmatpush2.msra.mxu0 %v2375
        %2593 = vmatprep.subr.mxu0 %v2369
        %2594 = vmatpush2.msra.mxu0 %v2368
        %2595 = vmatprep.subr.mxu0 %v2362
        %2596 = vmatpush2.msra.mxu0 %v2361
        %2597 = vmatprep.subr.mxu0 %v2355
        %2598 = vmatpush2.msra.mxu0 %v2354
        %2599 = vmatprep.subr.mxu0 %v2348
        %2600 = vmatpush2.msra.mxu0 %v2347
        %2601 = vmatprep.subr.mxu0 %v2341
        %2602 = vmatpush2.msra.mxu0 %v2340
        %2603 = vmatprep.subr.mxu0 %v2334
        %2604 = vmatpush2.msra.mxu0 %v2333
        %2605 = vmatprep.subr.mxu0 %v2327
        %2606 = vmatpush2.msra.mxu0 %v2326
        %2607 = vmatprep.subr.mxu0 %v2320
        %2608 = vmatpush2.msra.mxu0 %v2319
        %2609 = vmatprep.subr.mxu0 %v2313
        %2610 = vmatpush2.msra.mxu0 %v2312
        %2611 = vmatprep.subr.mxu0 %v2306
        %2612 = vmatpush2.msra.mxu0 %v2305
        %2613 = vmatprep.subr.mxu0 %v2299
        %2614 = vmatpush2.msra.mxu0 %v2298
        %2615 = vmatprep.subr.mxu0 %v2292
        %2616 = vmatpush2.msra.mxu0 %v2291
        %2617 = vmatprep.subr.mxu0 %v2285
        %2618 = vmatpush2.msra.mxu0 %v2284
        %2619 = vmatprep.subr.mxu0 %v2278
        %2620 = vmatpush2.msra.mxu0 %v2277
        %2621 = vmatprep.mubr.f32.mxu0 %v1939
        %2622 = vmatmul.mubr.f32.gmra.mxu0 %v1938
        %v2623 = vpop.f32.mrf.mxu0
        %v2624 = vadd.f32 %v2553, %v2623
        %v2625 = vpop.f32.mrf.mxu0
        %v2626 = vadd.f32 %v2555, %v2625
        %2627 = vdwg.mxu0
        %2628 = vmatprep.subr.mxu0 0.0
        %2629 = vmatpush1.msra.mxu0 0.0
        %2630 = vmatprep.subr.mxu0 0.0
        %2631 = vmatpush1.msra.mxu0 0.0
        %2632 = vmatprep.subr.mxu0 0.0
        %2633 = vmatpush1.msra.mxu0 0.0
        %2634 = vmatprep.subr.mxu0 0.0
        %2635 = vmatpush1.msra.mxu0 0.0
        %2636 = vmatprep.subr.mxu0 0.0
        %2637 = vmatpush1.msra.mxu0 0.0
        %2638 = vmatprep.subr.mxu0 0.0
        %2639 = vmatpush1.msra.mxu0 0.0
        %2640 = vmatprep.subr.mxu0 0.0
        %2641 = vmatpush1.msra.mxu0 0.0
        %2642 = vmatprep.subr.mxu0 0.0
        %2643 = vmatpush1.msra.mxu0 0.0
        %2644 = vmatprep.subr.mxu0 %v2439
        %2645 = vmatpush1.msra.mxu0 %v2438
        %2646 = vmatprep.subr.mxu0 %v2432
        %2647 = vmatpush1.msra.mxu0 %v2431
        %2648 = vmatprep.subr.mxu0 %v2425
        %2649 = vmatpush1.msra.mxu0 %v2424
        %2650 = vmatprep.subr.mxu0 %v2418
        %2651 = vmatpush1.msra.mxu0 %v2417
        %2652 = vmatprep.subr.mxu0 %v2411
        %2653 = vmatpush1.msra.mxu0 %v2410
        %2654 = vmatprep.subr.mxu0 %v2404
        %2655 = vmatpush1.msra.mxu0 %v2403
        %2656 = vmatprep.subr.mxu0 %v2397
        %2657 = vmatpush1.msra.mxu0 %v2396
        %2658 = vmatprep.subr.mxu0 %v2390
        %2659 = vmatpush1.msra.mxu0 %v2389
        %2660 = vmatprep.subr.mxu0 0.0
        %2661 = vmatpush2.msra.mxu0 0.0
        %2662 = vmatprep.subr.mxu0 0.0
        %2663 = vmatpush2.msra.mxu0 0.0
        %2664 = vmatprep.subr.mxu0 0.0
        %2665 = vmatpush2.msra.mxu0 0.0
        %2666 = vmatprep.subr.mxu0 0.0
        %2667 = vmatpush2.msra.mxu0 0.0
        %2668 = vmatprep.subr.mxu0 0.0
        %2669 = vmatpush2.msra.mxu0 0.0
        %2670 = vmatprep.subr.mxu0 0.0
        %2671 = vmatpush2.msra.mxu0 0.0
        %2672 = vmatprep.subr.mxu0 0.0
        %2673 = vmatpush2.msra.mxu0 0.0
        %2674 = vmatprep.subr.mxu0 0.0
        %2675 = vmatpush2.msra.mxu0 0.0
        %2676 = vmatprep.subr.mxu0 0.0
        %2677 = vmatpush2.msra.mxu0 0.0
        %2678 = vmatprep.subr.mxu0 0.0
        %2679 = vmatpush2.msra.mxu0 0.0
        %2680 = vmatprep.subr.mxu0 0.0
        %2681 = vmatpush2.msra.mxu0 0.0
        %2682 = vmatprep.subr.mxu0 0.0
        %2683 = vmatpush2.msra.mxu0 0.0
        %2684 = vmatprep.subr.mxu0 0.0
        %2685 = vmatpush2.msra.mxu0 0.0
        %2686 = vmatprep.subr.mxu0 0.0
        %2687 = vmatpush2.msra.mxu0 0.0
        %2688 = vmatprep.subr.mxu0 0.0
        %2689 = vmatpush2.msra.mxu0 0.0
        %2690 = vmatprep.subr.mxu0 0.0
        %2691 = vmatpush2.msra.mxu0 0.0
        %2692 = vmatprep.mubr.f32.mxu0 0.0
        %2693 = vmatmul.mubr.f32.gmra.mxu0 %v2484
        %v2694 = vpop.f32.mrf.mxu0
        %v2695 = vadd.f32 %v2624, %v2694
        %v2696 = vpop.f32.mrf.mxu0
        %v2697 = vadd.f32 %v2626, %v2696
        %2698 = vdwg.mxu0
        %2699 = vmatprep.subr.mxu0 %v2049
        %2700 = vmatpush1.msra.mxu0 %v2048
        %2701 = vmatprep.subr.mxu0 %v2042
        %2702 = vmatpush1.msra.mxu0 %v2041
        %2703 = vmatprep.subr.mxu0 %v2035
        %2704 = vmatpush1.msra.mxu0 %v2034
        %2705 = vmatprep.subr.mxu0 %v2028
        %2706 = vmatpush1.msra.mxu0 %v2027
        %2707 = vmatprep.subr.mxu0 %v2021
        %2708 = vmatpush1.msra.mxu0 %v2020
        %2709 = vmatprep.subr.mxu0 %v2014
        %2710 = vmatpush1.msra.mxu0 %v2013
        %2711 = vmatprep.subr.mxu0 %v2007
        %2712 = vmatpush1.msra.mxu0 %v2006
        %2713 = vmatprep.subr.mxu0 %v2000
        %2714 = vmatpush1.msra.mxu0 %v1999
        %2715 = vmatprep.subr.mxu0 %v1993
        %2716 = vmatpush1.msra.mxu0 %v1992
        %2717 = vmatprep.subr.mxu0 %v1986
        %2718 = vmatpush1.msra.mxu0 %v1985
        %2719 = vmatprep.subr.mxu0 %v1979
        %2720 = vmatpush1.msra.mxu0 %v1978
        %2721 = vmatprep.subr.mxu0 %v1972
        %2722 = vmatpush1.msra.mxu0 %v1971
        %2723 = vmatprep.subr.mxu0 %v1965
        %2724 = vmatpush1.msra.mxu0 %v1964
        %2725 = vmatprep.subr.mxu0 %v1958
        %2726 = vmatpush1.msra.mxu0 %v1957
        %2727 = vmatprep.subr.mxu0 %v1951
        %2728 = vmatpush1.msra.mxu0 %v1950
        %2729 = vmatprep.subr.mxu0 %v1944
        %2730 = vmatpush1.msra.mxu0 %v1943
        %2731 = vmatprep.subr.mxu0 %v2161
        %2732 = vmatpush2.msra.mxu0 %v2160
        %2733 = vmatprep.subr.mxu0 %v2154
        %2734 = vmatpush2.msra.mxu0 %v2153
        %2735 = vmatprep.subr.mxu0 %v2147
        %2736 = vmatpush2.msra.mxu0 %v2146
        %2737 = vmatprep.subr.mxu0 %v2140
        %2738 = vmatpush2.msra.mxu0 %v2139
        %2739 = vmatprep.subr.mxu0 %v2133
        %2740 = vmatpush2.msra.mxu0 %v2132
        %2741 = vmatprep.subr.mxu0 %v2126
        %2742 = vmatpush2.msra.mxu0 %v2125
        %2743 = vmatprep.subr.mxu0 %v2119
        %2744 = vmatpush2.msra.mxu0 %v2118
        %2745 = vmatprep.subr.mxu0 %v2112
        %2746 = vmatpush2.msra.mxu0 %v2111
        %2747 = vmatprep.subr.mxu0 %v2105
        %2748 = vmatpush2.msra.mxu0 %v2104
        %2749 = vmatprep.subr.mxu0 %v2098
        %2750 = vmatpush2.msra.mxu0 %v2097
        %2751 = vmatprep.subr.mxu0 %v2091
        %2752 = vmatpush2.msra.mxu0 %v2090
        %2753 = vmatprep.subr.mxu0 %v2084
        %2754 = vmatpush2.msra.mxu0 %v2083
        %2755 = vmatprep.subr.mxu0 %v2077
        %2756 = vmatpush2.msra.mxu0 %v2076
        %2757 = vmatprep.subr.mxu0 %v2070
        %2758 = vmatpush2.msra.mxu0 %v2069
        %2759 = vmatprep.subr.mxu0 %v2063
        %2760 = vmatpush2.msra.mxu0 %v2062
        %2761 = vmatprep.subr.mxu0 %v2056
        %2762 = vmatpush2.msra.mxu0 %v2055
        %2763 = vmatprep.mubr.f32.mxu0 %v1937
        %2764 = vmatmul.mubr.f32.gmra.mxu0 %v1936
        %v2765 = vpop.f32.mrf.mxu0
        %v2766 = vadd.f32 %v2458, %v2765
        %v2767 = vpop.f32.mrf.mxu0
        %v2768 = vadd.f32 %v2462, %v2767
        %2769 = vdwg.mxu0
        %2770 = vmatprep.subr.mxu0 %v2273
        %2771 = vmatpush1.msra.mxu0 %v2272
        %2772 = vmatprep.subr.mxu0 %v2266
        %2773 = vmatpush1.msra.mxu0 %v2265
        %2774 = vmatprep.subr.mxu0 %v2259
        %2775 = vmatpush1.msra.mxu0 %v2258
        %2776 = vmatprep.subr.mxu0 %v2252
        %2777 = vmatpush1.msra.mxu0 %v2251
        %2778 = vmatprep.subr.mxu0 %v2245
        %2779 = vmatpush1.msra.mxu0 %v2244
        %2780 = vmatprep.subr.mxu0 %v2238
        %2781 = vmatpush1.msra.mxu0 %v2237
        %2782 = vmatprep.subr.mxu0 %v2231
        %2783 = vmatpush1.msra.mxu0 %v2230
        %2784 = vmatprep.subr.mxu0 %v2224
        %2785 = vmatpush1.msra.mxu0 %v2223
        %2786 = vmatprep.subr.mxu0 %v2217
        %2787 = vmatpush1.msra.mxu0 %v2216
        %2788 = vmatprep.subr.mxu0 %v2210
        %2789 = vmatpush1.msra.mxu0 %v2209
        %2790 = vmatprep.subr.mxu0 %v2203
        %2791 = vmatpush1.msra.mxu0 %v2202
        %2792 = vmatprep.subr.mxu0 %v2196
        %2793 = vmatpush1.msra.mxu0 %v2195
        %2794 = vmatprep.subr.mxu0 %v2189
        %2795 = vmatpush1.msra.mxu0 %v2188
        %2796 = vmatprep.subr.mxu0 %v2182
        %2797 = vmatpush1.msra.mxu0 %v2181
        %2798 = vmatprep.subr.mxu0 %v2175
        %2799 = vmatpush1.msra.mxu0 %v2174
        %2800 = vmatprep.subr.mxu0 %v2168
        %2801 = vmatpush1.msra.mxu0 %v2167
        %2802 = vmatprep.subr.mxu0 %v2385
        %2803 = vmatpush2.msra.mxu0 %v2384
        %2804 = vmatprep.subr.mxu0 %v2378
        %2805 = vmatpush2.msra.mxu0 %v2377
        %2806 = vmatprep.subr.mxu0 %v2371
        %2807 = vmatpush2.msra.mxu0 %v2370
        %2808 = vmatprep.subr.mxu0 %v2364
        %2809 = vmatpush2.msra.mxu0 %v2363
        %2810 = vmatprep.subr.mxu0 %v2357
        %2811 = vmatpush2.msra.mxu0 %v2356
        %2812 = vmatprep.subr.mxu0 %v2350
        %2813 = vmatpush2.msra.mxu0 %v2349
        %2814 = vmatprep.subr.mxu0 %v2343
        %2815 = vmatpush2.msra.mxu0 %v2342
        %2816 = vmatprep.subr.mxu0 %v2336
        %2817 = vmatpush2.msra.mxu0 %v2335
        %2818 = vmatprep.subr.mxu0 %v2329
        %2819 = vmatpush2.msra.mxu0 %v2328
        %2820 = vmatprep.subr.mxu0 %v2322
        %2821 = vmatpush2.msra.mxu0 %v2321
        %2822 = vmatprep.subr.mxu0 %v2315
        %2823 = vmatpush2.msra.mxu0 %v2314
        %2824 = vmatprep.subr.mxu0 %v2308
        %2825 = vmatpush2.msra.mxu0 %v2307
        %2826 = vmatprep.subr.mxu0 %v2301
        %2827 = vmatpush2.msra.mxu0 %v2300
        %2828 = vmatprep.subr.mxu0 %v2294
        %2829 = vmatpush2.msra.mxu0 %v2293
        %2830 = vmatprep.subr.mxu0 %v2287
        %2831 = vmatpush2.msra.mxu0 %v2286
        %2832 = vmatprep.subr.mxu0 %v2280
        %2833 = vmatpush2.msra.mxu0 %v2279
        %2834 = vmatprep.mubr.f32.mxu0 %v1939
        %2835 = vmatmul.mubr.f32.gmra.mxu0 %v1938
        %v2836 = vpop.f32.mrf.mxu0
        %v2837 = vadd.f32 %v2766, %v2836
        %v2838 = vpop.f32.mrf.mxu0
        %v2839 = vadd.f32 %v2768, %v2838
        %2840 = vdwg.mxu0
        %2841 = vmatprep.subr.mxu0 0.0
        %2842 = vmatpush1.msra.mxu0 0.0
        %2843 = vmatprep.subr.mxu0 0.0
        %2844 = vmatpush1.msra.mxu0 0.0
        %2845 = vmatprep.subr.mxu0 0.0
        %2846 = vmatpush1.msra.mxu0 0.0
        %2847 = vmatprep.subr.mxu0 0.0
        %2848 = vmatpush1.msra.mxu0 0.0
        %2849 = vmatprep.subr.mxu0 0.0
        %2850 = vmatpush1.msra.mxu0 0.0
        %2851 = vmatprep.subr.mxu0 0.0
        %2852 = vmatpush1.msra.mxu0 0.0
        %2853 = vmatprep.subr.mxu0 0.0
        %2854 = vmatpush1.msra.mxu0 0.0
        %2855 = vmatprep.subr.mxu0 0.0
        %2856 = vmatpush1.msra.mxu0 0.0
        %2857 = vmatprep.subr.mxu0 %v2441
        %2858 = vmatpush1.msra.mxu0 %v2440
        %2859 = vmatprep.subr.mxu0 %v2434
        %2860 = vmatpush1.msra.mxu0 %v2433
        %2861 = vmatprep.subr.mxu0 %v2427
        %2862 = vmatpush1.msra.mxu0 %v2426
        %2863 = vmatprep.subr.mxu0 %v2420
        %2864 = vmatpush1.msra.mxu0 %v2419
        %2865 = vmatprep.subr.mxu0 %v2413
        %2866 = vmatpush1.msra.mxu0 %v2412
        %2867 = vmatprep.subr.mxu0 %v2406
        %2868 = vmatpush1.msra.mxu0 %v2405
        %2869 = vmatprep.subr.mxu0 %v2399
        %2870 = vmatpush1.msra.mxu0 %v2398
        %2871 = vmatprep.subr.mxu0 %v2392
        %2872 = vmatpush1.msra.mxu0 %v2391
        %2873 = vmatprep.subr.mxu0 0.0
        %2874 = vmatpush2.msra.mxu0 0.0
        %2875 = vmatprep.subr.mxu0 0.0
        %2876 = vmatpush2.msra.mxu0 0.0
        %2877 = vmatprep.subr.mxu0 0.0
        %2878 = vmatpush2.msra.mxu0 0.0
        %2879 = vmatprep.subr.mxu0 0.0
        %2880 = vmatpush2.msra.mxu0 0.0
        %2881 = vmatprep.subr.mxu0 0.0
        %2882 = vmatpush2.msra.mxu0 0.0
        %2883 = vmatprep.subr.mxu0 0.0
        %2884 = vmatpush2.msra.mxu0 0.0
        %2885 = vmatprep.subr.mxu0 0.0
        %2886 = vmatpush2.msra.mxu0 0.0
        %2887 = vmatprep.subr.mxu0 0.0
        %2888 = vmatpush2.msra.mxu0 0.0
        %2889 = vmatprep.subr.mxu0 0.0
        %2890 = vmatpush2.msra.mxu0 0.0
        %2891 = vmatprep.subr.mxu0 0.0
        %2892 = vmatpush2.msra.mxu0 0.0
        %2893 = vmatprep.subr.mxu0 0.0
        %2894 = vmatpush2.msra.mxu0 0.0
        %2895 = vmatprep.subr.mxu0 0.0
        %2896 = vmatpush2.msra.mxu0 0.0
        %2897 = vmatprep.subr.mxu0 0.0
        %2898 = vmatpush2.msra.mxu0 0.0
        %2899 = vmatprep.subr.mxu0 0.0
        %2900 = vmatpush2.msra.mxu0 0.0
        %2901 = vmatprep.subr.mxu0 0.0
        %2902 = vmatpush2.msra.mxu0 0.0
        %2903 = vmatprep.subr.mxu0 0.0
        %2904 = vmatpush2.msra.mxu0 0.0
        %2905 = vmatprep.mubr.f32.mxu0 0.0
        %2906 = vmatmul.mubr.f32.gmra.mxu0 %v2484
        %v2907 = vpop.f32.mrf.mxu0
        %v2908 = vadd.f32 %v2837, %v2907
        %v2909 = vpop.f32.mrf.mxu0
        %v2910 = vadd.f32 %v2839, %v2909
        %2911 = vdwg.mxu0
        %2912 = vmatprep.subr.mxu0 %v2051
        %2913 = vmatpush1.msra.mxu0 %v2050
        %2914 = vmatprep.subr.mxu0 %v2044
        %2915 = vmatpush1.msra.mxu0 %v2043
        %2916 = vmatprep.subr.mxu0 %v2037
        %2917 = vmatpush1.msra.mxu0 %v2036
        %2918 = vmatprep.subr.mxu0 %v2030
        %2919 = vmatpush1.msra.mxu0 %v2029
        %2920 = vmatprep.subr.mxu0 %v2023
        %2921 = vmatpush1.msra.mxu0 %v2022
        %2922 = vmatprep.subr.mxu0 %v2016
        %2923 = vmatpush1.msra.mxu0 %v2015
        %2924 = vmatprep.subr.mxu0 %v2009
        %2925 = vmatpush1.msra.mxu0 %v2008
        %2926 = vmatprep.subr.mxu0 %v2002
        %2927 = vmatpush1.msra.mxu0 %v2001
        %2928 = vmatprep.subr.mxu0 %v1995
        %2929 = vmatpush1.msra.mxu0 %v1994
        %2930 = vmatprep.subr.mxu0 %v1988
        %2931 = vmatpush1.msra.mxu0 %v1987
        %2932 = vmatprep.subr.mxu0 %v1981
        %2933 = vmatpush1.msra.mxu0 %v1980
        %2934 = vmatprep.subr.mxu0 %v1974
        %2935 = vmatpush1.msra.mxu0 %v1973
        %2936 = vmatprep.subr.mxu0 %v1967
        %2937 = vmatpush1.msra.mxu0 %v1966
        %2938 = vmatprep.subr.mxu0 %v1960
        %2939 = vmatpush1.msra.mxu0 %v1959
        %2940 = vmatprep.subr.mxu0 %v1953
        %2941 = vmatpush1.msra.mxu0 %v1952
        %2942 = vmatprep.subr.mxu0 %v1946
        %2943 = vmatpush1.msra.mxu0 %v1945
        %2944 = vmatprep.subr.mxu0 %v2163
        %2945 = vmatpush2.msra.mxu0 %v2162
        %2946 = vmatprep.subr.mxu0 %v2156
        %2947 = vmatpush2.msra.mxu0 %v2155
        %2948 = vmatprep.subr.mxu0 %v2149
        %2949 = vmatpush2.msra.mxu0 %v2148
        %2950 = vmatprep.subr.mxu0 %v2142
        %2951 = vmatpush2.msra.mxu0 %v2141
        %2952 = vmatprep.subr.mxu0 %v2135
        %2953 = vmatpush2.msra.mxu0 %v2134
        %2954 = vmatprep.subr.mxu0 %v2128
        %2955 = vmatpush2.msra.mxu0 %v2127
        %2956 = vmatprep.subr.mxu0 %v2121
        %2957 = vmatpush2.msra.mxu0 %v2120
        %2958 = vmatprep.subr.mxu0 %v2114
        %2959 = vmatpush2.msra.mxu0 %v2113
        %2960 = vmatprep.subr.mxu0 %v2107
        %2961 = vmatpush2.msra.mxu0 %v2106
        %2962 = vmatprep.subr.mxu0 %v2100
        %2963 = vmatpush2.msra.mxu0 %v2099
        %2964 = vmatprep.subr.mxu0 %v2093
        %2965 = vmatpush2.msra.mxu0 %v2092
        %2966 = vmatprep.subr.mxu0 %v2086
        %2967 = vmatpush2.msra.mxu0 %v2085
        %2968 = vmatprep.subr.mxu0 %v2079
        %2969 = vmatpush2.msra.mxu0 %v2078
        %2970 = vmatprep.subr.mxu0 %v2072
        %2971 = vmatpush2.msra.mxu0 %v2071
        %2972 = vmatprep.subr.mxu0 %v2065
        %2973 = vmatpush2.msra.mxu0 %v2064
        %2974 = vmatprep.subr.mxu0 %v2058
        %2975 = vmatpush2.msra.mxu0 %v2057
        %2976 = vmatprep.mubr.f32.mxu0 %v1937
        %2977 = vmatmul.mubr.f32.gmra.mxu0 %v1936
        %v2978 = vpop.f32.mrf.mxu0
        %v2979 = vadd.f32 %v2466, %v2978
        %v2980 = vpop.f32.mrf.mxu0
        %v2981 = vadd.f32 %v2470, %v2980
        %2982 = vdwg.mxu0
        %2983 = vmatprep.subr.mxu0 %v2275
        %2984 = vmatpush1.msra.mxu0 %v2274
        %2985 = vmatprep.subr.mxu0 %v2268
        %2986 = vmatpush1.msra.mxu0 %v2267
        %2987 = vmatprep.subr.mxu0 %v2261
        %2988 = vmatpush1.msra.mxu0 %v2260
        %2989 = vmatprep.subr.mxu0 %v2254
        %2990 = vmatpush1.msra.mxu0 %v2253
        %2991 = vmatprep.subr.mxu0 %v2247
        %2992 = vmatpush1.msra.mxu0 %v2246
        %2993 = vmatprep.subr.mxu0 %v2240
        %2994 = vmatpush1.msra.mxu0 %v2239
        %2995 = vmatprep.subr.mxu0 %v2233
        %2996 = vmatpush1.msra.mxu0 %v2232
        %2997 = vmatprep.subr.mxu0 %v2226
        %2998 = vmatpush1.msra.mxu0 %v2225
        %2999 = vmatprep.subr.mxu0 %v2219
        %3000 = vmatpush1.msra.mxu0 %v2218
        %3001 = vmatprep.subr.mxu0 %v2212
        %3002 = vmatpush1.msra.mxu0 %v2211
        %3003 = vmatprep.subr.mxu0 %v2205
        %3004 = vmatpush1.msra.mxu0 %v2204
        %3005 = vmatprep.subr.mxu0 %v2198
        %3006 = vmatpush1.msra.mxu0 %v2197
        %3007 = vmatprep.subr.mxu0 %v2191
        %3008 = vmatpush1.msra.mxu0 %v2190
        %3009 = vmatprep.subr.mxu0 %v2184
        %3010 = vmatpush1.msra.mxu0 %v2183
        %3011 = vmatprep.subr.mxu0 %v2177
        %3012 = vmatpush1.msra.mxu0 %v2176
        %3013 = vmatprep.subr.mxu0 %v2170
        %3014 = vmatpush1.msra.mxu0 %v2169
        %3015 = vmatprep.subr.mxu0 %v2387
        %3016 = vmatpush2.msra.mxu0 %v2386
        %3017 = vmatprep.subr.mxu0 %v2380
        %3018 = vmatpush2.msra.mxu0 %v2379
        %3019 = vmatprep.subr.mxu0 %v2373
        %3020 = vmatpush2.msra.mxu0 %v2372
        %3021 = vmatprep.subr.mxu0 %v2366
        %3022 = vmatpush2.msra.mxu0 %v2365
        %3023 = vmatprep.subr.mxu0 %v2359
        %3024 = vmatpush2.msra.mxu0 %v2358
        %3025 = vmatprep.subr.mxu0 %v2352
        %3026 = vmatpush2.msra.mxu0 %v2351
        %3027 = vmatprep.subr.mxu0 %v2345
        %3028 = vmatpush2.msra.mxu0 %v2344
        %3029 = vmatprep.subr.mxu0 %v2338
        %3030 = vmatpush2.msra.mxu0 %v2337
        %3031 = vmatprep.subr.mxu0 %v2331
        %3032 = vmatpush2.msra.mxu0 %v2330
        %3033 = vmatprep.subr.mxu0 %v2324
        %3034 = vmatpush2.msra.mxu0 %v2323
        %3035 = vmatprep.subr.mxu0 %v2317
        %3036 = vmatpush2.msra.mxu0 %v2316
        %3037 = vmatprep.subr.mxu0 %v2310
        %3038 = vmatpush2.msra.mxu0 %v2309
        %3039 = vmatprep.subr.mxu0 %v2303
        %3040 = vmatpush2.msra.mxu0 %v2302
        %3041 = vmatprep.subr.mxu0 %v2296
        %3042 = vmatpush2.msra.mxu0 %v2295
        %3043 = vmatprep.subr.mxu0 %v2289
        %3044 = vmatpush2.msra.mxu0 %v2288
        %3045 = vmatprep.subr.mxu0 %v2282
        %3046 = vmatpush2.msra.mxu0 %v2281
        %3047 = vmatprep.mubr.f32.mxu0 %v1939
        %3048 = vmatmul.mubr.f32.gmra.mxu0 %v1938
        %v3049 = vpop.f32.mrf.mxu0
        %v3050 = vadd.f32 %v2979, %v3049
        %v3051 = vpop.f32.mrf.mxu0
        %v3052 = vadd.f32 %v2981, %v3051
        %3053 = vdwg.mxu0
        %3054 = vmatprep.subr.mxu0 0.0
        %3055 = vmatpush1.msra.mxu0 0.0
        %3056 = vmatprep.subr.mxu0 0.0
        %3057 = vmatpush1.msra.mxu0 0.0
        %3058 = vmatprep.subr.mxu0 0.0
        %3059 = vmatpush1.msra.mxu0 0.0
        %3060 = vmatprep.subr.mxu0 0.0
        %3061 = vmatpush1.msra.mxu0 0.0
        %3062 = vmatprep.subr.mxu0 0.0
        %3063 = vmatpush1.msra.mxu0 0.0
        %3064 = vmatprep.subr.mxu0 0.0
        %3065 = vmatpush1.msra.mxu0 0.0
        %3066 = vmatprep.subr.mxu0 0.0
        %3067 = vmatpush1.msra.mxu0 0.0
        %3068 = vmatprep.subr.mxu0 0.0
        %3069 = vmatpush1.msra.mxu0 0.0
        %3070 = vmatprep.subr.mxu0 %v2443
        %3071 = vmatpush1.msra.mxu0 %v2442
        %3072 = vmatprep.subr.mxu0 %v2436
        %3073 = vmatpush1.msra.mxu0 %v2435
        %3074 = vmatprep.subr.mxu0 %v2429
        %3075 = vmatpush1.msra.mxu0 %v2428
        %3076 = vmatprep.subr.mxu0 %v2422
        %3077 = vmatpush1.msra.mxu0 %v2421
        %3078 = vmatprep.subr.mxu0 %v2415
        %3079 = vmatpush1.msra.mxu0 %v2414
        %3080 = vmatprep.subr.mxu0 %v2408
        %3081 = vmatpush1.msra.mxu0 %v2407
        %3082 = vmatprep.subr.mxu0 %v2401
        %3083 = vmatpush1.msra.mxu0 %v2400
        %3084 = vmatprep.subr.mxu0 %v2394
        %3085 = vmatpush1.msra.mxu0 %v2393
        %3086 = vmatprep.subr.mxu0 0.0
        %3087 = vmatpush2.msra.mxu0 0.0
        %3088 = vmatprep.subr.mxu0 0.0
        %3089 = vmatpush2.msra.mxu0 0.0
        %3090 = vmatprep.subr.mxu0 0.0
        %3091 = vmatpush2.msra.mxu0 0.0
        %3092 = vmatprep.subr.mxu0 0.0
        %3093 = vmatpush2.msra.mxu0 0.0
        %3094 = vmatprep.subr.mxu0 0.0
        %3095 = vmatpush2.msra.mxu0 0.0
        %3096 = vmatprep.subr.mxu0 0.0
        %3097 = vmatpush2.msra.mxu0 0.0
        %3098 = vmatprep.subr.mxu0 0.0
        %3099 = vmatpush2.msra.mxu0 0.0
        %3100 = vmatprep.subr.mxu0 0.0
        %3101 = vmatpush2.msra.mxu0 0.0
        %3102 = vmatprep.subr.mxu0 0.0
        %3103 = vmatpush2.msra.mxu0 0.0
        %3104 = vmatprep.subr.mxu0 0.0
        %3105 = vmatpush2.msra.mxu0 0.0
        %3106 = vmatprep.subr.mxu0 0.0
        %3107 = vmatpush2.msra.mxu0 0.0
        %3108 = vmatprep.subr.mxu0 0.0
        %3109 = vmatpush2.msra.mxu0 0.0
        %3110 = vmatprep.subr.mxu0 0.0
        %3111 = vmatpush2.msra.mxu0 0.0
        %3112 = vmatprep.subr.mxu0 0.0
        %3113 = vmatpush2.msra.mxu0 0.0
        %3114 = vmatprep.subr.mxu0 0.0
        %3115 = vmatpush2.msra.mxu0 0.0
        %3116 = vmatprep.subr.mxu0 0.0
        %3117 = vmatpush2.msra.mxu0 0.0
        %3118 = vmatprep.mubr.f32.mxu0 0.0
        %3119 = vmatmul.mubr.f32.gmra.mxu0 %v2484
        %v3120 = vpop.f32.mrf.mxu0
        %v3121 = vadd.f32 %v3050, %v3120
        %v3122 = vpop.f32.mrf.mxu0
        %v3123 = vadd.f32 %v3052, %v3122
        %3124 = vdwg.mxu0
        %3125 = vmatprep.subr.mxu0 0.0
        %3126 = vmatpush1.msra.mxu0 %v2052
        %3127 = vmatprep.subr.mxu0 0.0
        %3128 = vmatpush1.msra.mxu0 %v2045
        %3129 = vmatprep.subr.mxu0 0.0
        %3130 = vmatpush1.msra.mxu0 %v2038
        %3131 = vmatprep.subr.mxu0 0.0
        %3132 = vmatpush1.msra.mxu0 %v2031
        %3133 = vmatprep.subr.mxu0 0.0
        %3134 = vmatpush1.msra.mxu0 %v2024
        %3135 = vmatprep.subr.mxu0 0.0
        %3136 = vmatpush1.msra.mxu0 %v2017
        %3137 = vmatprep.subr.mxu0 0.0
        %3138 = vmatpush1.msra.mxu0 %v2010
        %3139 = vmatprep.subr.mxu0 0.0
        %3140 = vmatpush1.msra.mxu0 %v2003
        %3141 = vmatprep.subr.mxu0 0.0
        %3142 = vmatpush1.msra.mxu0 %v1996
        %3143 = vmatprep.subr.mxu0 0.0
        %3144 = vmatpush1.msra.mxu0 %v1989
        %3145 = vmatprep.subr.mxu0 0.0
        %3146 = vmatpush1.msra.mxu0 %v1982
        %3147 = vmatprep.subr.mxu0 0.0
        %3148 = vmatpush1.msra.mxu0 %v1975
        %3149 = vmatprep.subr.mxu0 0.0
        %3150 = vmatpush1.msra.mxu0 %v1968
        %3151 = vmatprep.subr.mxu0 0.0
        %3152 = vmatpush1.msra.mxu0 %v1961
        %3153 = vmatprep.subr.mxu0 0.0
        %3154 = vmatpush1.msra.mxu0 %v1954
        %3155 = vmatprep.subr.mxu0 0.0
        %3156 = vmatpush1.msra.mxu0 %v1947
        %3157 = vmatprep.subr.mxu0 0.0
        %3158 = vmatpush2.msra.mxu0 %v2164
        %3159 = vmatprep.subr.mxu0 0.0
        %3160 = vmatpush2.msra.mxu0 %v2157
        %3161 = vmatprep.subr.mxu0 0.0
        %3162 = vmatpush2.msra.mxu0 %v2150
        %3163 = vmatprep.subr.mxu0 0.0
        %3164 = vmatpush2.msra.mxu0 %v2143
        %3165 = vmatprep.subr.mxu0 0.0
        %3166 = vmatpush2.msra.mxu0 %v2136
        %3167 = vmatprep.subr.mxu0 0.0
        %3168 = vmatpush2.msra.mxu0 %v2129
        %3169 = vmatprep.subr.mxu0 0.0
        %3170 = vmatpush2.msra.mxu0 %v2122
        %3171 = vmatprep.subr.mxu0 0.0
        %3172 = vmatpush2.msra.mxu0 %v2115
        %3173 = vmatprep.subr.mxu0 0.0
        %3174 = vmatpush2.msra.mxu0 %v2108
        %3175 = vmatprep.subr.mxu0 0.0
        %3176 = vmatpush2.msra.mxu0 %v2101
        %3177 = vmatprep.subr.mxu0 0.0
        %3178 = vmatpush2.msra.mxu0 %v2094
        %3179 = vmatprep.subr.mxu0 0.0
        %3180 = vmatpush2.msra.mxu0 %v2087
        %3181 = vmatprep.subr.mxu0 0.0
        %3182 = vmatpush2.msra.mxu0 %v2080
        %3183 = vmatprep.subr.mxu0 0.0
        %3184 = vmatpush2.msra.mxu0 %v2073
        %3185 = vmatprep.subr.mxu0 0.0
        %3186 = vmatpush2.msra.mxu0 %v2066
        %3187 = vmatprep.subr.mxu0 0.0
        %3188 = vmatpush2.msra.mxu0 %v2059
        %3189 = vmatprep.mubr.f32.mxu0 %v1937
        %3190 = vmatmul.mubr.f32.gmra.mxu0 %v1936
        %v3191 = vpop.f32.mrf.mxu0
        %v3192 = vadd.f32 %v2474, %v3191
        %v3193 = vpop.f32.mrf.mxu0
        %3194 = vdwg.mxu0
        %3195 = vmatprep.subr.mxu0 0.0
        %3196 = vmatpush1.msra.mxu0 %v2276
        %3197 = vmatprep.subr.mxu0 0.0
        %3198 = vmatpush1.msra.mxu0 %v2269
        %3199 = vmatprep.subr.mxu0 0.0
        %3200 = vmatpush1.msra.mxu0 %v2262
        %3201 = vmatprep.subr.mxu0 0.0
        %3202 = vmatpush1.msra.mxu0 %v2255
        %3203 = vmatprep.subr.mxu0 0.0
        %3204 = vmatpush1.msra.mxu0 %v2248
        %3205 = vmatprep.subr.mxu0 0.0
        %3206 = vmatpush1.msra.mxu0 %v2241
        %3207 = vmatprep.subr.mxu0 0.0
        %3208 = vmatpush1.msra.mxu0 %v2234
        %3209 = vmatprep.subr.mxu0 0.0
        %3210 = vmatpush1.msra.mxu0 %v2227
        %3211 = vmatprep.subr.mxu0 0.0
        %3212 = vmatpush1.msra.mxu0 %v2220
        %3213 = vmatprep.subr.mxu0 0.0
        %3214 = vmatpush1.msra.mxu0 %v2213
        %3215 = vmatprep.subr.mxu0 0.0
        %3216 = vmatpush1.msra.mxu0 %v2206
        %3217 = vmatprep.subr.mxu0 0.0
        %3218 = vmatpush1.msra.mxu0 %v2199
        %3219 = vmatprep.subr.mxu0 0.0
        %3220 = vmatpush1.msra.mxu0 %v2192
        %3221 = vmatprep.subr.mxu0 0.0
        %3222 = vmatpush1.msra.mxu0 %v2185
        %3223 = vmatprep.subr.mxu0 0.0
        %3224 = vmatpush1.msra.mxu0 %v2178
        %3225 = vmatprep.subr.mxu0 0.0
        %3226 = vmatpush1.msra.mxu0 %v2171
        %3227 = vmatprep.subr.mxu0 0.0
        %3228 = vmatpush2.msra.mxu0 %v2388
        %3229 = vmatprep.subr.mxu0 0.0
        %3230 = vmatpush2.msra.mxu0 %v2381
        %3231 = vmatprep.subr.mxu0 0.0
        %3232 = vmatpush2.msra.mxu0 %v2374
        %3233 = vmatprep.subr.mxu0 0.0
        %3234 = vmatpush2.msra.mxu0 %v2367
        %3235 = vmatprep.subr.mxu0 0.0
        %3236 = vmatpush2.msra.mxu0 %v2360
        %3237 = vmatprep.subr.mxu0 0.0
        %3238 = vmatpush2.msra.mxu0 %v2353
        %3239 = vmatprep.subr.mxu0 0.0
        %3240 = vmatpush2.msra.mxu0 %v2346
        %3241 = vmatprep.subr.mxu0 0.0
        %3242 = vmatpush2.msra.mxu0 %v2339
        %3243 = vmatprep.subr.mxu0 0.0
        %3244 = vmatpush2.msra.mxu0 %v2332
        %3245 = vmatprep.subr.mxu0 0.0
        %3246 = vmatpush2.msra.mxu0 %v2325
        %3247 = vmatprep.subr.mxu0 0.0
        %3248 = vmatpush2.msra.mxu0 %v2318
        %3249 = vmatprep.subr.mxu0 0.0
        %3250 = vmatpush2.msra.mxu0 %v2311
        %3251 = vmatprep.subr.mxu0 0.0
        %3252 = vmatpush2.msra.mxu0 %v2304
        %3253 = vmatprep.subr.mxu0 0.0
        %3254 = vmatpush2.msra.mxu0 %v2297
        %3255 = vmatprep.subr.mxu0 0.0
        %3256 = vmatpush2.msra.mxu0 %v2290
        %3257 = vmatprep.subr.mxu0 0.0
        %3258 = vmatpush2.msra.mxu0 %v2283
        %3259 = vmatprep.mubr.f32.mxu0 %v1939
        %3260 = vmatmul.mubr.f32.gmra.mxu0 %v1938
        %v3261 = vpop.f32.mrf.mxu0
        %v3262 = vadd.f32 %v3192, %v3261
        %v3263 = vpop.f32.mrf.mxu0
        %3264 = vdwg.mxu0
        %3265 = vmatprep.subr.mxu0 0.0
        %3266 = vmatpush1.msra.mxu0 0.0
        %3267 = vmatprep.subr.mxu0 0.0
        %3268 = vmatpush1.msra.mxu0 0.0
        %3269 = vmatprep.subr.mxu0 0.0
        %3270 = vmatpush1.msra.mxu0 0.0
        %3271 = vmatprep.subr.mxu0 0.0
        %3272 = vmatpush1.msra.mxu0 0.0
        %3273 = vmatprep.subr.mxu0 0.0
        %3274 = vmatpush1.msra.mxu0 0.0
        %3275 = vmatprep.subr.mxu0 0.0
        %3276 = vmatpush1.msra.mxu0 0.0
        %3277 = vmatprep.subr.mxu0 0.0
        %3278 = vmatpush1.msra.mxu0 0.0
        %3279 = vmatprep.subr.mxu0 0.0
        %3280 = vmatpush1.msra.mxu0 0.0
        %3281 = vmatprep.subr.mxu0 0.0
        %3282 = vmatpush1.msra.mxu0 %v2444
        %3283 = vmatprep.subr.mxu0 0.0
        %3284 = vmatpush1.msra.mxu0 %v2437
        %3285 = vmatprep.subr.mxu0 0.0
        %3286 = vmatpush1.msra.mxu0 %v2430
        %3287 = vmatprep.subr.mxu0 0.0
        %3288 = vmatpush1.msra.mxu0 %v2423
        %3289 = vmatprep.subr.mxu0 0.0
        %3290 = vmatpush1.msra.mxu0 %v2416
        %3291 = vmatprep.subr.mxu0 0.0
        %3292 = vmatpush1.msra.mxu0 %v2409
        %3293 = vmatprep.subr.mxu0 0.0
        %3294 = vmatpush1.msra.mxu0 %v2402
        %3295 = vmatprep.subr.mxu0 0.0
        %3296 = vmatpush1.msra.mxu0 %v2395
        %3297 = vmatprep.subr.mxu0 0.0
        %3298 = vmatpush2.msra.mxu0 0.0
        %3299 = vmatprep.subr.mxu0 0.0
        %3300 = vmatpush2.msra.mxu0 0.0
        %3301 = vmatprep.subr.mxu0 0.0
        %3302 = vmatpush2.msra.mxu0 0.0
        %3303 = vmatprep.subr.mxu0 0.0
        %3304 = vmatpush2.msra.mxu0 0.0
        %3305 = vmatprep.subr.mxu0 0.0
        %3306 = vmatpush2.msra.mxu0 0.0
        %3307 = vmatprep.subr.mxu0 0.0
        %3308 = vmatpush2.msra.mxu0 0.0
        %3309 = vmatprep.subr.mxu0 0.0
        %3310 = vmatpush2.msra.mxu0 0.0
        %3311 = vmatprep.subr.mxu0 0.0
        %3312 = vmatpush2.msra.mxu0 0.0
        %3313 = vmatprep.subr.mxu0 0.0
        %3314 = vmatpush2.msra.mxu0 0.0
        %3315 = vmatprep.subr.mxu0 0.0
        %3316 = vmatpush2.msra.mxu0 0.0
        %3317 = vmatprep.subr.mxu0 0.0
        %3318 = vmatpush2.msra.mxu0 0.0
        %3319 = vmatprep.subr.mxu0 0.0
        %3320 = vmatpush2.msra.mxu0 0.0
        %3321 = vmatprep.subr.mxu0 0.0
        %3322 = vmatpush2.msra.mxu0 0.0
        %3323 = vmatprep.subr.mxu0 0.0
        %3324 = vmatpush2.msra.mxu0 0.0
        %3325 = vmatprep.subr.mxu0 0.0
        %3326 = vmatpush2.msra.mxu0 0.0
        %3327 = vmatprep.subr.mxu0 0.0
        %3328 = vmatpush2.msra.mxu0 0.0
        %3329 = vmatprep.mubr.f32.mxu0 0.0
        %3330 = vmatmul.mubr.f32.gmra.mxu0 %v2484
        %v3331 = vpop.f32.mrf.mxu0
        %v3332 = vadd.f32 %v3262, %v3331
        %v3333 = vpop.f32.mrf.mxu0
        %3334 = vdwg.mxu0
        %v3335 = vsub.f32 0.0, %v2695
        %v3336 = vsub.f32 0.0, %v2697
        %v3337 = vsub.f32 0.0, %v2908
        %v3338 = vsub.f32 0.0, %v2910
        %v3339 = vsub.f32 0.0, %v3121
        %v3340 = vsub.f32 0.0, %v3123
        %v3341 = vsub.f32 0.0, %v3332
        %v3342 = vmul.f32 %v3335, 1.442695
        %v3343 = vpow.pop %v3342
        %v3344 = vmul.f32 %v3336, 1.442695
        %v3345 = vpow.pop %v3344
        %v3346 = vmul.f32 %v3337, 1.442695
        %v3347 = vpow.pop %v3346
        %v3348 = vmul.f32 %v3338, 1.442695
        %v3349 = vpow.pop %v3348
        %v3350 = vmul.f32 %v3339, 1.442695
        %v3351 = vpow.pop %v3350
        %v3352 = vmul.f32 %v3340, 1.442695
        %v3353 = vpow.pop %v3352
        %v3354 = vmul.f32 %v3341, 1.442695
        %v3355 = vpow.pop %v3354
        %v3356 = vadd.f32 %v3343, 1.0
        %v3357 = vadd.f32 %v3345, 1.0
        %v3358 = vadd.f32 %v3347, 1.0
        %v3359 = vadd.f32 %v3349, 1.0
        %v3360 = vadd.f32 %v3351, 1.0
        %v3361 = vadd.f32 %v3353, 1.0
        %v3362 = vadd.f32 %v3355, 1.0
        %v3363 = vrcp.pop %v3356
        %v3364 = vmul.f32 1.0, %v3363
        %v3365 = vrcp.pop %v3357
        %v3366 = vmul.f32 1.0, %v3365
        %v3367 = vrcp.pop %v3358
        %v3368 = vmul.f32 1.0, %v3367
        %v3369 = vrcp.pop %v3359
        %v3370 = vmul.f32 1.0, %v3369
        %v3371 = vrcp.pop %v3360
        %v3372 = vmul.f32 1.0, %v3371
        %v3373 = vrcp.pop %v3361
        %v3374 = vmul.f32 1.0, %v3373
        %v3375 = vrcp.pop %v3362
        %v3376 = vmul.f32 1.0, %v3375
        %3377 = vst [vmem:[%s325] sm:$0xff] %v3364
        %3378 = vst [vmem:[%s325 + $0x8] sm:$0xff] %v3366
        %3379 = vst [vmem:[%s325 + $0x10] sm:$0xff] %v3368
        %3380 = vst [vmem:[%s325 + $0x18] sm:$0xff] %v3370
        %3381 = vst [vmem:[%s325 + $0x20] sm:$0xff] %v3372
        %3382 = vst [vmem:[%s325 + $0x28] sm:$0xff] %v3374
        %3383 = vst.msk [vmem:[%s325 + $0x30] sm:$0xff] %vm823, %v3376
        %s3384 = sand.u32 %s225, 1
        %s3385 = scalar_lea.sflag [#allocation3], %s3384
        %s3386 = sand.u32 %s225, 1
        %s3387 = smul.addr %s3386, 56
        %s3388 = scalar_lea.vmem [#allocation2], %s3387
        // Predicated region
        $region57: #{tpu_custom_call.1} parent=55 // pred_check
          %p3389 = pneg %p235
        $region58: #{tpu_custom_call.1} parent=55 // pred_check_branch
          %3391 = sbr.rel (%p3389) target = $region60
        $region59: #{tpu_custom_call.1} parent=55 // pred_region
          %s3393 = ssub.s32 896, 896
          %3394 = vsyncadd %s3385, %s3393
          %s3395 = smul.addr %s23, 7
          %s3396 = smul.addr %s3395, 128
          %s3397 = scalar_lea.hbm %s9, %s3396
          %s3399 = sshll.u32 %s3388, 4
          %s3400 = int_to_ptr.vmem [resolvable:$true] %s3399
          %3402 = dma.vmem_to_hbm [thread:$0]  %s3400, 896, %s3397, %s3385
        $region60: #{tpu_custom_call.1} parent=55 // pred_fallthru
          _
      $region56: #{tpu_custom_call.1} parent=5 // pred_fallthru
        _
      %p3403 = scmp.le.s32.totalorder 2, %s18
      // Predicated region
      $region61: #{tpu_custom_call.1} parent=5 // pred_check
        %p3404 = pneg %p3403
      $region62: #{tpu_custom_call.1} parent=5 // pred_check_branch
        %3406 = sbr.rel (%p3404) target = $region64
      $region63: #{tpu_custom_call.1} parent=5 // pred_region
        %s3407 = ssub.s32 %s18, 2
        // Predicated region
        $region65: #{tpu_custom_call.1} parent=63 // pred_check
          %p3408 = pneg %p241
        $region66: #{tpu_custom_call.1} parent=63 // pred_check_branch
          %3410 = sbr.rel (%p3408) target = $region68
        $region67: #{tpu_custom_call.1} parent=63 // pred_region
          %s3411 = sand.u32 %s226, 1
          %s3412 = scalar_lea.sflag [#allocation3], %s3411
          %s3413 = sand.u32 %s226, 1
          %s3414 = smul.addr %s3413, 56
          %s3415 = scalar_lea.vmem [#allocation2], %s3414
          %3416 = dma.done %s3412, 896
        $region68: #{tpu_custom_call.1} parent=63 // pred_fallthru
          _
      $region64: #{tpu_custom_call.1} parent=5 // pred_fallthru
        _
    $region6: #{tpu_custom_call.1} parent=1 // loop_footer
      %s22 = sadd.s32 1, %s18
    $region7: #{tpu_custom_call.1} parent=1 // loop_footer_branch
      %17 = sbr.rel target = $region3
    $region8: #{tpu_custom_call.1} parent=1 // loop_exit
      _
    %3417 = vsyncpa [#allocation3], 1
    %s3418 = scalar_lea.sflag [#allocation3], 1
    %3419 = vsyncpa %s3418, 1

</llo_original>
